<compile_context>
chip_gen: v6e
topology: v6e:2x2x1
jax: 0.10.0
libtpu: 0.0.40
codegen_flags: <defaults>
</compile_context>

<pallas_src>
import functools

import jax
import jax.numpy as jnp
from jax.experimental import pallas as pl
from jax.experimental.pallas import tpu as pltpu


def _round_up(x, m):
    return ((x + m - 1) // m) * m


def _pick_row_tile(h, cap=8):
    """Largest divisor of h that is <= cap, so row blocks always tile evenly."""
    for t in range(min(cap, h), 0, -1):
        if h % t == 0:
            return t
    return 1


def _vmem_limit_bytes():
    """Generation-aware scoped-VMEM budget (~75% of physical, capped at 100 MiB)."""
    try:
        cap = int(pltpu.get_tpu_info().vmem_capacity_bytes)
    except Exception:
        cap = 64 * 1024 * 1024  # conservative fallback (safe on all generations)
    return min((cap * 3) // 4, 100 * 1024 * 1024)


# ---------------------------------------------------------------------------
# Pallas kernels (one per conv stage; everything else is fused in)
# ---------------------------------------------------------------------------
def _conv_a_kernel(x_ref, w_ref, ps_ref, pb_ref, cb_ref, s2_ref, b2_ref,
                   o_ref, pack_ref, *, H, W, Wq, Cin, Cout, TH, Wo, stride):
    """Stage B: relu(bn1*af1(x)) -> 3x3 conv (+folded 1x1/BNs/af2) -> relu -> bn2*af3 -> relu.

    x_ref   : (1, H, W, Cin)  bf16  raw input image (resident across row tiles)
    w_ref   : (3, 3*Cin, Cout) bf16 dx-packed taps (BN scales + af2 gate folded in)
    ps/pb   : (1, Cin)  f32  prologue affine (bn1 scale*a1, bias*a1)
    cb      : (1, Cout) f32  conv bias (already * a2)
    s2/b2   : (1, Cout) f32  epilogue affine (bn2 scale*a3, bias*a3)
    o_ref   : (1, TH, Wo, Cout) bf16 output row tile
    pack_ref: (H+2, Wq, 3*Cin) bf16 VMEM scratch: pack[r,c,dx*Cin+ci] = h_pad[r, c+dx, ci]
    """
    r = pl.program_id(1)

    @pl.when(r == 0)
    def _build_packed_input():
        # Prologue (bn1 -> af1 -> relu) on the whole image, written once per image
        # into the zero-padded, dx-packed scratch.  Border stays exactly 0.
        pack_ref[...] = jnp.zeros(pack_ref.shape, pack_ref.dtype)
        xb = x_ref[0].astype(jnp.float32)                               # (H, W, Cin)
        h = jnp.maximum(xb * ps_ref[...] + pb_ref[...], 0.0).astype(jnp.bfloat16)
        pack_ref[1:H + 1, 1:W + 1, 0:Cin] = h                           # dx = 0
        pack_ref[1:H + 1, 0:W, Cin:2 * Cin] = h                         # dx = 1
        pack_ref[1:H + 1, 0:W - 1, 2 * Cin:3 * Cin] = h[:, 1:, :]       # dx = 2

    ro0 = pl.multiple_of(r * TH, TH)
    acc = jnp.zeros((TH * Wq, Cout), jnp.float32)
    for dy in range(3):                                 # K-packed: 3 dots, K = 3*Cin
        if stride == 1:
            slab = pack_ref[pl.ds(ro0 + dy, TH)]                        # (TH, Wq, 3*Cin)
        else:
            slab = pack_ref[pl.ds(stride * ro0 + dy, TH, stride=stride)]
        acc = acc + jnp.dot(slab.reshape(TH * Wq, 3 * Cin), w_ref[dy],
                            preferred_element_type=jnp.float32)
    acc = acc.reshape(TH, Wq, Cout)
    kept = acc[:, 0:stride * Wo:stride, :]                              # (TH, Wo, Cout)

    # Epilogue: (+bias, af2 folded) -> relu -> bn2*af3 -> relu, stored as bf16.
    t = jnp.maximum(kept + cb_ref[...], 0.0)
    o_ref[0] = jnp.maximum(t * s2_ref[...] + b2_ref[...], 0.0).astype(o_ref.dtype)


def _conv_b_kernel(h_ref, xs_ref, w_ref, wds_ref, cb_ref, o_ref, pack_ref,
                   *, Ho, Wo, Wq, Cmid, Cin, Cout, TH):
    """Stage C: 3x3 conv (+folded 1x1/identity-BN) + downsample 1x1 conv + add -> af4 -> relu.

    h_ref   : (1, Ho, Wo, Cmid) bf16 stage-B output (resident across row tiles)
    xs_ref  : (1, TH, Wo, Cin)  bf16 (strided) raw-input tile for the shortcut
    w_ref   : (3, 3*Cmid, Cout) bf16 dx-packed taps (BNs + identity + af4 folded)
    wds_ref : (Cin, Cout)       bf16 downsample conv*BN*af4 folded
    cb_ref  : (1, Cout)         f32  combined bias (* a4)
    o_ref   : (1, TH, Wo, Cout) f32
    pack_ref: (Ho+2, Wq, 3*Cmid) bf16 VMEM scratch
    """
    r = pl.program_id(1)

    @pl.when(r == 0)
    def _build_packed_input():
        pack_ref[...] = jnp.zeros(pack_ref.shape, pack_ref.dtype)
        hb = h_ref[0]                                                    # (Ho, Wo, Cmid)
        pack_ref[1:Ho + 1, 1:Wo + 1, 0:Cmid] = hb                        # dx = 0
        pack_ref[1:Ho + 1, 0:Wo, Cmid:2 * Cmid] = hb                     # dx = 1
        pack_ref[1:Ho + 1, 0:Wo - 1, 2 * Cmid:3 * Cmid] = hb[:, 1:, :]   # dx = 2

    ro0 = pl.multiple_of(r * TH, TH)
    acc = jnp.zeros((TH * Wq, Cout), jnp.float32)
    for dy in range(3):                                  # K-packed: 3 dots, K = 3*Cmid
        slab = pack_ref[pl.ds(ro0 + dy, TH)]                             # (TH, Wq, 3*Cmid)
        acc = acc + jnp.dot(slab.reshape(TH * Wq, 3 * Cmid), w_ref[dy],
                            preferred_element_type=jnp.float32)
    conv3 = acc.reshape(TH, Wq, Cout)[:, 0:Wo, :]                        # (TH, Wo, Cout)

    # Fused downsample shortcut (1x1 conv + BN + af4 folded into wds/cb).
    xs = xs_ref[0].reshape(TH * Wo, Cin)
    ds = jnp.dot(xs, wds_ref[...],
                 preferred_element_type=jnp.float32).reshape(TH, Wo, Cout)

    o_ref[0] = jnp.maximum(conv3 + ds + cb_ref[...], 0.0).astype(o_ref.dtype)


# ---------------------------------------------------------------------------
# pallas_call wrappers
# ---------------------------------------------------------------------------
def _conv_a_call(x, w_pack, ps, pb, cb, s2, b2, *, stride):
    N, H, W, Ci = x.shape
    Cout = w_pack.shape[-1]
    Ho = (H - 1) // stride + 1
    Wo = (W - 1) // stride + 1
    TH = _pick_row_tile(Ho)
    Wq = _round_up(W + 2, 8)               # sublane-aligned padded width for the scratch
    kern = functools.partial(_conv_a_kernel, H=H, W=W, Wq=Wq, Cin=Ci, Cout=Cout,
                             TH=TH, Wo=Wo, stride=stride)
    return pl.pallas_call(
        kern,
        out_shape=jax.ShapeDtypeStruct((N, Ho, Wo, Cout), jnp.bfloat16),
        grid=(N, Ho // TH),
        in_specs=[
            pl.BlockSpec((1, H, W, Ci), lambda n, r: (n, 0, 0, 0)),      # full image, resident
            pl.BlockSpec((3, 3 * Ci, Cout), lambda n, r: (0, 0, 0)),
            pl.BlockSpec((1, Ci), lambda n, r: (0, 0)),
            pl.BlockSpec((1, Ci), lambda n, r: (0, 0)),
            pl.BlockSpec((1, Cout), lambda n, r: (0, 0)),
            pl.BlockSpec((1, Cout), lambda n, r: (0, 0)),
            pl.BlockSpec((1, Cout), lambda n, r: (0, 0)),
        ],
        out_specs=pl.BlockSpec((1, TH, Wo, Cout), lambda n, r: (n, r, 0, 0)),
        scratch_shapes=[pltpu.VMEM((H + 2, Wq, 3 * Ci), jnp.bfloat16)],
        compiler_params=pltpu.CompilerParams(
            dimension_semantics=("parallel", "arbitrary"),
            vmem_limit_bytes=_vmem_limit_bytes()),
    )(x, w_pack, ps, pb, cb, s2, b2)


def _conv_b_call(h3, xs, w_pack, w_ds, cb):
    N, Ho, Wo, Cm = h3.shape
    Ci = xs.shape[-1]
    Cout = w_pack.shape[-1]
    TH = _pick_row_tile(Ho)
    Wq = _round_up(Wo + 2, 8)
    kern = functools.partial(_conv_b_kernel, Ho=Ho, Wo=Wo, Wq=Wq,
                             Cmid=Cm, Cin=Ci, Cout=Cout, TH=TH)
    return pl.pallas_call(
        kern,
        out_shape=jax.ShapeDtypeStruct((N, Ho, Wo, Cout), jnp.float32),
        grid=(N, Ho // TH),
        in_specs=[
            pl.BlockSpec((1, Ho, Wo, Cm), lambda n, r: (n, 0, 0, 0)),    # full image, resident
            pl.BlockSpec((1, TH, Wo, Ci), lambda n, r: (n, r, 0, 0)),    # shortcut tile
            pl.BlockSpec((3, 3 * Cm, Cout), lambda n, r: (0, 0, 0)),
            pl.BlockSpec((Ci, Cout), lambda n, r: (0, 0)),
            pl.BlockSpec((1, Cout), lambda n, r: (0, 0)),
        ],
        out_specs=pl.BlockSpec((1, TH, Wo, Cout), lambda n, r: (n, r, 0, 0)),
        scratch_shapes=[pltpu.VMEM((Ho + 2, Wq, 3 * Cm), jnp.bfloat16)],
        compiler_params=pltpu.CompilerParams(
            dimension_semantics=("parallel", "arbitrary"),
            vmem_limit_bytes=_vmem_limit_bytes()),
    )(h3, xs, w_pack, w_ds, cb)


# ---------------------------------------------------------------------------
# Glue: BN folding, parameter construction, forward
# ---------------------------------------------------------------------------
def _bn_affine(bn, eps=1e-5):
    s = bn['gamma'] / jnp.sqrt(bn['var'] + eps)
    return s, bn['beta'] - s * bn['mean']


def init_params(key, inplanes, planes):
    """Deterministic synthetic parameters matching the module's __init__ shapes."""
    keys = iter(jax.random.split(key, 48))

    def bn(c):
        return dict(
            gamma=jax.random.uniform(next(keys), (c,), jnp.float32, 0.5, 1.5),
            beta=0.1 * jax.random.normal(next(keys), (c,), jnp.float32),
            mean=0.1 * jax.random.normal(next(keys), (c,), jnp.float32),
            var=jax.random.uniform(next(keys), (c,), jnp.float32, 0.5, 1.5),
        )

    ci, cp = inplanes, planes
    return dict(
        bn1=bn(ci),
        af1=0.5 * jax.random.normal(next(keys), (ci,), jnp.float32),
        w3_a=0.1 * jax.random.normal(next(keys), (3, 3, ci, cp), jnp.float32),  # HWIO
        bn_c1b1=bn(cp),
        w1_a=0.1 * jax.random.normal(next(keys), (ci, cp), jnp.float32),
        bn_c1b2=bn(cp),
        af2=0.5 * jax.random.normal(next(keys), (cp,), jnp.float32),
        bn2=bn(cp),
        af3=0.5 * jax.random.normal(next(keys), (cp,), jnp.float32),
        w3_b=0.1 * jax.random.normal(next(keys), (3, 3, cp, cp), jnp.float32),
        bn_c2b1=bn(cp),
        w1_b=0.1 * jax.random.normal(next(keys), (cp, cp), jnp.float32),
        bn_c2b2=bn(cp),
        bn_c2i=bn(cp),
        af4=0.5 * jax.random.normal(next(keys), (cp,), jnp.float32),
        w_ds=0.1 * jax.random.normal(next(keys), (ci, cp), jnp.float32),
        bn_ds=bn(cp),
    )


def af_basic_block_forward(x_nchw, params, stride=1, att0=None):
    """Forward of afBasicBlock_complex (conv1 is None branch, downsample=Sequential)."""
    x = jnp.transpose(x_nchw, (0, 2, 3, 1)).astype(jnp.bfloat16)        # NHWC, bf16
    _, _, _, Ci = x.shape
    Cp = params['af2'].shape[0]

    # ForgettingLayer gates.
    a1 = jax.nn.sigmoid(params['af1'])
    a2 = jax.nn.sigmoid(params['af2'])
    a3 = jax.nn.sigmoid(params['af3'])
    a4 = jax.nn.sigmoid(params['af4'])

    vec = lambda v: jnp.asarray(v, jnp.float32).reshape(1, -1)

    # Prologue bn1 -> af1 (gate distributed inside the relu argument: exact).
    s1, b1 = _bn_affine(params['bn1'])
    ps, pb = s1 * a1, b1 * a1

    # Conv A = conv1_bn_1 (3x3) + conv1_bn_2 (1x1 -> center tap); af2 gate folded.
    sA1, bA1 = _bn_affine(params['bn_c1b1'])
    sA2, bA2 = _bn_affine(params['bn_c1b2'])
    W_A = params['w3_a'] * sA1[None, None, None, :]
    W_A = W_A.at[1, 1].add(params['w1_a'] * sA2[None, :])
    W_A = W_A * a2[None, None, None, :]
    bias_A = (bA1 + bA2) * a2
    s2, b2 = _bn_affine(params['bn2'])
    s2p, b2p = s2 * a3, b2 * a3                                          # bn2 * af3 pre-combined

    # Conv B = conv2_bn_1 (3x3) + conv2_bn_2 (1x1) + conv2_identity (diag BN); af4 folded.
    # NOTE: identity fold onto the center tap requires Cmid == Cout (expansion == 1).
    sB1, bB1 = _bn_affine(params['bn_c2b1'])
    sB2, bB2 = _bn_affine(params['bn_c2b2'])
    sI, bI = _bn_affine(params['bn_c2i'])
    W_B = params['w3_b'] * sB1[None, None, None, :]
    W_B = W_B.at[1, 1].add(params['w1_b'] * sB2[None, :])
    W_B = W_B.at[1, 1].add(jnp.diag(sI))
    W_B = W_B * a4[None, None, None, :]
    sD, bD = _bn_affine(params['bn_ds'])
    W_ds = params['w_ds'] * sD[None, :] * a4[None, :]
    bias_C = (bB1 + bB2 + bI + bD) * a4

    # ---- stage B: fused prologue + K-packed 3x3 conv + epilogue (1 pallas_call) ----
    # HWIO (3,3,Ci,Cp) -> (dy, dx*Ci, Cp): matches pack[r,c,dx*Ci+ci] operand layout.
    h3 = _conv_a_call(x,
                      W_A.reshape(3, 3 * Ci, Cp).astype(jnp.bfloat16),
                      vec(ps), vec(pb), vec(bias_A), vec(s2p), vec(b2p),
                      stride=stride)

    # ---- stage C: fused K-packed 3x3 conv + shortcut 1x1 conv + add + af4 + relu ----
    xs = x if stride == 1 else x[:, ::stride, ::stride, :]
    out = _conv_b_call(h3, xs,
                       W_B.reshape(3, 3 * Cp, Cp).astype(jnp.bfloat16),
                       W_ds.astype(jnp.bfloat16), vec(bias_C))

    out_nchw = jnp.transpose(out, (0, 3, 1, 2))                          # back to NCHW
    atts = [a.reshape(1, -1, 1, 1) for a in (a1, a2, a3, a4)]
    if att0 is not None:
        atts = list(att0) + atts
    return out_nchw, atts


# ---------------------------------------------------------------------------
# Pure-JAX reference (unfused, f32) for correctness verification
# ---------------------------------------------------------------------------
def _reference_forward(x_nchw, params, stride=1):
    x = jnp.transpose(x_nchw, (0, 2, 3, 1)).astype(jnp.float32)
    dn = ('NHWC', 'HWIO', 'NHWC')

    def bn(v, p):
        s = p['gamma'] / jnp.sqrt(p['var'] + 1e-5)
        return v * s + (p['beta'] - s * p['mean'])

    conv = functools.partial(jax.lax.conv_general_dilated, dimension_numbers=dn)
    a1 = jax.nn.sigmoid(params['af1']); a2 = jax.nn.sigmoid(params['af2'])
    a3 = jax.nn.sigmoid(params['af3']); a4 = jax.nn.sigmoid(params['af4'])

    h = jnp.maximum(bn(x, params['bn1']) * a1, 0.0)
    c1 = bn(conv(h, params['w3_a'], (stride, stride), ((1, 1), (1, 1))), params['bn_c1b1'])
    c2 = bn(conv(h, params['w1_a'][None, None], (stride, stride), ((0, 0), (0, 0))),
            params['bn_c1b2'])
    t = jnp.maximum((c1 + c2) * a2, 0.0)
    t = jnp.maximum(bn(t, params['bn2']) * a3, 0.0)
    d1 = bn(conv(t, params['w3_b'], (1, 1), ((1, 1), (1, 1))), params['bn_c2b1'])
    d2 = bn(conv(t, params['w1_b'][None, None], (1, 1), ((0, 0), (0, 0))), params['bn_c2b2'])
    d3 = bn(t, params['bn_c2i'])
    ds = bn(conv(x, params['w_ds'][None, None], (stride, stride), ((0, 0), (0, 0))),
            params['bn_ds'])
    out = jnp.maximum((d1 + d2 + d3 + ds) * a4, 0.0)
    return jnp.transpose(out, (0, 3, 1, 2))


# ---------------------------------------------------------------------------
if __name__ == "__main__":
    key = jax.random.PRNGKey(0)
    kx, kp = jax.random.split(key)

    N, inplanes, planes, HW, stride = 2, 4, 8, 16, 1
    x = jax.random.normal(kx, (N, inplanes, HW, HW), jnp.float32)        # NCHW
    params = init_params(kp, inplanes, planes)

    fwd = jax.jit(functools.partial(af_basic_block_forward, stride=stride))
    out, atts = fwd(x, params)
    out = jax.block_until_ready(out)

    assert out.shape == (N, planes, HW, HW), out.shape
    assert len(atts) == 4 and atts[0].shape == (1, inplanes, 1, 1)
    assert bool(jnp.all(jnp.isfinite(out)))

    # Numerical check vs. an unfused f32 XLA reference (bf16 activations/operands => loose tol).
    ref = _reference_forward(x, params, stride)
    err = float(jnp.max(jnp.abs(out - ref)))
    assert err < 5e-2, f"max abs err vs reference = {err}"

    print("KERNEL_OK")
</pallas_src>

<mosaic_0001>
module attributes {stable_mosaic.version = 11 : i64} {
  func.func @_conv_b_kernel(%arg0: i32, %arg1: i32, %arg2: memref<1x16x16x8xbf16, #tpu.memory_space<vmem>>, %arg3: memref<1x8x16x4xbf16, #tpu.memory_space<vmem>>, %arg4: memref<3x24x8xbf16, #tpu.memory_space<vmem>>, %arg5: memref<4x8xbf16, #tpu.memory_space<vmem>>, %arg6: memref<1x8xf32, #tpu.memory_space<vmem>>, %arg7: memref<1x8x16x8xf32, #tpu.memory_space<vmem>>, %arg8: memref<18x24x24xbf16, #tpu.memory_space<vmem>>) attributes {dimension_semantics = [#tpu.dimension_semantics<parallel>, #tpu.dimension_semantics<arbitrary>], iteration_bounds = array<i64: 2, 2>, scalar_prefetch = 0 : i64, scratch_operands = 1 : i64, tpu.core_type = #tpu.core_type<tc>, window_params = [{transform_indices = @transform_0, window_bounds = array<i64: 1, 16, 16, 8>}, {transform_indices = @transform_1, window_bounds = array<i64: 1, 8, 16, 4>}, {pipeline_mode = #tpu.pipeline_mode<synchronous>, transform_indices = @transform_2, window_bounds = array<i64: 3, 24, 8>}, {pipeline_mode = #tpu.pipeline_mode<synchronous>, transform_indices = @transform_3, window_bounds = array<i64: 4, 8>}, {pipeline_mode = #tpu.pipeline_mode<synchronous>, transform_indices = @transform_4, window_bounds = array<i64: 1, 8>}, {transform_indices = @transform_5, window_bounds = array<i64: 1, 8, 16, 8>}]} {
    %c0_i32 = arith.constant 0 : i32
    %0 = arith.cmpi eq, %arg1, %c0_i32 : i32
    %1 = arith.extui %0 : i1 to i32
    %c0_i32_0 = arith.constant 0 : i32
    %2 = arith.cmpi ne, %1, %c0_i32_0 : i32
    scf.if %2 {
      %cst_31 = arith.constant 0.000000e+00 : bf16
      %48 = vector.broadcast %cst_31 : bf16 to vector<18x24x24xbf16>
      %c0_32 = arith.constant 0 : index
      %c0_33 = arith.constant 0 : index
      %c0_34 = arith.constant 0 : index
      %49 = vector.load %arg8[%c0_32, %c0_33, %c0_34] : memref<18x24x24xbf16, #tpu.memory_space<vmem>>, vector<18x24x24xbf16>
      tpu.vector_store %arg8[%c0_32, %c0_33, %c0_34], %48 {strides = array<i32>} : memref<18x24x24xbf16, #tpu.memory_space<vmem>>, vector<18x24x24xbf16>,
      %c0_35 = arith.constant 0 : index
      %c0_36 = arith.constant 0 : index
      %c0_37 = arith.constant 0 : index
      %c0_38 = arith.constant 0 : index
      %50 = vector.load %arg2[%c0_35, %c0_36, %c0_37, %c0_38] : memref<1x16x16x8xbf16, #tpu.memory_space<vmem>>, vector<1x16x16x8xbf16>
      %51 = vector.shape_cast %50 : vector<1x16x16x8xbf16> to vector<16x16x8xbf16>
      %c1_39 = arith.constant 1 : index
      %c1_40 = arith.constant 1 : index
      %c0_41 = arith.constant 0 : index
      %52 = vector.load %arg8[%c1_39, %c1_40, %c0_41] : memref<18x24x24xbf16, #tpu.memory_space<vmem>>, vector<16x16x8xbf16>
      tpu.vector_store %arg8[%c1_39, %c1_40, %c0_41], %51 {strides = array<i32>} : memref<18x24x24xbf16, #tpu.memory_space<vmem>>, vector<16x16x8xbf16>,
      %c1_42 = arith.constant 1 : index
      %c0_43 = arith.constant 0 : index
      %c8 = arith.constant 8 : index
      %53 = vector.load %arg8[%c1_42, %c0_43, %c8] : memref<18x24x24xbf16, #tpu.memory_space<vmem>>, vector<16x16x8xbf16>
      tpu.vector_store %arg8[%c1_42, %c0_43, %c8], %51 {strides = array<i32>} : memref<18x24x24xbf16, #tpu.memory_space<vmem>>, vector<16x16x8xbf16>,
      %54 = vector.extract_strided_slice %51 {offsets = [0, 1, 0], sizes = [16, 15, 8], strides = [1, 1, 1]} : vector<16x16x8xbf16> to vector<16x15x8xbf16>
      %c1_44 = arith.constant 1 : index
      %c0_45 = arith.constant 0 : index
      %c16 = arith.constant 16 : index
      %55 = vector.load %arg8[%c1_44, %c0_45, %c16] : memref<18x24x24xbf16, #tpu.memory_space<vmem>>, vector<16x15x8xbf16>
      tpu.vector_store %arg8[%c1_44, %c0_45, %c16], %54 {strides = array<i32>} : memref<18x24x24xbf16, #tpu.memory_space<vmem>>, vector<16x15x8xbf16>,
    } else {
    }
    %c8_i32 = arith.constant 8 : i32
    %3 = arith.muli %arg1, %c8_i32 : i32
    %4 = tpu.assume_multiple %3, 8 : i32
    %cst = arith.constant 0.000000e+00 : f32
    %5 = vector.broadcast %cst : f32 to vector<192x8xf32>
    %c0_i32_1 = arith.constant 0 : i32
    %6 = arith.addi %4, %c0_i32_1 : i32
    %7 = arith.index_cast %6 : i32 to index
    %c0 = arith.constant 0 : index
    %c0_2 = arith.constant 0 : index
    %8 = vector.load %arg8[%7, %c0, %c0_2] : memref<18x24x24xbf16, #tpu.memory_space<vmem>>, vector<8x24x24xbf16>
    %9 = vector.shape_cast %8 : vector<8x24x24xbf16> to vector<192x24xbf16>
    %c0_3 = arith.constant 0 : index
    %c0_4 = arith.constant 0 : index
    %c0_5 = arith.constant 0 : index
    %10 = vector.load %arg4[%c0_3, %c0_4, %c0_5] : memref<3x24x8xbf16, #tpu.memory_space<vmem>>, vector<1x24x8xbf16>
    %11 = vector.shape_cast %10 : vector<1x24x8xbf16> to vector<24x8xbf16>
    %cst_6 = arith.constant dense<0.000000e+00> : vector<192x8xf32>
    %12 = tpu.matmul %9, %11, %cst_6 {dimension_numbers = #tpu.dot_dimension_numbers<[1], [0], [0], [1], [0, 0, 1, 1], [], []>} : vector<192x24xbf16>, vector<24x8xbf16>, vector<192x8xf32> -> vector<192x8xf32>
    %13 = arith.addf %5, %12 : vector<192x8xf32>
    %c1_i32 = arith.constant 1 : i32
    %14 = arith.addi %4, %c1_i32 : i32
    %15 = arith.index_cast %14 : i32 to index
    %c0_7 = arith.constant 0 : index
    %c0_8 = arith.constant 0 : index
    %16 = vector.load %arg8[%15, %c0_7, %c0_8] : memref<18x24x24xbf16, #tpu.memory_space<vmem>>, vector<8x24x24xbf16>
    %17 = vector.shape_cast %16 : vector<8x24x24xbf16> to vector<192x24xbf16>
    %c1 = arith.constant 1 : index
    %c0_9 = arith.constant 0 : index
    %c0_10 = arith.constant 0 : index
    %18 = vector.load %arg4[%c1, %c0_9, %c0_10] : memref<3x24x8xbf16, #tpu.memory_space<vmem>>, vector<1x24x8xbf16>
    %19 = vector.shape_cast %18 : vector<1x24x8xbf16> to vector<24x8xbf16>
    %cst_11 = arith.constant dense<0.000000e+00> : vector<192x8xf32>
    %20 = tpu.matmul %17, %19, %cst_11 {dimension_numbers = #tpu.dot_dimension_numbers<[1], [0], [0], [1], [0, 0, 1, 1], [], []>} : vector<192x24xbf16>, vector<24x8xbf16>, vector<192x8xf32> -> vector<192x8xf32>
    %21 = arith.addf %13, %20 : vector<192x8xf32>
    %c2_i32 = arith.constant 2 : i32
    %22 = arith.addi %4, %c2_i32 : i32
    %23 = arith.index_cast %22 : i32 to index
    %c0_12 = arith.constant 0 : index
    %c0_13 = arith.constant 0 : index
    %24 = vector.load %arg8[%23, %c0_12, %c0_13] : memref<18x24x24xbf16, #tpu.memory_space<vmem>>, vector<8x24x24xbf16>
    %25 = vector.shape_cast %24 : vector<8x24x24xbf16> to vector<192x24xbf16>
    %c2 = arith.constant 2 : index
    %c0_14 = arith.constant 0 : index
    %c0_15 = arith.constant 0 : index
    %26 = vector.load %arg4[%c2, %c0_14, %c0_15] : memref<3x24x8xbf16, #tpu.memory_space<vmem>>, vector<1x24x8xbf16>
    %27 = vector.shape_cast %26 : vector<1x24x8xbf16> to vector<24x8xbf16>
    %cst_16 = arith.constant dense<0.000000e+00> : vector<192x8xf32>
    %28 = tpu.matmul %25, %27, %cst_16 {dimension_numbers = #tpu.dot_dimension_numbers<[1], [0], [0], [1], [0, 0, 1, 1], [], []>} : vector<192x24xbf16>, vector<24x8xbf16>, vector<192x8xf32> -> vector<192x8xf32>
    %29 = arith.addf %21, %28 : vector<192x8xf32>
    %30 = vector.shape_cast %29 : vector<192x8xf32> to vector<8x24x8xf32>
    %31 = vector.extract_strided_slice %30 {offsets = [0, 0, 0], sizes = [8, 16, 8], strides = [1, 1, 1]} : vector<8x24x8xf32> to vector<8x16x8xf32>
    %c0_17 = arith.constant 0 : index
    %c0_18 = arith.constant 0 : index
    %c0_19 = arith.constant 0 : index
    %c0_20 = arith.constant 0 : index
    %32 = vector.load %arg3[%c0_17, %c0_18, %c0_19, %c0_20] : memref<1x8x16x4xbf16, #tpu.memory_space<vmem>>, vector<1x8x16x4xbf16>
    %33 = vector.shape_cast %32 : vector<1x8x16x4xbf16> to vector<8x16x4xbf16>
    %34 = vector.shape_cast %33 : vector<8x16x4xbf16> to vector<128x4xbf16>
    %c0_21 = arith.constant 0 : index
    %c0_22 = arith.constant 0 : index
    %35 = vector.load %arg5[%c0_21, %c0_22] : memref<4x8xbf16, #tpu.memory_space<vmem>>, vector<4x8xbf16>
    %cst_23 = arith.constant dense<0.000000e+00> : vector<128x8xf32>
    %36 = tpu.matmul %34, %35, %cst_23 {dimension_numbers = #tpu.dot_dimension_numbers<[1], [0], [0], [1], [0, 0, 1, 1], [], []>} : vector<128x4xbf16>, vector<4x8xbf16>, vector<128x8xf32> -> vector<128x8xf32>
    %37 = vector.shape_cast %36 : vector<128x8xf32> to vector<8x16x8xf32>
    %38 = arith.addf %31, %37 : vector<8x16x8xf32>
    %c0_24 = arith.constant 0 : index
    %c0_25 = arith.constant 0 : index
    %39 = vector.load %arg6[%c0_24, %c0_25] : memref<1x8xf32, #tpu.memory_space<vmem>>, vector<1x8xf32>
    %40 = vector.shape_cast %39 : vector<1x8xf32> to vector<1x1x8xf32>
    %41 = vector.broadcast %40 : vector<1x1x8xf32> to vector<8x16x8xf32>
    %42 = arith.addf %38, %41 : vector<8x16x8xf32>
    %cst_26 = arith.constant 0.000000e+00 : f32
    %43 = vector.broadcast %cst_26 : f32 to vector<8x16x8xf32>
    %44 = arith.maximumf %42, %43 : vector<8x16x8xf32>
    %c0_27 = arith.constant 0 : index
    %c0_28 = arith.constant 0 : index
    %c0_29 = arith.constant 0 : index
    %c0_30 = arith.constant 0 : index
    %45 = vector.load %arg7[%c0_27, %c0_28, %c0_29, %c0_30] : memref<1x8x16x8xf32, #tpu.memory_space<vmem>>, vector<1x8x16x8xf32>
    %46 = vector.shape_cast %45 : vector<1x8x16x8xf32> to vector<8x16x8xf32>
    %47 = vector.shape_cast %44 : vector<8x16x8xf32> to vector<1x8x16x8xf32>
    tpu.vector_store %arg7[%c0_27, %c0_28, %c0_29, %c0_30], %47 {strides = array<i32>} : memref<1x8x16x8xf32, #tpu.memory_space<vmem>>, vector<1x8x16x8xf32>,
    return
  }
  func.func @transform_0(%arg0: i32, %arg1: i32) -> (i32, i32, i32, i32) {
    %c0_i32 = arith.constant 0 : i32
    %c0_i32_0 = arith.constant 0 : i32
    %c0_i32_1 = arith.constant 0 : i32
    %c0_i32_2 = arith.constant 0 : i32
    return %arg0, %c0_i32, %c0_i32_0, %c0_i32_1 : i32, i32, i32, i32
  }
  func.func @transform_1(%arg0: i32, %arg1: i32) -> (i32, i32, i32, i32) {
    %c0_i32 = arith.constant 0 : i32
    %c0_i32_0 = arith.constant 0 : i32
    %c0_i32_1 = arith.constant 0 : i32
    return %arg0, %arg1, %c0_i32, %c0_i32_0 : i32, i32, i32, i32
  }
  func.func @transform_2(%arg0: i32, %arg1: i32) -> (i32, i32, i32) {
    %c0_i32 = arith.constant 0 : i32
    %c0_i32_0 = arith.constant 0 : i32
    %c0_i32_1 = arith.constant 0 : i32
    %c0_i32_2 = arith.constant 0 : i32
    return %c0_i32, %c0_i32_0, %c0_i32_1 : i32, i32, i32
  }
  func.func @transform_3(%arg0: i32, %arg1: i32) -> (i32, i32) {
    %c0_i32 = arith.constant 0 : i32
    %c0_i32_0 = arith.constant 0 : i32
    %c0_i32_1 = arith.constant 0 : i32
    return %c0_i32, %c0_i32_0 : i32, i32
  }
  func.func @transform_4(%arg0: i32, %arg1: i32) -> (i32, i32) {
    %c0_i32 = arith.constant 0 : i32
    %c0_i32_0 = arith.constant 0 : i32
    %c0_i32_1 = arith.constant 0 : i32
    return %c0_i32, %c0_i32_0 : i32, i32
  }
  func.func @transform_5(%arg0: i32, %arg1: i32) -> (i32, i32, i32, i32) {
    %c0_i32 = arith.constant 0 : i32
    %c0_i32_0 = arith.constant 0 : i32
    %c0_i32_1 = arith.constant 0 : i32
    return %arg0, %arg1, %c0_i32, %c0_i32_0 : i32, i32, i32, i32
  }
}

module attributes {stable_mosaic.version = 11 : i64} {
  func.func @_conv_a_kernel(%arg0: i32, %arg1: i32, %arg2: memref<1x16x16x4xbf16, #tpu.memory_space<vmem>>, %arg3: memref<3x12x8xbf16, #tpu.memory_space<vmem>>, %arg4: memref<1x4xf32, #tpu.memory_space<vmem>>, %arg5: memref<1x4xf32, #tpu.memory_space<vmem>>, %arg6: memref<1x8xf32, #tpu.memory_space<vmem>>, %arg7: memref<1x8xf32, #tpu.memory_space<vmem>>, %arg8: memref<1x8xf32, #tpu.memory_space<vmem>>, %arg9: memref<1x8x16x8xbf16, #tpu.memory_space<vmem>>, %arg10: memref<18x24x12xbf16, #tpu.memory_space<vmem>>) attributes {dimension_semantics = [#tpu.dimension_semantics<parallel>, #tpu.dimension_semantics<arbitrary>], iteration_bounds = array<i64: 2, 2>, scalar_prefetch = 0 : i64, scratch_operands = 1 : i64, tpu.core_type = #tpu.core_type<tc>, window_params = [{transform_indices = @transform_0, window_bounds = array<i64: 1, 16, 16, 4>}, {pipeline_mode = #tpu.pipeline_mode<synchronous>, transform_indices = @transform_1, window_bounds = array<i64: 3, 12, 8>}, {pipeline_mode = #tpu.pipeline_mode<synchronous>, transform_indices = @transform_2, window_bounds = array<i64: 1, 4>}, {pipeline_mode = #tpu.pipeline_mode<synchronous>, transform_indices = @transform_3, window_bounds = array<i64: 1, 4>}, {pipeline_mode = #tpu.pipeline_mode<synchronous>, transform_indices = @transform_4, window_bounds = array<i64: 1, 8>}, {pipeline_mode = #tpu.pipeline_mode<synchronous>, transform_indices = @transform_5, window_bounds = array<i64: 1, 8>}, {pipeline_mode = #tpu.pipeline_mode<synchronous>, transform_indices = @transform_6, window_bounds = array<i64: 1, 8>}, {transform_indices = @transform_7, window_bounds = array<i64: 1, 8, 16, 8>}]} {
    %c0_i32 = arith.constant 0 : i32
    %0 = arith.cmpi eq, %arg1, %c0_i32 : i32
    %1 = arith.extui %0 : i1 to i32
    %c0_i32_0 = arith.constant 0 : i32
    %2 = arith.cmpi ne, %1, %c0_i32_0 : i32
    scf.if %2 {
      %cst_29 = arith.constant 0.000000e+00 : bf16
      %52 = vector.broadcast %cst_29 : bf16 to vector<18x24x12xbf16>
      %c0_30 = arith.constant 0 : index
      %c0_31 = arith.constant 0 : index
      %c0_32 = arith.constant 0 : index
      %53 = vector.load %arg10[%c0_30, %c0_31, %c0_32] : memref<18x24x12xbf16, #tpu.memory_space<vmem>>, vector<18x24x12xbf16>
      tpu.vector_store %arg10[%c0_30, %c0_31, %c0_32], %52 {strides = array<i32>} : memref<18x24x12xbf16, #tpu.memory_space<vmem>>, vector<18x24x12xbf16>,
      %c0_33 = arith.constant 0 : index
      %c0_34 = arith.constant 0 : index
      %c0_35 = arith.constant 0 : index
      %c0_36 = arith.constant 0 : index
      %54 = vector.load %arg2[%c0_33, %c0_34, %c0_35, %c0_36] : memref<1x16x16x4xbf16, #tpu.memory_space<vmem>>, vector<1x16x16x4xbf16>
      %55 = vector.shape_cast %54 : vector<1x16x16x4xbf16> to vector<16x16x4xbf16>
      %56 = arith.extf %55 : vector<16x16x4xbf16> to vector<16x16x4xf32>
      %c0_37 = arith.constant 0 : index
      %c0_38 = arith.constant 0 : index
      %57 = vector.load %arg4[%c0_37, %c0_38] : memref<1x4xf32, #tpu.memory_space<vmem>>, vector<1x4xf32>
      %58 = vector.shape_cast %57 : vector<1x4xf32> to vector<1x1x4xf32>
      %59 = vector.broadcast %58 : vector<1x1x4xf32> to vector<16x16x4xf32>
      %60 = arith.mulf %56, %59 : vector<16x16x4xf32>
      %c0_39 = arith.constant 0 : index
      %c0_40 = arith.constant 0 : index
      %61 = vector.load %arg5[%c0_39, %c0_40] : memref<1x4xf32, #tpu.memory_space<vmem>>, vector<1x4xf32>
      %62 = vector.shape_cast %61 : vector<1x4xf32> to vector<1x1x4xf32>
      %63 = vector.broadcast %62 : vector<1x1x4xf32> to vector<16x16x4xf32>
      %64 = arith.addf %60, %63 : vector<16x16x4xf32>
      %cst_41 = arith.constant 0.000000e+00 : f32
      %65 = vector.broadcast %cst_41 : f32 to vector<16x16x4xf32>
      %66 = arith.maximumf %64, %65 : vector<16x16x4xf32>
      %67 = arith.truncf %66 : vector<16x16x4xf32> to vector<16x16x4xbf16>
      %c1_42 = arith.constant 1 : index
      %c1_43 = arith.constant 1 : index
      %c0_44 = arith.constant 0 : index
      %68 = vector.load %arg10[%c1_42, %c1_43, %c0_44] : memref<18x24x12xbf16, #tpu.memory_space<vmem>>, vector<16x16x4xbf16>
      tpu.vector_store %arg10[%c1_42, %c1_43, %c0_44], %67 {strides = array<i32>} : memref<18x24x12xbf16, #tpu.memory_space<vmem>>, vector<16x16x4xbf16>,
      %c1_45 = arith.constant 1 : index
      %c0_46 = arith.constant 0 : index
      %c4 = arith.constant 4 : index
      %69 = vector.load %arg10[%c1_45, %c0_46, %c4] : memref<18x24x12xbf16, #tpu.memory_space<vmem>>, vector<16x16x4xbf16>
      tpu.vector_store %arg10[%c1_45, %c0_46, %c4], %67 {strides = array<i32>} : memref<18x24x12xbf16, #tpu.memory_space<vmem>>, vector<16x16x4xbf16>,
      %70 = vector.extract_strided_slice %67 {offsets = [0, 1, 0], sizes = [16, 15, 4], strides = [1, 1, 1]} : vector<16x16x4xbf16> to vector<16x15x4xbf16>
      %c1_47 = arith.constant 1 : index
      %c0_48 = arith.constant 0 : index
      %c8 = arith.constant 8 : index
      %71 = vector.load %arg10[%c1_47, %c0_48, %c8] : memref<18x24x12xbf16, #tpu.memory_space<vmem>>, vector<16x15x4xbf16>
      tpu.vector_store %arg10[%c1_47, %c0_48, %c8], %70 {strides = array<i32>} : memref<18x24x12xbf16, #tpu.memory_space<vmem>>, vector<16x15x4xbf16>,
    } else {
    }
    %c8_i32 = arith.constant 8 : i32
    %3 = arith.muli %arg1, %c8_i32 : i32
    %4 = tpu.assume_multiple %3, 8 : i32
    %cst = arith.constant 0.000000e+00 : f32
    %5 = vector.broadcast %cst : f32 to vector<192x8xf32>
    %c0_i32_1 = arith.constant 0 : i32
    %6 = arith.addi %4, %c0_i32_1 : i32
    %7 = arith.index_cast %6 : i32 to index
    %c0 = arith.constant 0 : index
    %c0_2 = arith.constant 0 : index
    %8 = vector.load %arg10[%7, %c0, %c0_2] : memref<18x24x12xbf16, #tpu.memory_space<vmem>>, vector<8x24x12xbf16>
    %9 = vector.shape_cast %8 : vector<8x24x12xbf16> to vector<192x12xbf16>
    %c0_3 = arith.constant 0 : index
    %c0_4 = arith.constant 0 : index
    %c0_5 = arith.constant 0 : index
    %10 = vector.load %arg3[%c0_3, %c0_4, %c0_5] : memref<3x12x8xbf16, #tpu.memory_space<vmem>>, vector<1x12x8xbf16>
    %11 = vector.shape_cast %10 : vector<1x12x8xbf16> to vector<12x8xbf16>
    %cst_6 = arith.constant dense<0.000000e+00> : vector<192x8xf32>
    %12 = tpu.matmul %9, %11, %cst_6 {dimension_numbers = #tpu.dot_dimension_numbers<[1], [0], [0], [1], [0, 0, 1, 1], [], []>} : vector<192x12xbf16>, vector<12x8xbf16>, vector<192x8xf32> -> vector<192x8xf32>
    %13 = arith.addf %5, %12 : vector<192x8xf32>
    %c1_i32 = arith.constant 1 : i32
    %14 = arith.addi %4, %c1_i32 : i32
    %15 = arith.index_cast %14 : i32 to index
    %c0_7 = arith.constant 0 : index
    %c0_8 = arith.constant 0 : index
    %16 = vector.load %arg10[%15, %c0_7, %c0_8] : memref<18x24x12xbf16, #tpu.memory_space<vmem>>, vector<8x24x12xbf16>
    %17 = vector.shape_cast %16 : vector<8x24x12xbf16> to vector<192x12xbf16>
    %c1 = arith.constant 1 : index
    %c0_9 = arith.constant 0 : index
    %c0_10 = arith.constant 0 : index
    %18 = vector.load %arg3[%c1, %c0_9, %c0_10] : memref<3x12x8xbf16, #tpu.memory_space<vmem>>, vector<1x12x8xbf16>
    %19 = vector.shape_cast %18 : vector<1x12x8xbf16> to vector<12x8xbf16>
    %cst_11 = arith.constant dense<0.000000e+00> : vector<192x8xf32>
    %20 = tpu.matmul %17, %19, %cst_11 {dimension_numbers = #tpu.dot_dimension_numbers<[1], [0], [0], [1], [0, 0, 1, 1], [], []>} : vector<192x12xbf16>, vector<12x8xbf16>, vector<192x8xf32> -> vector<192x8xf32>
    %21 = arith.addf %13, %20 : vector<192x8xf32>
    %c2_i32 = arith.constant 2 : i32
    %22 = arith.addi %4, %c2_i32 : i32
    %23 = arith.index_cast %22 : i32 to index
    %c0_12 = arith.constant 0 : index
    %c0_13 = arith.constant 0 : index
    %24 = vector.load %arg10[%23, %c0_12, %c0_13] : memref<18x24x12xbf16, #tpu.memory_space<vmem>>, vector<8x24x12xbf16>
    %25 = vector.shape_cast %24 : vector<8x24x12xbf16> to vector<192x12xbf16>
    %c2 = arith.constant 2 : index
    %c0_14 = arith.constant 0 : index
    %c0_15 = arith.constant 0 : index
    %26 = vector.load %arg3[%c2, %c0_14, %c0_15] : memref<3x12x8xbf16, #tpu.memory_space<vmem>>, vector<1x12x8xbf16>
    %27 = vector.shape_cast %26 : vector<1x12x8xbf16> to vector<12x8xbf16>
    %cst_16 = arith.constant dense<0.000000e+00> : vector<192x8xf32>
    %28 = tpu.matmul %25, %27, %cst_16 {dimension_numbers = #tpu.dot_dimension_numbers<[1], [0], [0], [1], [0, 0, 1, 1], [], []>} : vector<192x12xbf16>, vector<12x8xbf16>, vector<192x8xf32> -> vector<192x8xf32>
    %29 = arith.addf %21, %28 : vector<192x8xf32>
    %30 = vector.shape_cast %29 : vector<192x8xf32> to vector<8x24x8xf32>
    %31 = vector.extract_strided_slice %30 {offsets = [0, 0, 0], sizes = [8, 16, 8], strides = [1, 1, 1]} : vector<8x24x8xf32> to vector<8x16x8xf32>
    %c0_17 = arith.constant 0 : index
    %c0_18 = arith.constant 0 : index
    %32 = vector.load %arg6[%c0_17, %c0_18] : memref<1x8xf32, #tpu.memory_space<vmem>>, vector<1x8xf32>
    %33 = vector.shape_cast %32 : vector<1x8xf32> to vector<1x1x8xf32>
    %34 = vector.broadcast %33 : vector<1x1x8xf32> to vector<8x16x8xf32>
    %35 = arith.addf %31, %34 : vector<8x16x8xf32>
    %cst_19 = arith.constant 0.000000e+00 : f32
    %36 = vector.broadcast %cst_19 : f32 to vector<8x16x8xf32>
    %37 = arith.maximumf %35, %36 : vector<8x16x8xf32>
    %c0_20 = arith.constant 0 : index
    %c0_21 = arith.constant 0 : index
    %38 = vector.load %arg7[%c0_20, %c0_21] : memref<1x8xf32, #tpu.memory_space<vmem>>, vector<1x8xf32>
    %39 = vector.shape_cast %38 : vector<1x8xf32> to vector<1x1x8xf32>
    %40 = vector.broadcast %39 : vector<1x1x8xf32> to vector<8x16x8xf32>
    %41 = arith.mulf %37, %40 : vector<8x16x8xf32>
    %c0_22 = arith.constant 0 : index
    %c0_23 = arith.constant 0 : index
    %42 = vector.load %arg8[%c0_22, %c0_23] : memref<1x8xf32, #tpu.memory_space<vmem>>, vector<1x8xf32>
    %43 = vector.shape_cast %42 : vector<1x8xf32> to vector<1x1x8xf32>
    %44 = vector.broadcast %43 : vector<1x1x8xf32> to vector<8x16x8xf32>
    %45 = arith.addf %41, %44 : vector<8x16x8xf32>
    %cst_24 = arith.constant 0.000000e+00 : f32
    %46 = vector.broadcast %cst_24 : f32 to vector<8x16x8xf32>
    %47 = arith.maximumf %45, %46 : vector<8x16x8xf32>
    %48 = arith.truncf %47 : vector<8x16x8xf32> to vector<8x16x8xbf16>
    %c0_25 = arith.constant 0 : index
    %c0_26 = arith.constant 0 : index
    %c0_27 = arith.constant 0 : index
    %c0_28 = arith.constant 0 : index
    %49 = vector.load %arg9[%c0_25, %c0_26, %c0_27, %c0_28] : memref<1x8x16x8xbf16, #tpu.memory_space<vmem>>, vector<1x8x16x8xbf16>
    %50 = vector.shape_cast %49 : vector<1x8x16x8xbf16> to vector<8x16x8xbf16>
    %51 = vector.shape_cast %48 : vector<8x16x8xbf16> to vector<1x8x16x8xbf16>
    tpu.vector_store %arg9[%c0_25, %c0_26, %c0_27, %c0_28], %51 {strides = array<i32>} : memref<1x8x16x8xbf16, #tpu.memory_space<vmem>>, vector<1x8x16x8xbf16>,
    return
  }
  func.func @transform_0(%arg0: i32, %arg1: i32) -> (i32, i32, i32, i32) {
    %c0_i32 = arith.constant 0 : i32
    %c0_i32_0 = arith.constant 0 : i32
    %c0_i32_1 = arith.constant 0 : i32
    %c0_i32_2 = arith.constant 0 : i32
    return %arg0, %c0_i32, %c0_i32_0, %c0_i32_1 : i32, i32, i32, i32
  }
  func.func @transform_1(%arg0: i32, %arg1: i32) -> (i32, i32, i32) {
    %c0_i32 = arith.constant 0 : i32
    %c0_i32_0 = arith.constant 0 : i32
    %c0_i32_1 = arith.constant 0 : i32
    %c0_i32_2 = arith.constant 0 : i32
    return %c0_i32, %c0_i32_0, %c0_i32_1 : i32, i32, i32
  }
  func.func @transform_2(%arg0: i32, %arg1: i32) -> (i32, i32) {
    %c0_i32 = arith.constant 0 : i32
    %c0_i32_0 = arith.constant 0 : i32
    %c0_i32_1 = arith.constant 0 : i32
    return %c0_i32, %c0_i32_0 : i32, i32
  }
  func.func @transform_3(%arg0: i32, %arg1: i32) -> (i32, i32) {
    %c0_i32 = arith.constant 0 : i32
    %c0_i32_0 = arith.constant 0 : i32
    %c0_i32_1 = arith.constant 0 : i32
    return %c0_i32, %c0_i32_0 : i32, i32
  }
  func.func @transform_4(%arg0: i32, %arg1: i32) -> (i32, i32) {
    %c0_i32 = arith.constant 0 : i32
    %c0_i32_0 = arith.constant 0 : i32
    %c0_i32_1 = arith.constant 0 : i32
    return %c0_i32, %c0_i32_0 : i32, i32
  }
  func.func @transform_5(%arg0: i32, %arg1: i32) -> (i32, i32) {
    %c0_i32 = arith.constant 0 : i32
    %c0_i32_0 = arith.constant 0 : i32
    %c0_i32_1 = arith.constant 0 : i32
    return %c0_i32, %c0_i32_0 : i32, i32
  }
  func.func @transform_6(%arg0: i32, %arg1: i32) -> (i32, i32) {
    %c0_i32 = arith.constant 0 : i32
    %c0_i32_0 = arith.constant 0 : i32
    %c0_i32_1 = arith.constant 0 : i32
    return %c0_i32, %c0_i32_0 : i32, i32
  }
  func.func @transform_7(%arg0: i32, %arg1: i32) -> (i32, i32, i32, i32) {
    %c0_i32 = arith.constant 0 : i32
    %c0_i32_0 = arith.constant 0 : i32
    %c0_i32_1 = arith.constant 0 : i32
    return %arg0, %arg1, %c0_i32, %c0_i32_0 : i32, i32, i32, i32
  }
}

</mosaic_0001>

<llo_original>
// kernel: af_basic_block_forward.2
$region0: #{af_basic_block_forward.2}
  #allocation0 [shape = 'u32[]', space=smem, size = 0x4, offset = 0x4, fixed_abs, tag = 'smem constant byte address 0x4 - core index']
  #allocation1 [shape = 'u32[144,128]{1,0:T(1,128)}', space=vmem, size = 0x12000, scoped, tag = 'internal scratch']
  #allocation2 [shape = 'bf16[18,24,12]{2,1,0:T(8,128)(2,1)}', space=vmem, size = 0x1b000, scoped, tag = 'scratch operand']
  %s0 = inlined_call_operand.vmem [shape: bf16[2,16,16,4], index: 0, kind: input, shape index: {}]
  %s1 = inlined_call_operand.vmem [shape: bf16[3,12,8], index: 1, kind: input, shape index: {}]
  %s2 = inlined_call_operand.vmem [shape: f32[1,4], index: 2, kind: input, shape index: {}]
  %s3 = inlined_call_operand.vmem [shape: f32[1,4], index: 3, kind: input, shape index: {}]
  %s4 = inlined_call_operand.vmem [shape: f32[1,8], index: 4, kind: input, shape index: {}]
  %s5 = inlined_call_operand.vmem [shape: f32[1,8], index: 5, kind: input, shape index: {}]
  %s6 = inlined_call_operand.vmem [shape: f32[1,8], index: 6, kind: input, shape index: {}]
  %s7 = inlined_call_operand.vmem [shape: bf16[2,16,16,8], index: 7, kind: output, shape index: {}]
  %s8 = sld [smem:[#allocation0]]
  $region65: #{af_basic_block_forward.2} parent=0
    _
  %s10 = ssub.s32 1, %s8
  %s11 = scalar_select 0, %s10, %s8
  loop: start=0, step=1, limit=6
  $region2: #{af_basic_block_forward.2} parent=0 // loop_pre_header
    _
  $region3: #{af_basic_block_forward.2} parent=0 // loop_header
    %s13 = sphi 0, %s17
    %p14 = scmp.ge.s32.totalorder %s13, 6
    %s20 = sphi 0, %s32
    %s21 = sphi 0, %s28
    %s22 = sphi 0, %s20
    %s23 = sphi 0, %s21
    %s24 = sphi 0, %s22
    %s25 = sphi 0, %s23
    %s35 = sphi 0, %s37
    %s38 = sphi 0, %s35
    %s39 = sphi 0, %s38
    %s55 = sphi 0, %s39
    %s59 = sphi 0, %s59
    %s61 = sphi 0, %s59
    %s62 = sphi 0, %s61
    %s76 = sphi 0, %s62
    %s80 = sphi 0, %s80
    %s82 = sphi 0, %s80
    %s83 = sphi 0, %s82
    %s97 = sphi 0, %s83
    %s101 = sphi 0, %s101
    %s103 = sphi 0, %s101
    %s104 = sphi 0, %s103
    %s118 = sphi 0, %s104
    %s122 = sphi 0, %s122
    %s124 = sphi 0, %s122
    %s125 = sphi 0, %s124
    %s139 = sphi 0, %s125
    %s143 = sphi 0, %s143
    %s145 = sphi 0, %s143
    %s146 = sphi 0, %s145
    %s160 = sphi 0, %s146
    %s164 = sphi 0, %s164
    %s166 = sphi 0, %s164
    %s167 = sphi 0, %s166
    %s181 = sphi 0, %s167
    %s189 = sphi 0, %s191
    %s192 = sphi 0, %s189
    %s193 = sphi 0, %s192
    %s209 = sphi 0, %s193
  $region4: #{af_basic_block_forward.2} parent=0 // loop_header_branch
    %16 = sbr.rel (%p14) target = $region8
  $region5: #{af_basic_block_forward.2} parent=0 // loop_body
    %s18 = ssub.s32 %s13, 1
    %s19 = ssub.s32 %s13, 2
    %s26 = sadd.s32 1, %s21
    %p27 = scmp.ge.s32.totalorder %s26, 2
    %s28 = scalar_select %p27, 0, %s26
    %s29 = sadd.s32 1, %s20
    %s30 = scalar_select %p27, %s29, %s20
    %p31 = scmp.ge.s32.totalorder %s30, 2
    %s32 = scalar_select %p31, 0, %s30
    %s33 = ssub.s32 %s20, %s32
    %p34 = scmp.eq.s32.totalorder %s33, 0
    %s36 = sadd.s32 %s35, 1
    %s37 = scalar_select %p34, %s35, %s36
    %p40 = pneg %p34
    %p41 = scmp.eq.s32.totalorder %s13, 3
    %p42 = por %p40, %p41
    %p43 = scmp.ne.s32.totalorder %s35, %s38
    %p44 = scmp.eq.s32.totalorder %s13, 0
    %p45 = por %p43, %p44
    %p46 = scmp.ne.s32.totalorder %s35, %s38
    %p47 = scmp.eq.s32.totalorder %s18, 3
    %p48 = por %p46, %p47
    %p49 = scmp.ne.s32.totalorder %s38, %s39
    %p50 = scmp.eq.s32.totalorder %s18, 0
    %p51 = por %p49, %p50
    %p52 = scmp.ne.s32.totalorder %s38, %s39
    %p53 = scmp.eq.s32.totalorder %s19, 3
    %p54 = por %p52, %p53
    %p56 = scmp.ne.s32.totalorder %s39, %s55
    %p57 = scmp.eq.s32.totalorder %s19, 0
    %p58 = por %p56, %p57
    %s60 = sadd.s32 %s59, 1
    %p63 = scmp.eq.s32.totalorder %s13, 3
    %p64 = scmp.ne.s32.totalorder %s59, %s61
    %p65 = scmp.eq.s32.totalorder %s13, 0
    %p66 = por %p64, %p65
    %p67 = scmp.ne.s32.totalorder %s59, %s61
    %p68 = scmp.eq.s32.totalorder %s18, 3
    %p69 = por %p67, %p68
    %p70 = scmp.ne.s32.totalorder %s61, %s62
    %p71 = scmp.eq.s32.totalorder %s18, 0
    %p72 = por %p70, %p71
    %p73 = scmp.ne.s32.totalorder %s61, %s62
    %p74 = scmp.eq.s32.totalorder %s19, 3
    %p75 = por %p73, %p74
    %p77 = scmp.ne.s32.totalorder %s62, %s76
    %p78 = scmp.eq.s32.totalorder %s19, 0
    %p79 = por %p77, %p78
    %s81 = sadd.s32 %s80, 1
    %p84 = scmp.eq.s32.totalorder %s13, 3
    %p85 = scmp.ne.s32.totalorder %s80, %s82
    %p86 = scmp.eq.s32.totalorder %s13, 0
    %p87 = por %p85, %p86
    %p88 = scmp.ne.s32.totalorder %s80, %s82
    %p89 = scmp.eq.s32.totalorder %s18, 3
    %p90 = por %p88, %p89
    %p91 = scmp.ne.s32.totalorder %s82, %s83
    %p92 = scmp.eq.s32.totalorder %s18, 0
    %p93 = por %p91, %p92
    %p94 = scmp.ne.s32.totalorder %s82, %s83
    %p95 = scmp.eq.s32.totalorder %s19, 3
    %p96 = por %p94, %p95
    %p98 = scmp.ne.s32.totalorder %s83, %s97
    %p99 = scmp.eq.s32.totalorder %s19, 0
    %p100 = por %p98, %p99
    %s102 = sadd.s32 %s101, 1
    %p105 = scmp.eq.s32.totalorder %s13, 3
    %p106 = scmp.ne.s32.totalorder %s101, %s103
    %p107 = scmp.eq.s32.totalorder %s13, 0
    %p108 = por %p106, %p107
    %p109 = scmp.ne.s32.totalorder %s101, %s103
    %p110 = scmp.eq.s32.totalorder %s18, 3
    %p111 = por %p109, %p110
    %p112 = scmp.ne.s32.totalorder %s103, %s104
    %p113 = scmp.eq.s32.totalorder %s18, 0
    %p114 = por %p112, %p113
    %p115 = scmp.ne.s32.totalorder %s103, %s104
    %p116 = scmp.eq.s32.totalorder %s19, 3
    %p117 = por %p115, %p116
    %p119 = scmp.ne.s32.totalorder %s104, %s118
    %p120 = scmp.eq.s32.totalorder %s19, 0
    %p121 = por %p119, %p120
    %s123 = sadd.s32 %s122, 1
    %p126 = scmp.eq.s32.totalorder %s13, 3
    %p127 = scmp.ne.s32.totalorder %s122, %s124
    %p128 = scmp.eq.s32.totalorder %s13, 0
    %p129 = por %p127, %p128
    %p130 = scmp.ne.s32.totalorder %s122, %s124
    %p131 = scmp.eq.s32.totalorder %s18, 3
    %p132 = por %p130, %p131
    %p133 = scmp.ne.s32.totalorder %s124, %s125
    %p134 = scmp.eq.s32.totalorder %s18, 0
    %p135 = por %p133, %p134
    %p136 = scmp.ne.s32.totalorder %s124, %s125
    %p137 = scmp.eq.s32.totalorder %s19, 3
    %p138 = por %p136, %p137
    %p140 = scmp.ne.s32.totalorder %s125, %s139
    %p141 = scmp.eq.s32.totalorder %s19, 0
    %p142 = por %p140, %p141
    %s144 = sadd.s32 %s143, 1
    %p147 = scmp.eq.s32.totalorder %s13, 3
    %p148 = scmp.ne.s32.totalorder %s143, %s145
    %p149 = scmp.eq.s32.totalorder %s13, 0
    %p150 = por %p148, %p149
    %p151 = scmp.ne.s32.totalorder %s143, %s145
    %p152 = scmp.eq.s32.totalorder %s18, 3
    %p153 = por %p151, %p152
    %p154 = scmp.ne.s32.totalorder %s145, %s146
    %p155 = scmp.eq.s32.totalorder %s18, 0
    %p156 = por %p154, %p155
    %p157 = scmp.ne.s32.totalorder %s145, %s146
    %p158 = scmp.eq.s32.totalorder %s19, 3
    %p159 = por %p157, %p158
    %p161 = scmp.ne.s32.totalorder %s146, %s160
    %p162 = scmp.eq.s32.totalorder %s19, 0
    %p163 = por %p161, %p162
    %s165 = sadd.s32 %s164, 1
    %p168 = scmp.eq.s32.totalorder %s13, 3
    %p169 = scmp.ne.s32.totalorder %s164, %s166
    %p170 = scmp.eq.s32.totalorder %s13, 0
    %p171 = por %p169, %p170
    %p172 = scmp.ne.s32.totalorder %s164, %s166
    %p173 = scmp.eq.s32.totalorder %s18, 3
    %p174 = por %p172, %p173
    %p175 = scmp.ne.s32.totalorder %s166, %s167
    %p176 = scmp.eq.s32.totalorder %s18, 0
    %p177 = por %p175, %p176
    %p178 = scmp.ne.s32.totalorder %s166, %s167
    %p179 = scmp.eq.s32.totalorder %s19, 3
    %p180 = por %p178, %p179
    %p182 = scmp.ne.s32.totalorder %s167, %s181
    %p183 = scmp.eq.s32.totalorder %s19, 0
    %p184 = por %p182, %p183
    %s185 = ssub.s32 %s20, %s32
    %s186 = ssub.s32 %s21, %s28
    %s187 = sor.u32 %s185, %s186
    %p188 = scmp.eq.s32.totalorder %s187, 0
    %s190 = sadd.s32 %s189, 1
    %s191 = scalar_select %p188, %s189, %s190
    %p194 = pneg %p188
    %p195 = scmp.eq.s32.totalorder %s13, 3
    %p196 = por %p194, %p195
    %p197 = scmp.ne.s32.totalorder %s189, %s192
    %p198 = scmp.eq.s32.totalorder %s13, 0
    %p199 = por %p197, %p198
    %p200 = scmp.ne.s32.totalorder %s189, %s192
    %p201 = scmp.eq.s32.totalorder %s18, 3
    %p202 = por %p200, %p201
    %p203 = scmp.ne.s32.totalorder %s192, %s193
    %p204 = scmp.eq.s32.totalorder %s18, 0
    %p205 = por %p203, %p204
    %p206 = scmp.ne.s32.totalorder %s192, %s193
    %p207 = scmp.eq.s32.totalorder %s19, 3
    %p208 = por %p206, %p207
    %p210 = scmp.ne.s32.totalorder %s193, %s209
    %p211 = scmp.eq.s32.totalorder %s19, 0
    %p212 = por %p210, %p211
    %p213 = scmp.le.s32.totalorder 1, %s13
    %p214 = scmp.lt.s32.totalorder %s13, 5
    %p215 = pnand %p213, %p214
    %p216 = pneg %p215
    // Predicated region
    $region9: #{af_basic_block_forward.2} parent=5 // pred_check
      _
    $region10: #{af_basic_block_forward.2} parent=5 // pred_check_branch
      %218 = sbr.rel (%p215) target = $region12
    $region11: #{af_basic_block_forward.2} parent=5 // pred_region
      %s219 = ssub.s32 %s13, 1
      // Predicated region
      $region13: #{af_basic_block_forward.2} parent=11 // pred_check
        %p220 = pneg %p72
      $region14: #{af_basic_block_forward.2} parent=11 // pred_check_branch
        %222 = sbr.rel (%p220) target = $region16
      $region15: #{af_basic_block_forward.2} parent=11 // pred_region
        _
      $region16: #{af_basic_block_forward.2} parent=11 // pred_fallthru
        _
      // Predicated region
      $region17: #{af_basic_block_forward.2} parent=11 // pred_check
        %p223 = pneg %p93
      $region18: #{af_basic_block_forward.2} parent=11 // pred_check_branch
        %225 = sbr.rel (%p223) target = $region20
      $region19: #{af_basic_block_forward.2} parent=11 // pred_region
        _
      $region20: #{af_basic_block_forward.2} parent=11 // pred_fallthru
        _
      // Predicated region
      $region21: #{af_basic_block_forward.2} parent=11 // pred_check
        %p226 = pneg %p114
      $region22: #{af_basic_block_forward.2} parent=11 // pred_check_branch
        %228 = sbr.rel (%p226) target = $region24
      $region23: #{af_basic_block_forward.2} parent=11 // pred_region
        _
      $region24: #{af_basic_block_forward.2} parent=11 // pred_fallthru
        _
      // Predicated region
      $region25: #{af_basic_block_forward.2} parent=11 // pred_check
        %p229 = pneg %p135
      $region26: #{af_basic_block_forward.2} parent=11 // pred_check_branch
        %231 = sbr.rel (%p229) target = $region28
      $region27: #{af_basic_block_forward.2} parent=11 // pred_region
        _
      $region28: #{af_basic_block_forward.2} parent=11 // pred_fallthru
        _
      // Predicated region
      $region29: #{af_basic_block_forward.2} parent=11 // pred_check
        %p232 = pneg %p156
      $region30: #{af_basic_block_forward.2} parent=11 // pred_check_branch
        %234 = sbr.rel (%p232) target = $region32
      $region31: #{af_basic_block_forward.2} parent=11 // pred_region
        _
      $region32: #{af_basic_block_forward.2} parent=11 // pred_fallthru
        _
      // Predicated region
      $region33: #{af_basic_block_forward.2} parent=11 // pred_check
        %p235 = pneg %p177
      $region34: #{af_basic_block_forward.2} parent=11 // pred_check_branch
        %237 = sbr.rel (%p235) target = $region36
      $region35: #{af_basic_block_forward.2} parent=11 // pred_region
        _
      $region36: #{af_basic_block_forward.2} parent=11 // pred_fallthru
        _
    $region12: #{af_basic_block_forward.2} parent=5 // pred_fallthru
      _
    %p238 = scmp.lt.s32.totalorder %s13, 4
    // Predicated region
    $region37: #{af_basic_block_forward.2} parent=5 // pred_check
      %p239 = pneg %p238
    $region38: #{af_basic_block_forward.2} parent=5 // pred_check_branch
      %241 = sbr.rel (%p239) target = $region40
    $region39: #{af_basic_block_forward.2} parent=5 // pred_region
      // Predicated region
      $region41: #{af_basic_block_forward.2} parent=39 // pred_check
        %p242 = pneg %p45
      $region42: #{af_basic_block_forward.2} parent=39 // pred_check_branch
        %244 = sbr.rel (%p242) target = $region44
      $region43: #{af_basic_block_forward.2} parent=39 // pred_region
        %p245 = scmp.lt.s32.totalorder %s20, 1
        %s246 = scalar_select %p245, %s20, 1
        %s247 = smul.addr %s246, 32
        %s248 = smul.addr %s247, 4
        %s249 = scalar_lea.vmem %s0, %s248
      $region44: #{af_basic_block_forward.2} parent=39 // pred_fallthru
        _
    $region40: #{af_basic_block_forward.2} parent=5 // pred_fallthru
      _
    %p250 = scmp.le.s32.totalorder 1, %s13
    %p251 = scmp.lt.s32.totalorder %s13, 5
    %p252 = pnand %p250, %p251
    %p253 = pneg %p252
    // Predicated region
    $region45: #{af_basic_block_forward.2} parent=5 // pred_check
      _
    $region46: #{af_basic_block_forward.2} parent=5 // pred_check_branch
      %255 = sbr.rel (%p252) target = $region48
    $region47: #{af_basic_block_forward.2} parent=5 // pred_region
      %s256 = ssub.s32 %s13, 1
      %p257 = scmp.lt.s32.totalorder %s22, 1
      %s258 = scalar_select %p257, %s22, 1
      %s259 = smul.addr %s258, 32
      %s260 = smul.addr %s259, 4
      %s261 = scalar_lea.vmem %s0, %s260
      %p262 = pneg %p51
      %p263 = pneg %p48
      %p264 = pneg %p72
      %p265 = pneg %p69
      %p266 = pneg %p93
      %p267 = pneg %p90
      %p268 = pneg %p114
      %p269 = pneg %p111
      %p270 = pneg %p135
      %p271 = pneg %p132
      %p272 = pneg %p156
      %p273 = pneg %p153
      %p274 = pneg %p177
      %p275 = pneg %p174
      %p276 = pneg %p205
      %p277 = pneg %p202
      %s278 = smul.u32 8, %s23
      %p279 = scmp.lt.s32.totalorder %s22, 1
      %s280 = scalar_select %p279, %s22, 1
      %p281 = scmp.lt.s32.totalorder %s278, 15
      %s282 = scalar_select %p281, %s278, 15
      %s283 = smul.addr %s282, 2
      %s284 = smul.addr %s280, 32
      %s285 = sadd.s32 %s283, %s284
      %s286 = smul.addr %s285, 4
      %s287 = scalar_lea.vmem %s7, %s286
      %p288 = scmp.lt.s32.totalorder %s22, 1
      %s289 = scalar_select %p288, %s22, 1
      %s290 = smul.addr %s289, 32
      %s291 = smul.addr %s290, 4
      %s292 = scalar_lea.vmem %s0, %s291
      %s293 = smul.u32 8, %s23
      %p294 = scmp.lt.s32.totalorder %s22, 1
      %s295 = scalar_select %p294, %s22, 1
      %p296 = scmp.lt.s32.totalorder %s293, 15
      %s297 = scalar_select %p296, %s293, 15
      %s298 = smul.addr %s297, 2
      %s299 = smul.addr %s295, 32
      %s300 = sadd.s32 %s298, %s299
      %s301 = smul.addr %s300, 4
      %s302 = scalar_lea.vmem %s7, %s301
      %s303 = smul.u32 8, %s23
      %p305 = scmp.eq.s32.totalorder %s23, 0
      // Predicated region
      $region49: #{af_basic_block_forward.2} parent=47 // pred_check
        %p306 = pneg %p305
      $region50: #{af_basic_block_forward.2} parent=47 // pred_check_branch
        %308 = sbr.rel (%p306) target = $region52
      $region51: #{af_basic_block_forward.2} parent=47 // pred_region
        %vm309 = vcmask 93184
        %310 = vst.msk [vmem:[#allocation2] sm:$0xf] %vm309, 0
        %311 = vst.msk [vmem:[#allocation2 + $0x4] sm:$0xf] %vm309, 0
        %312 = vst.msk [vmem:[#allocation2 + $0x8] sm:$0xf] %vm309, 0
        %313 = vst.msk [vmem:[#allocation2 + $0xc] sm:$0xf] %vm309, 0
        %314 = vst.msk [vmem:[#allocation2 + $0x10] sm:$0xf] %vm309, 0
        %315 = vst.msk [vmem:[#allocation2 + $0x14] sm:$0xf] %vm309, 0
        %316 = vst.msk [vmem:[#allocation2 + $0x18] sm:$0xf] %vm309, 0
        %317 = vst.msk [vmem:[#allocation2 + $0x1c] sm:$0xf] %vm309, 0
        %318 = vst.msk [vmem:[#allocation2 + $0x20] sm:$0xf] %vm309, 0
        %319 = vst.msk [vmem:[#allocation2 + $0x24] sm:$0xf] %vm309, 0
        %320 = vst.msk [vmem:[#allocation2 + $0x28] sm:$0xf] %vm309, 0
        %321 = vst.msk [vmem:[#allocation2 + $0x2c] sm:$0xf] %vm309, 0
        %322 = vst.msk [vmem:[#allocation2 + $0x30] sm:$0xf] %vm309, 0
        %323 = vst.msk [vmem:[#allocation2 + $0x34] sm:$0xf] %vm309, 0
        %324 = vst.msk [vmem:[#allocation2 + $0x38] sm:$0xf] %vm309, 0
        %325 = vst.msk [vmem:[#allocation2 + $0x3c] sm:$0xf] %vm309, 0
        %326 = vst.msk [vmem:[#allocation2 + $0x40] sm:$0xf] %vm309, 0
        %327 = vst.msk [vmem:[#allocation2 + $0x44] sm:$0xf] %vm309, 0
        %328 = vst.msk [vmem:[#allocation2 + $0x48] sm:$0xf] %vm309, 0
        %329 = vst.msk [vmem:[#allocation2 + $0x4c] sm:$0xf] %vm309, 0
        %330 = vst.msk [vmem:[#allocation2 + $0x50] sm:$0xf] %vm309, 0
        %331 = vst.msk [vmem:[#allocation2 + $0x54] sm:$0xf] %vm309, 0
        %332 = vst.msk [vmem:[#allocation2 + $0x58] sm:$0xf] %vm309, 0
        %333 = vst.msk [vmem:[#allocation2 + $0x5c] sm:$0xf] %vm309, 0
        %334 = vst.msk [vmem:[#allocation2 + $0x60] sm:$0xf] %vm309, 0
        %335 = vst.msk [vmem:[#allocation2 + $0x64] sm:$0xf] %vm309, 0
        %336 = vst.msk [vmem:[#allocation2 + $0x68] sm:$0xf] %vm309, 0
        %337 = vst.msk [vmem:[#allocation2 + $0x6c] sm:$0xf] %vm309, 0
        %338 = vst.msk [vmem:[#allocation2 + $0x70] sm:$0xf] %vm309, 0
        %339 = vst.msk [vmem:[#allocation2 + $0x74] sm:$0xf] %vm309, 0
        %340 = vst.msk [vmem:[#allocation2 + $0x78] sm:$0xf] %vm309, 0
        %341 = vst.msk [vmem:[#allocation2 + $0x7c] sm:$0xf] %vm309, 0
        %342 = vst.msk [vmem:[#allocation2 + $0x80] sm:$0xf] %vm309, 0
        %343 = vst.msk [vmem:[#allocation2 + $0x84] sm:$0xf] %vm309, 0
        %344 = vst.msk [vmem:[#allocation2 + $0x88] sm:$0xf] %vm309, 0
        %345 = vst.msk [vmem:[#allocation2 + $0x8c] sm:$0xf] %vm309, 0
        %346 = vst.msk [vmem:[#allocation2 + $0x90] sm:$0xf] %vm309, 0
        %347 = vst.msk [vmem:[#allocation2 + $0x94] sm:$0xf] %vm309, 0
        %348 = vst.msk [vmem:[#allocation2 + $0x98] sm:$0xf] %vm309, 0
        %349 = vst.msk [vmem:[#allocation2 + $0x9c] sm:$0xf] %vm309, 0
        %350 = vst.msk [vmem:[#allocation2 + $0xa0] sm:$0xf] %vm309, 0
        %351 = vst.msk [vmem:[#allocation2 + $0xa4] sm:$0xf] %vm309, 0
        %352 = vst.msk [vmem:[#allocation2 + $0xa8] sm:$0xf] %vm309, 0
        %353 = vst.msk [vmem:[#allocation2 + $0xac] sm:$0xf] %vm309, 0
        %354 = vst.msk [vmem:[#allocation2 + $0xb0] sm:$0xf] %vm309, 0
        %355 = vst.msk [vmem:[#allocation2 + $0xb4] sm:$0xf] %vm309, 0
        %356 = vst.msk [vmem:[#allocation2 + $0xb8] sm:$0xf] %vm309, 0
        %357 = vst.msk [vmem:[#allocation2 + $0xbc] sm:$0xf] %vm309, 0
        %358 = vst.msk [vmem:[#allocation2 + $0xc0] sm:$0xf] %vm309, 0
        %359 = vst.msk [vmem:[#allocation2 + $0xc4] sm:$0xf] %vm309, 0
        %360 = vst.msk [vmem:[#allocation2 + $0xc8] sm:$0xf] %vm309, 0
        %361 = vst.msk [vmem:[#allocation2 + $0xcc] sm:$0xf] %vm309, 0
        %362 = vst.msk [vmem:[#allocation2 + $0xd0] sm:$0xf] %vm309, 0
        %363 = vst.msk [vmem:[#allocation2 + $0xd4] sm:$0xf] %vm309, 0
        %v364 = vld [vmem:[%s292] sm:$0xf]
        %v365 = vld [vmem:[%s292 + $0x4] sm:$0xf]
        %v366 = vld [vmem:[%s292 + $0x8] sm:$0xf]
        %v367 = vld [vmem:[%s292 + $0xc] sm:$0xf]
        %v368 = vld [vmem:[%s292 + $0x10] sm:$0xf]
        %v369 = vld [vmem:[%s292 + $0x14] sm:$0xf]
        %v370 = vld [vmem:[%s292 + $0x18] sm:$0xf]
        %v371 = vld [vmem:[%s292 + $0x1c] sm:$0xf]
        %v372 = vld [vmem:[%s292 + $0x20] sm:$0xf]
        %v373 = vld [vmem:[%s292 + $0x24] sm:$0xf]
        %v374 = vld [vmem:[%s292 + $0x28] sm:$0xf]
        %v375 = vld [vmem:[%s292 + $0x2c] sm:$0xf]
        %v376 = vld [vmem:[%s292 + $0x30] sm:$0xf]
        %v377 = vld [vmem:[%s292 + $0x34] sm:$0xf]
        %v378 = vld [vmem:[%s292 + $0x38] sm:$0xf]
        %v379 = vld [vmem:[%s292 + $0x3c] sm:$0xf]
        %v380 = vld [vmem:[%s292 + $0x40] sm:$0xf]
        %v381 = vld [vmem:[%s292 + $0x44] sm:$0xf]
        %v382 = vld [vmem:[%s292 + $0x48] sm:$0xf]
        %v383 = vld [vmem:[%s292 + $0x4c] sm:$0xf]
        %v384 = vld [vmem:[%s292 + $0x50] sm:$0xf]
        %v385 = vld [vmem:[%s292 + $0x54] sm:$0xf]
        %v386 = vld [vmem:[%s292 + $0x58] sm:$0xf]
        %v387 = vld [vmem:[%s292 + $0x5c] sm:$0xf]
        %v388 = vld [vmem:[%s292 + $0x60] sm:$0xf]
        %v389 = vld [vmem:[%s292 + $0x64] sm:$0xf]
        %v390 = vld [vmem:[%s292 + $0x68] sm:$0xf]
        %v391 = vld [vmem:[%s292 + $0x6c] sm:$0xf]
        %v392 = vld [vmem:[%s292 + $0x70] sm:$0xf]
        %v393 = vld [vmem:[%s292 + $0x74] sm:$0xf]
        %v394 = vld [vmem:[%s292 + $0x78] sm:$0xf]
        %v395 = vld [vmem:[%s292 + $0x7c] sm:$0xf]
        %v396 = vunpack.c.l.bf16 %v364
        %v397 = vunpack.c.l.bf16 %v365
        %v398 = vunpack.c.l.bf16 %v366
        %v399 = vunpack.c.l.bf16 %v367
        %v400 = vunpack.c.l.bf16 %v368
        %v401 = vunpack.c.l.bf16 %v369
        %v402 = vunpack.c.l.bf16 %v370
        %v403 = vunpack.c.l.bf16 %v371
        %v404 = vunpack.c.l.bf16 %v372
        %v405 = vunpack.c.l.bf16 %v373
        %v406 = vunpack.c.l.bf16 %v374
        %v407 = vunpack.c.l.bf16 %v375
        %v408 = vunpack.c.l.bf16 %v376
        %v409 = vunpack.c.l.bf16 %v377
        %v410 = vunpack.c.l.bf16 %v378
        %v411 = vunpack.c.l.bf16 %v379
        %v412 = vunpack.c.l.bf16 %v380
        %v413 = vunpack.c.l.bf16 %v381
        %v414 = vunpack.c.l.bf16 %v382
        %v415 = vunpack.c.l.bf16 %v383
        %v416 = vunpack.c.l.bf16 %v384
        %v417 = vunpack.c.l.bf16 %v385
        %v418 = vunpack.c.l.bf16 %v386
        %v419 = vunpack.c.l.bf16 %v387
        %v420 = vunpack.c.l.bf16 %v388
        %v421 = vunpack.c.l.bf16 %v389
        %v422 = vunpack.c.l.bf16 %v390
        %v423 = vunpack.c.l.bf16 %v391
        %v424 = vunpack.c.l.bf16 %v392
        %v425 = vunpack.c.l.bf16 %v393
        %v426 = vunpack.c.l.bf16 %v394
        %v427 = vunpack.c.l.bf16 %v395
        %v428 = vld [vmem:[%s2] sm:$0x1]
        %v430 = vlaneseq
        %v431 = vshrl.u32 %v430, 7
        %v432 = vsub.s32 0, %v431
        %v433 = vrot.slane %v428, %v432
        %v435 = vmul.f32 %v396, %v433
        %v436 = vmul.f32 %v397, %v433
        %v437 = vmul.f32 %v398, %v433
        %v438 = vmul.f32 %v399, %v433
        %v439 = vmul.f32 %v400, %v433
        %v440 = vmul.f32 %v401, %v433
        %v441 = vmul.f32 %v402, %v433
        %v442 = vmul.f32 %v403, %v433
        %v443 = vmul.f32 %v404, %v433
        %v444 = vmul.f32 %v405, %v433
        %v445 = vmul.f32 %v406, %v433
        %v446 = vmul.f32 %v407, %v433
        %v447 = vmul.f32 %v408, %v433
        %v448 = vmul.f32 %v409, %v433
        %v449 = vmul.f32 %v410, %v433
        %v450 = vmul.f32 %v411, %v433
        %v451 = vmul.f32 %v412, %v433
        %v452 = vmul.f32 %v413, %v433
        %v453 = vmul.f32 %v414, %v433
        %v454 = vmul.f32 %v415, %v433
        %v455 = vmul.f32 %v416, %v433
        %v456 = vmul.f32 %v417, %v433
        %v457 = vmul.f32 %v418, %v433
        %v458 = vmul.f32 %v419, %v433
        %v459 = vmul.f32 %v420, %v433
        %v460 = vmul.f32 %v421, %v433
        %v461 = vmul.f32 %v422, %v433
        %v462 = vmul.f32 %v423, %v433
        %v463 = vmul.f32 %v424, %v433
        %v464 = vmul.f32 %v425, %v433
        %v465 = vmul.f32 %v426, %v433
        %v466 = vmul.f32 %v427, %v433
        %v467 = vld [vmem:[%s3] sm:$0x1]
        %v469 = vlaneseq
        %v470 = vshrl.u32 %v469, 7
        %v471 = vsub.s32 0, %v470
        %v472 = vrot.slane %v467, %v471
        %v474 = vadd.f32 %v435, %v472
        %v475 = vadd.f32 %v436, %v472
        %v476 = vadd.f32 %v437, %v472
        %v477 = vadd.f32 %v438, %v472
        %v478 = vadd.f32 %v439, %v472
        %v479 = vadd.f32 %v440, %v472
        %v480 = vadd.f32 %v441, %v472
        %v481 = vadd.f32 %v442, %v472
        %v482 = vadd.f32 %v443, %v472
        %v483 = vadd.f32 %v444, %v472
        %v484 = vadd.f32 %v445, %v472
        %v485 = vadd.f32 %v446, %v472
        %v486 = vadd.f32 %v447, %v472
        %v487 = vadd.f32 %v448, %v472
        %v488 = vadd.f32 %v449, %v472
        %v489 = vadd.f32 %v450, %v472
        %v490 = vadd.f32 %v451, %v472
        %v491 = vadd.f32 %v452, %v472
        %v492 = vadd.f32 %v453, %v472
        %v493 = vadd.f32 %v454, %v472
        %v494 = vadd.f32 %v455, %v472
        %v495 = vadd.f32 %v456, %v472
        %v496 = vadd.f32 %v457, %v472
        %v497 = vadd.f32 %v458, %v472
        %v498 = vadd.f32 %v459, %v472
        %v499 = vadd.f32 %v460, %v472
        %v500 = vadd.f32 %v461, %v472
        %v501 = vadd.f32 %v462, %v472
        %v502 = vadd.f32 %v463, %v472
        %v503 = vadd.f32 %v464, %v472
        %v504 = vadd.f32 %v465, %v472
        %v505 = vadd.f32 %v466, %v472
        %v506 = vmax.f32 %v474, 0.0
        %v507 = vmax.f32 %v475, 0.0
        %v508 = vmax.f32 %v476, 0.0
        %v509 = vmax.f32 %v477, 0.0
        %v510 = vmax.f32 %v478, 0.0
        %v511 = vmax.f32 %v479, 0.0
        %v512 = vmax.f32 %v480, 0.0
        %v513 = vmax.f32 %v481, 0.0
        %v514 = vmax.f32 %v482, 0.0
        %v515 = vmax.f32 %v483, 0.0
        %v516 = vmax.f32 %v484, 0.0
        %v517 = vmax.f32 %v485, 0.0
        %v518 = vmax.f32 %v486, 0.0
        %v519 = vmax.f32 %v487, 0.0
        %v520 = vmax.f32 %v488, 0.0
        %v521 = vmax.f32 %v489, 0.0
        %v522 = vmax.f32 %v490, 0.0
        %v523 = vmax.f32 %v491, 0.0
        %v524 = vmax.f32 %v492, 0.0
        %v525 = vmax.f32 %v493, 0.0
        %v526 = vmax.f32 %v494, 0.0
        %v527 = vmax.f32 %v495, 0.0
        %v528 = vmax.f32 %v496, 0.0
        %v529 = vmax.f32 %v497, 0.0
        %v530 = vmax.f32 %v498, 0.0
        %v531 = vmax.f32 %v499, 0.0
        %v532 = vmax.f32 %v500, 0.0
        %v533 = vmax.f32 %v501, 0.0
        %v534 = vmax.f32 %v502, 0.0
        %v535 = vmax.f32 %v503, 0.0
        %v536 = vmax.f32 %v504, 0.0
        %v537 = vmax.f32 %v505, 0.0
        %v538 = vpack.c.bf16 %v507, %v506
        %v539 = vpack.c.bf16 %v509, %v508
        %v540 = vpack.c.bf16 %v511, %v510
        %v541 = vpack.c.bf16 %v513, %v512
        %v542 = vpack.c.bf16 %v515, %v514
        %v543 = vpack.c.bf16 %v517, %v516
        %v544 = vpack.c.bf16 %v519, %v518
        %v545 = vpack.c.bf16 %v521, %v520
        %v546 = vpack.c.bf16 %v523, %v522
        %v547 = vpack.c.bf16 %v525, %v524
        %v548 = vpack.c.bf16 %v527, %v526
        %v549 = vpack.c.bf16 %v529, %v528
        %v550 = vpack.c.bf16 %v531, %v530
        %v551 = vpack.c.bf16 %v533, %v532
        %v552 = vpack.c.bf16 %v535, %v534
        %v553 = vpack.c.bf16 %v537, %v536
        %v570 = vunpack.c.l.b16 %v538
        %v571 = vunpack.c.h.b16 %v538
        %v572 = vunpack.c.l.b16 %v539
        %v573 = vunpack.c.h.b16 %v539
        %v574 = vunpack.c.l.b16 %v540
        %v575 = vunpack.c.h.b16 %v540
        %v576 = vunpack.c.l.b16 %v541
        %v577 = vunpack.c.h.b16 %v541
        %v578 = vunpack.c.l.b16 %v542
        %v579 = vunpack.c.h.b16 %v542
        %v580 = vunpack.c.l.b16 %v543
        %v581 = vunpack.c.h.b16 %v543
        %v582 = vunpack.c.l.b16 %v544
        %v583 = vunpack.c.h.b16 %v544
        %v584 = vunpack.c.l.b16 %v545
        %v585 = vunpack.c.h.b16 %v545
        %v586 = vunpack.c.l.b16 %v546
        %v587 = vunpack.c.h.b16 %v546
        %v588 = vunpack.c.l.b16 %v547
        %v589 = vunpack.c.h.b16 %v547
        %v590 = vunpack.c.l.b16 %v548
        %v591 = vunpack.c.h.b16 %v548
        %v592 = vunpack.c.l.b16 %v549
        %v593 = vunpack.c.h.b16 %v549
        %v594 = vunpack.c.l.b16 %v550
        %v595 = vunpack.c.h.b16 %v550
        %v596 = vunpack.c.l.b16 %v551
        %v597 = vunpack.c.h.b16 %v551
        %v598 = vunpack.c.l.b16 %v552
        %v599 = vunpack.c.h.b16 %v552
        %v600 = vunpack.c.l.b16 %v553
        %v601 = vunpack.c.h.b16 %v553
        %v602 = vpack.c.b16 %v570, %v570
        %v603 = vpack.c.b16 %v571, %v571
        %v604 = vpack.c.b16 %v572, %v572
        %v605 = vpack.c.b16 %v573, %v573
        %v606 = vpack.c.b16 %v574, %v574
        %v607 = vpack.c.b16 %v575, %v575
        %v608 = vpack.c.b16 %v576, %v576
        %v609 = vpack.c.b16 %v577, %v577
        %v610 = vpack.c.b16 %v578, %v578
        %v611 = vpack.c.b16 %v579, %v579
        %v612 = vpack.c.b16 %v580, %v580
        %v613 = vpack.c.b16 %v581, %v581
        %v614 = vpack.c.b16 %v582, %v582
        %v615 = vpack.c.b16 %v583, %v583
        %v616 = vpack.c.b16 %v584, %v584
        %v617 = vpack.c.b16 %v585, %v585
        %v618 = vpack.c.b16 %v586, %v586
        %v619 = vpack.c.b16 %v587, %v587
        %v620 = vpack.c.b16 %v588, %v588
        %v621 = vpack.c.b16 %v589, %v589
        %v622 = vpack.c.b16 %v590, %v590
        %v623 = vpack.c.b16 %v591, %v591
        %v624 = vpack.c.b16 %v592, %v592
        %v625 = vpack.c.b16 %v593, %v593
        %v626 = vpack.c.b16 %v594, %v594
        %v627 = vpack.c.b16 %v595, %v595
        %v628 = vpack.c.b16 %v596, %v596
        %v629 = vpack.c.b16 %v597, %v597
        %v630 = vpack.c.b16 %v598, %v598
        %v631 = vpack.c.b16 %v599, %v599
        %v632 = vpack.c.b16 %v600, %v600
        %v633 = vpack.c.b16 %v601, %v601
        %vm634 = vsmask.f32 256
        %vm635 = vsmask.f32 4368
        %vm636 = vmor %vm634, %vm635
        %v638 = vshrl.u32 %v602, 16
        %v640 = vrot.slane %v638, 7
        %v641 = vshll.u32 %v602, 16
        %v643 = vor.u32 %v640, %v641
        %v644 = vrot.slane %v640, 4
        %v646 = vshrl.u32 %v603, 16
        %v648 = vrot.slane %v646, 7
        %v649 = vshll.u32 %v603, 16
        %v651 = vor.u32 %v648, %v649
        %v652 = vsel %vm636, %v644, %v651
        %v653 = vrot.slane %v648, 4
        %v655 = vshrl.u32 %v604, 16
        %v657 = vrot.slane %v655, 7
        %v658 = vshll.u32 %v604, 16
        %v660 = vor.u32 %v657, %v658
        %v661 = vrot.slane %v657, 4
        %v663 = vshrl.u32 %v605, 16
        %v665 = vrot.slane %v663, 7
        %v666 = vshll.u32 %v605, 16
        %v668 = vor.u32 %v665, %v666
        %v669 = vsel %vm636, %v661, %v668
        %v670 = vrot.slane %v665, 4
        %v672 = vshrl.u32 %v606, 16
        %v674 = vrot.slane %v672, 7
        %v675 = vshll.u32 %v606, 16
        %v677 = vor.u32 %v674, %v675
        %v678 = vrot.slane %v674, 4
        %v680 = vshrl.u32 %v607, 16
        %v682 = vrot.slane %v680, 7
        %v683 = vshll.u32 %v607, 16
        %v685 = vor.u32 %v682, %v683
        %v686 = vsel %vm636, %v678, %v685
        %v687 = vrot.slane %v682, 4
        %v689 = vshrl.u32 %v608, 16
        %v691 = vrot.slane %v689, 7
        %v692 = vshll.u32 %v608, 16
        %v694 = vor.u32 %v691, %v692
        %v695 = vrot.slane %v691, 4
        %v697 = vshrl.u32 %v609, 16
        %v699 = vrot.slane %v697, 7
        %v700 = vshll.u32 %v609, 16
        %v702 = vor.u32 %v699, %v700
        %v703 = vsel %vm636, %v695, %v702
        %v704 = vrot.slane %v699, 4
        %v706 = vshrl.u32 %v610, 16
        %v708 = vrot.slane %v706, 7
        %v709 = vshll.u32 %v610, 16
        %v711 = vor.u32 %v708, %v709
        %v712 = vrot.slane %v708, 4
        %v714 = vshrl.u32 %v611, 16
        %v716 = vrot.slane %v714, 7
        %v717 = vshll.u32 %v611, 16
        %v719 = vor.u32 %v716, %v717
        %v720 = vsel %vm636, %v712, %v719
        %v721 = vrot.slane %v716, 4
        %v723 = vshrl.u32 %v612, 16
        %v725 = vrot.slane %v723, 7
        %v726 = vshll.u32 %v612, 16
        %v728 = vor.u32 %v725, %v726
        %v729 = vrot.slane %v725, 4
        %v731 = vshrl.u32 %v613, 16
        %v733 = vrot.slane %v731, 7
        %v734 = vshll.u32 %v613, 16
        %v736 = vor.u32 %v733, %v734
        %v737 = vsel %vm636, %v729, %v736
        %v738 = vrot.slane %v733, 4
        %v740 = vshrl.u32 %v614, 16
        %v742 = vrot.slane %v740, 7
        %v743 = vshll.u32 %v614, 16
        %v745 = vor.u32 %v742, %v743
        %v746 = vrot.slane %v742, 4
        %v748 = vshrl.u32 %v615, 16
        %v750 = vrot.slane %v748, 7
        %v751 = vshll.u32 %v615, 16
        %v753 = vor.u32 %v750, %v751
        %v754 = vsel %vm636, %v746, %v753
        %v755 = vrot.slane %v750, 4
        %v757 = vshrl.u32 %v616, 16
        %v759 = vrot.slane %v757, 7
        %v760 = vshll.u32 %v616, 16
        %v762 = vor.u32 %v759, %v760
        %v763 = vrot.slane %v759, 4
        %v765 = vshrl.u32 %v617, 16
        %v767 = vrot.slane %v765, 7
        %v768 = vshll.u32 %v617, 16
        %v770 = vor.u32 %v767, %v768
        %v771 = vsel %vm636, %v763, %v770
        %v772 = vrot.slane %v767, 4
        %v774 = vshrl.u32 %v618, 16
        %v776 = vrot.slane %v774, 7
        %v777 = vshll.u32 %v618, 16
        %v779 = vor.u32 %v776, %v777
        %v780 = vrot.slane %v776, 4
        %v782 = vshrl.u32 %v619, 16
        %v784 = vrot.slane %v782, 7
        %v785 = vshll.u32 %v619, 16
        %v787 = vor.u32 %v784, %v785
        %v788 = vsel %vm636, %v780, %v787
        %v789 = vrot.slane %v784, 4
        %v791 = vshrl.u32 %v620, 16
        %v793 = vrot.slane %v791, 7
        %v794 = vshll.u32 %v620, 16
        %v796 = vor.u32 %v793, %v794
        %v797 = vrot.slane %v793, 4
        %v799 = vshrl.u32 %v621, 16
        %v801 = vrot.slane %v799, 7
        %v802 = vshll.u32 %v621, 16
        %v804 = vor.u32 %v801, %v802
        %v805 = vsel %vm636, %v797, %v804
        %v806 = vrot.slane %v801, 4
        %v808 = vshrl.u32 %v622, 16
        %v810 = vrot.slane %v808, 7
        %v811 = vshll.u32 %v622, 16
        %v813 = vor.u32 %v810, %v811
        %v814 = vrot.slane %v810, 4
        %v816 = vshrl.u32 %v623, 16
        %v818 = vrot.slane %v816, 7
        %v819 = vshll.u32 %v623, 16
        %v821 = vor.u32 %v818, %v819
        %v822 = vsel %vm636, %v814, %v821
        %v823 = vrot.slane %v818, 4
        %v825 = vshrl.u32 %v624, 16
        %v827 = vrot.slane %v825, 7
        %v828 = vshll.u32 %v624, 16
        %v830 = vor.u32 %v827, %v828
        %v831 = vrot.slane %v827, 4
        %v833 = vshrl.u32 %v625, 16
        %v835 = vrot.slane %v833, 7
        %v836 = vshll.u32 %v625, 16
        %v838 = vor.u32 %v835, %v836
        %v839 = vsel %vm636, %v831, %v838
        %v840 = vrot.slane %v835, 4
        %v842 = vshrl.u32 %v626, 16
        %v844 = vrot.slane %v842, 7
        %v845 = vshll.u32 %v626, 16
        %v847 = vor.u32 %v844, %v845
        %v848 = vrot.slane %v844, 4
        %v850 = vshrl.u32 %v627, 16
        %v852 = vrot.slane %v850, 7
        %v853 = vshll.u32 %v627, 16
        %v855 = vor.u32 %v852, %v853
        %v856 = vsel %vm636, %v848, %v855
        %v857 = vrot.slane %v852, 4
        %v859 = vshrl.u32 %v628, 16
        %v861 = vrot.slane %v859, 7
        %v862 = vshll.u32 %v628, 16
        %v864 = vor.u32 %v861, %v862
        %v865 = vrot.slane %v861, 4
        %v867 = vshrl.u32 %v629, 16
        %v869 = vrot.slane %v867, 7
        %v870 = vshll.u32 %v629, 16
        %v872 = vor.u32 %v869, %v870
        %v873 = vsel %vm636, %v865, %v872
        %v874 = vrot.slane %v869, 4
        %v876 = vshrl.u32 %v630, 16
        %v878 = vrot.slane %v876, 7
        %v879 = vshll.u32 %v630, 16
        %v881 = vor.u32 %v878, %v879
        %v882 = vrot.slane %v878, 4
        %v884 = vshrl.u32 %v631, 16
        %v886 = vrot.slane %v884, 7
        %v887 = vshll.u32 %v631, 16
        %v889 = vor.u32 %v886, %v887
        %v890 = vsel %vm636, %v882, %v889
        %v891 = vrot.slane %v886, 4
        %v893 = vshrl.u32 %v632, 16
        %v895 = vrot.slane %v893, 7
        %v896 = vshll.u32 %v632, 16
        %v898 = vor.u32 %v895, %v896
        %v899 = vrot.slane %v895, 4
        %v901 = vshrl.u32 %v633, 16
        %v903 = vrot.slane %v901, 7
        %v904 = vshll.u32 %v633, 16
        %v906 = vor.u32 %v903, %v904
        %v907 = vsel %vm636, %v899, %v906
        %v908 = vrot.slane %v903, 4
        %s957 = scalar_lea.vmem [#allocation2], 12
        %vm958 = vcmask 27648
        %vm959 = vsmask.f32 7938
        %vm960 = vmand %vm958, %vm959
        %v961 = vld [vmem:[%s957] sm:$0xf]
        %v962 = vsel %vm960, %v643, %v961
        %963 = vst [vmem:[%s957] sm:$0xf] %v962
        %vm964 = vcmask 27648
        %965 = vst.msk [vmem:[%s957 + $0x4] sm:$0xf] %vm964, %v652
        %vm966 = vcmask 24576
        %vm967 = vmand %vm966, %vm634
        %v968 = vld [vmem:[%s957 + $0x8] sm:$0x1]
        %v969 = vsel %vm967, %v653, %v968
        %970 = vst [vmem:[%s957 + $0x8] sm:$0x1] %v969
        %v971 = vld [vmem:[%s957 + $0xc] sm:$0xf]
        %v972 = vsel %vm960, %v660, %v971
        %973 = vst [vmem:[%s957 + $0xc] sm:$0xf] %v972
        %974 = vst.msk [vmem:[%s957 + $0x10] sm:$0xf] %vm964, %v669
        %v975 = vld [vmem:[%s957 + $0x14] sm:$0x1]
        %v976 = vsel %vm967, %v670, %v975
        %977 = vst [vmem:[%s957 + $0x14] sm:$0x1] %v976
        %v978 = vld [vmem:[%s957 + $0x18] sm:$0xf]
        %v979 = vsel %vm960, %v677, %v978
        %980 = vst [vmem:[%s957 + $0x18] sm:$0xf] %v979
        %981 = vst.msk [vmem:[%s957 + $0x1c] sm:$0xf] %vm964, %v686
        %v982 = vld [vmem:[%s957 + $0x20] sm:$0x1]
        %v983 = vsel %vm967, %v687, %v982
        %984 = vst [vmem:[%s957 + $0x20] sm:$0x1] %v983
        %v985 = vld [vmem:[%s957 + $0x24] sm:$0xf]
        %v986 = vsel %vm960, %v694, %v985
        %987 = vst [vmem:[%s957 + $0x24] sm:$0xf] %v986
        %988 = vst.msk [vmem:[%s957 + $0x28] sm:$0xf] %vm964, %v703
        %v989 = vld [vmem:[%s957 + $0x2c] sm:$0x1]
        %v990 = vsel %vm967, %v704, %v989
        %991 = vst [vmem:[%s957 + $0x2c] sm:$0x1] %v990
        %v992 = vld [vmem:[%s957 + $0x30] sm:$0xf]
        %v993 = vsel %vm960, %v711, %v992
        %994 = vst [vmem:[%s957 + $0x30] sm:$0xf] %v993
        %995 = vst.msk [vmem:[%s957 + $0x34] sm:$0xf] %vm964, %v720
        %v996 = vld [vmem:[%s957 + $0x38] sm:$0x1]
        %v997 = vsel %vm967, %v721, %v996
        %998 = vst [vmem:[%s957 + $0x38] sm:$0x1] %v997
        %v999 = vld [vmem:[%s957 + $0x3c] sm:$0xf]
        %v1000 = vsel %vm960, %v728, %v999
        %1001 = vst [vmem:[%s957 + $0x3c] sm:$0xf] %v1000
        %1002 = vst.msk [vmem:[%s957 + $0x40] sm:$0xf] %vm964, %v737
        %v1003 = vld [vmem:[%s957 + $0x44] sm:$0x1]
        %v1004 = vsel %vm967, %v738, %v1003
        %1005 = vst [vmem:[%s957 + $0x44] sm:$0x1] %v1004
        %v1006 = vld [vmem:[%s957 + $0x48] sm:$0xf]
        %v1007 = vsel %vm960, %v745, %v1006
        %1008 = vst [vmem:[%s957 + $0x48] sm:$0xf] %v1007
        %1009 = vst.msk [vmem:[%s957 + $0x4c] sm:$0xf] %vm964, %v754
        %v1010 = vld [vmem:[%s957 + $0x50] sm:$0x1]
        %v1011 = vsel %vm967, %v755, %v1010
        %1012 = vst [vmem:[%s957 + $0x50] sm:$0x1] %v1011
        %v1013 = vld [vmem:[%s957 + $0x54] sm:$0xf]
        %v1014 = vsel %vm960, %v762, %v1013
        %1015 = vst [vmem:[%s957 + $0x54] sm:$0xf] %v1014
        %1016 = vst.msk [vmem:[%s957 + $0x58] sm:$0xf] %vm964, %v771
        %v1017 = vld [vmem:[%s957 + $0x5c] sm:$0x1]
        %v1018 = vsel %vm967, %v772, %v1017
        %1019 = vst [vmem:[%s957 + $0x5c] sm:$0x1] %v1018
        %v1020 = vld [vmem:[%s957 + $0x60] sm:$0xf]
        %v1021 = vsel %vm960, %v779, %v1020
        %1022 = vst [vmem:[%s957 + $0x60] sm:$0xf] %v1021
        %1023 = vst.msk [vmem:[%s957 + $0x64] sm:$0xf] %vm964, %v788
        %v1024 = vld [vmem:[%s957 + $0x68] sm:$0x1]
        %v1025 = vsel %vm967, %v789, %v1024
        %1026 = vst [vmem:[%s957 + $0x68] sm:$0x1] %v1025
        %v1027 = vld [vmem:[%s957 + $0x6c] sm:$0xf]
        %v1028 = vsel %vm960, %v796, %v1027
        %1029 = vst [vmem:[%s957 + $0x6c] sm:$0xf] %v1028
        %1030 = vst.msk [vmem:[%s957 + $0x70] sm:$0xf] %vm964, %v805
        %v1031 = vld [vmem:[%s957 + $0x74] sm:$0x1]
        %v1032 = vsel %vm967, %v806, %v1031
        %1033 = vst [vmem:[%s957 + $0x74] sm:$0x1] %v1032
        %v1034 = vld [vmem:[%s957 + $0x78] sm:$0xf]
        %v1035 = vsel %vm960, %v813, %v1034
        %1036 = vst [vmem:[%s957 + $0x78] sm:$0xf] %v1035
        %1037 = vst.msk [vmem:[%s957 + $0x7c] sm:$0xf] %vm964, %v822
        %v1038 = vld [vmem:[%s957 + $0x80] sm:$0x1]
        %v1039 = vsel %vm967, %v823, %v1038
        %1040 = vst [vmem:[%s957 + $0x80] sm:$0x1] %v1039
        %v1041 = vld [vmem:[%s957 + $0x84] sm:$0xf]
        %v1042 = vsel %vm960, %v830, %v1041
        %1043 = vst [vmem:[%s957 + $0x84] sm:$0xf] %v1042
        %1044 = vst.msk [vmem:[%s957 + $0x88] sm:$0xf] %vm964, %v839
        %v1045 = vld [vmem:[%s957 + $0x8c] sm:$0x1]
        %v1046 = vsel %vm967, %v840, %v1045
        %1047 = vst [vmem:[%s957 + $0x8c] sm:$0x1] %v1046
        %v1048 = vld [vmem:[%s957 + $0x90] sm:$0xf]
        %v1049 = vsel %vm960, %v847, %v1048
        %1050 = vst [vmem:[%s957 + $0x90] sm:$0xf] %v1049
        %1051 = vst.msk [vmem:[%s957 + $0x94] sm:$0xf] %vm964, %v856
        %v1052 = vld [vmem:[%s957 + $0x98] sm:$0x1]
        %v1053 = vsel %vm967, %v857, %v1052
        %1054 = vst [vmem:[%s957 + $0x98] sm:$0x1] %v1053
        %v1055 = vld [vmem:[%s957 + $0x9c] sm:$0xf]
        %v1056 = vsel %vm960, %v864, %v1055
        %1057 = vst [vmem:[%s957 + $0x9c] sm:$0xf] %v1056
        %1058 = vst.msk [vmem:[%s957 + $0xa0] sm:$0xf] %vm964, %v873
        %v1059 = vld [vmem:[%s957 + $0xa4] sm:$0x1]
        %v1060 = vsel %vm967, %v874, %v1059
        %1061 = vst [vmem:[%s957 + $0xa4] sm:$0x1] %v1060
        %v1062 = vld [vmem:[%s957 + $0xa8] sm:$0xf]
        %v1063 = vsel %vm960, %v881, %v1062
        %1064 = vst [vmem:[%s957 + $0xa8] sm:$0xf] %v1063
        %1065 = vst.msk [vmem:[%s957 + $0xac] sm:$0xf] %vm964, %v890
        %v1066 = vld [vmem:[%s957 + $0xb0] sm:$0x1]
        %v1067 = vsel %vm967, %v891, %v1066
        %1068 = vst [vmem:[%s957 + $0xb0] sm:$0x1] %v1067
        %v1069 = vld [vmem:[%s957 + $0xb4] sm:$0xf]
        %v1070 = vsel %vm960, %v898, %v1069
        %1071 = vst [vmem:[%s957 + $0xb4] sm:$0xf] %v1070
        %1072 = vst.msk [vmem:[%s957 + $0xb8] sm:$0xf] %vm964, %v907
        %v1073 = vld [vmem:[%s957 + $0xbc] sm:$0x1]
        %v1074 = vsel %vm967, %v908, %v1073
        %1075 = vst [vmem:[%s957 + $0xbc] sm:$0x1] %v1074
        %1076 = vrot.lane.b32.xlu0 %v602, 4
        %v1077 = vpop.permute.xlu0 %1076
        %1078 = vrot.lane.b32.xlu0 %v603, 4
        %v1079 = vpop.permute.xlu0 %1078
        %1080 = vrot.lane.b32.xlu0 %v604, 4
        %v1081 = vpop.permute.xlu0 %1080
        %1082 = vrot.lane.b32.xlu0 %v605, 4
        %v1083 = vpop.permute.xlu0 %1082
        %1084 = vrot.lane.b32.xlu0 %v606, 4
        %v1085 = vpop.permute.xlu0 %1084
        %1086 = vrot.lane.b32.xlu0 %v607, 4
        %v1087 = vpop.permute.xlu0 %1086
        %1088 = vrot.lane.b32.xlu0 %v608, 4
        %v1089 = vpop.permute.xlu0 %1088
        %1090 = vrot.lane.b32.xlu0 %v609, 4
        %v1091 = vpop.permute.xlu0 %1090
        %1092 = vrot.lane.b32.xlu0 %v610, 4
        %v1093 = vpop.permute.xlu0 %1092
        %1094 = vrot.lane.b32.xlu0 %v611, 4
        %v1095 = vpop.permute.xlu0 %1094
        %1096 = vrot.lane.b32.xlu0 %v612, 4
        %v1097 = vpop.permute.xlu0 %1096
        %1098 = vrot.lane.b32.xlu0 %v613, 4
        %v1099 = vpop.permute.xlu0 %1098
        %1100 = vrot.lane.b32.xlu0 %v614, 4
        %v1101 = vpop.permute.xlu0 %1100
        %1102 = vrot.lane.b32.xlu0 %v615, 4
        %v1103 = vpop.permute.xlu0 %1102
        %1104 = vrot.lane.b32.xlu0 %v616, 4
        %v1105 = vpop.permute.xlu0 %1104
        %1106 = vrot.lane.b32.xlu0 %v617, 4
        %v1107 = vpop.permute.xlu0 %1106
        %1108 = vrot.lane.b32.xlu0 %v618, 4
        %v1109 = vpop.permute.xlu0 %1108
        %1110 = vrot.lane.b32.xlu0 %v619, 4
        %v1111 = vpop.permute.xlu0 %1110
        %1112 = vrot.lane.b32.xlu0 %v620, 4
        %v1113 = vpop.permute.xlu0 %1112
        %1114 = vrot.lane.b32.xlu0 %v621, 4
        %v1115 = vpop.permute.xlu0 %1114
        %1116 = vrot.lane.b32.xlu0 %v622, 4
        %v1117 = vpop.permute.xlu0 %1116
        %1118 = vrot.lane.b32.xlu0 %v623, 4
        %v1119 = vpop.permute.xlu0 %1118
        %1120 = vrot.lane.b32.xlu0 %v624, 4
        %v1121 = vpop.permute.xlu0 %1120
        %1122 = vrot.lane.b32.xlu0 %v625, 4
        %v1123 = vpop.permute.xlu0 %1122
        %1124 = vrot.lane.b32.xlu0 %v626, 4
        %v1125 = vpop.permute.xlu0 %1124
        %1126 = vrot.lane.b32.xlu0 %v627, 4
        %v1127 = vpop.permute.xlu0 %1126
        %1128 = vrot.lane.b32.xlu0 %v628, 4
        %v1129 = vpop.permute.xlu0 %1128
        %1130 = vrot.lane.b32.xlu0 %v629, 4
        %v1131 = vpop.permute.xlu0 %1130
        %1132 = vrot.lane.b32.xlu0 %v630, 4
        %v1133 = vpop.permute.xlu0 %1132
        %1134 = vrot.lane.b32.xlu0 %v631, 4
        %v1135 = vpop.permute.xlu0 %1134
        %1136 = vrot.lane.b32.xlu0 %v632, 4
        %v1137 = vpop.permute.xlu0 %1136
        %1138 = vrot.lane.b32.xlu0 %v633, 4
        %v1139 = vpop.permute.xlu0 %1138
        %vm1172 = vcmask 60448
        %1173 = vst.msk [vmem:[%s957] sm:$0xf] %vm1172, %v1077
        %1174 = vst.msk [vmem:[%s957 + $0x4] sm:$0xf] %vm1172, %v1079
        %1175 = vst.msk [vmem:[%s957 + $0xc] sm:$0xf] %vm1172, %v1081
        %1176 = vst.msk [vmem:[%s957 + $0x10] sm:$0xf] %vm1172, %v1083
        %1177 = vst.msk [vmem:[%s957 + $0x18] sm:$0xf] %vm1172, %v1085
        %1178 = vst.msk [vmem:[%s957 + $0x1c] sm:$0xf] %vm1172, %v1087
        %1179 = vst.msk [vmem:[%s957 + $0x24] sm:$0xf] %vm1172, %v1089
        %1180 = vst.msk [vmem:[%s957 + $0x28] sm:$0xf] %vm1172, %v1091
        %1181 = vst.msk [vmem:[%s957 + $0x30] sm:$0xf] %vm1172, %v1093
        %1182 = vst.msk [vmem:[%s957 + $0x34] sm:$0xf] %vm1172, %v1095
        %1183 = vst.msk [vmem:[%s957 + $0x3c] sm:$0xf] %vm1172, %v1097
        %1184 = vst.msk [vmem:[%s957 + $0x40] sm:$0xf] %vm1172, %v1099
        %1185 = vst.msk [vmem:[%s957 + $0x48] sm:$0xf] %vm1172, %v1101
        %1186 = vst.msk [vmem:[%s957 + $0x4c] sm:$0xf] %vm1172, %v1103
        %1187 = vst.msk [vmem:[%s957 + $0x54] sm:$0xf] %vm1172, %v1105
        %1188 = vst.msk [vmem:[%s957 + $0x58] sm:$0xf] %vm1172, %v1107
        %1189 = vst.msk [vmem:[%s957 + $0x60] sm:$0xf] %vm1172, %v1109
        %1190 = vst.msk [vmem:[%s957 + $0x64] sm:$0xf] %vm1172, %v1111
        %1191 = vst.msk [vmem:[%s957 + $0x6c] sm:$0xf] %vm1172, %v1113
        %1192 = vst.msk [vmem:[%s957 + $0x70] sm:$0xf] %vm1172, %v1115
        %1193 = vst.msk [vmem:[%s957 + $0x78] sm:$0xf] %vm1172, %v1117
        %1194 = vst.msk [vmem:[%s957 + $0x7c] sm:$0xf] %vm1172, %v1119
        %1195 = vst.msk [vmem:[%s957 + $0x84] sm:$0xf] %vm1172, %v1121
        %1196 = vst.msk [vmem:[%s957 + $0x88] sm:$0xf] %vm1172, %v1123
        %1197 = vst.msk [vmem:[%s957 + $0x90] sm:$0xf] %vm1172, %v1125
        %1198 = vst.msk [vmem:[%s957 + $0x94] sm:$0xf] %vm1172, %v1127
        %1199 = vst.msk [vmem:[%s957 + $0x9c] sm:$0xf] %vm1172, %v1129
        %1200 = vst.msk [vmem:[%s957 + $0xa0] sm:$0xf] %vm1172, %v1131
        %1201 = vst.msk [vmem:[%s957 + $0xa8] sm:$0xf] %vm1172, %v1133
        %1202 = vst.msk [vmem:[%s957 + $0xac] sm:$0xf] %vm1172, %v1135
        %1203 = vst.msk [vmem:[%s957 + $0xb4] sm:$0xf] %vm1172, %v1137
        %1204 = vst.msk [vmem:[%s957 + $0xb8] sm:$0xf] %vm1172, %v1139
        %vm1205 = vsmask.f32 3328
        %vm1206 = vsmask.f32 7440
        %vm1207 = vmor %vm1205, %vm1206
        %v1208 = vrot.slane %v638, 4
        %v1209 = vrot.slane %v641, 5
        %v1210 = vor.u32 %v1208, %v1209
        %v1211 = vrot.slane %v1210, 4
        %v1212 = vrot.slane %v649, 5
        %v1213 = vsel %vm1207, %v1211, %v1212
        %v1214 = vrot.slane %v646, 4
        %v1215 = vor.u32 %v1214, %v1212
        %v1216 = vrot.slane %v1215, 4
        %v1217 = vrot.slane %v655, 4
        %v1218 = vrot.slane %v658, 5
        %v1219 = vor.u32 %v1217, %v1218
        %v1220 = vrot.slane %v1219, 4
        %v1221 = vrot.slane %v666, 5
        %v1222 = vsel %vm1207, %v1220, %v1221
        %v1223 = vrot.slane %v663, 4
        %v1224 = vor.u32 %v1223, %v1221
        %v1225 = vrot.slane %v1224, 4
        %v1226 = vrot.slane %v672, 4
        %v1227 = vrot.slane %v675, 5
        %v1228 = vor.u32 %v1226, %v1227
        %v1229 = vrot.slane %v1228, 4
        %v1230 = vrot.slane %v683, 5
        %v1231 = vsel %vm1207, %v1229, %v1230
        %v1232 = vrot.slane %v680, 4
        %v1233 = vor.u32 %v1232, %v1230
        %v1234 = vrot.slane %v1233, 4
        %v1235 = vrot.slane %v689, 4
        %v1236 = vrot.slane %v692, 5
        %v1237 = vor.u32 %v1235, %v1236
        %v1238 = vrot.slane %v1237, 4
        %v1239 = vrot.slane %v700, 5
        %v1240 = vsel %vm1207, %v1238, %v1239
        %v1241 = vrot.slane %v697, 4
        %v1242 = vor.u32 %v1241, %v1239
        %v1243 = vrot.slane %v1242, 4
        %v1244 = vrot.slane %v706, 4
        %v1245 = vrot.slane %v709, 5
        %v1246 = vor.u32 %v1244, %v1245
        %v1247 = vrot.slane %v1246, 4
        %v1248 = vrot.slane %v717, 5
        %v1249 = vsel %vm1207, %v1247, %v1248
        %v1250 = vrot.slane %v714, 4
        %v1251 = vor.u32 %v1250, %v1248
        %v1252 = vrot.slane %v1251, 4
        %v1253 = vrot.slane %v723, 4
        %v1254 = vrot.slane %v726, 5
        %v1255 = vor.u32 %v1253, %v1254
        %v1256 = vrot.slane %v1255, 4
        %v1257 = vrot.slane %v734, 5
        %v1258 = vsel %vm1207, %v1256, %v1257
        %v1259 = vrot.slane %v731, 4
        %v1260 = vor.u32 %v1259, %v1257
        %v1261 = vrot.slane %v1260, 4
        %v1262 = vrot.slane %v740, 4
        %v1263 = vrot.slane %v743, 5
        %v1264 = vor.u32 %v1262, %v1263
        %v1265 = vrot.slane %v1264, 4
        %v1266 = vrot.slane %v751, 5
        %v1267 = vsel %vm1207, %v1265, %v1266
        %v1268 = vrot.slane %v748, 4
        %v1269 = vor.u32 %v1268, %v1266
        %v1270 = vrot.slane %v1269, 4
        %v1271 = vrot.slane %v757, 4
        %v1272 = vrot.slane %v760, 5
        %v1273 = vor.u32 %v1271, %v1272
        %v1274 = vrot.slane %v1273, 4
        %v1275 = vrot.slane %v768, 5
        %v1276 = vsel %vm1207, %v1274, %v1275
        %v1277 = vrot.slane %v765, 4
        %v1278 = vor.u32 %v1277, %v1275
        %v1279 = vrot.slane %v1278, 4
        %v1280 = vrot.slane %v774, 4
        %v1281 = vrot.slane %v777, 5
        %v1282 = vor.u32 %v1280, %v1281
        %v1283 = vrot.slane %v1282, 4
        %v1284 = vrot.slane %v785, 5
        %v1285 = vsel %vm1207, %v1283, %v1284
        %v1286 = vrot.slane %v782, 4
        %v1287 = vor.u32 %v1286, %v1284
        %v1288 = vrot.slane %v1287, 4
        %v1289 = vrot.slane %v791, 4
        %v1290 = vrot.slane %v794, 5
        %v1291 = vor.u32 %v1289, %v1290
        %v1292 = vrot.slane %v1291, 4
        %v1293 = vrot.slane %v802, 5
        %v1294 = vsel %vm1207, %v1292, %v1293
        %v1295 = vrot.slane %v799, 4
        %v1296 = vor.u32 %v1295, %v1293
        %v1297 = vrot.slane %v1296, 4
        %v1298 = vrot.slane %v808, 4
        %v1299 = vrot.slane %v811, 5
        %v1300 = vor.u32 %v1298, %v1299
        %v1301 = vrot.slane %v1300, 4
        %v1302 = vrot.slane %v819, 5
        %v1303 = vsel %vm1207, %v1301, %v1302
        %v1304 = vrot.slane %v816, 4
        %v1305 = vor.u32 %v1304, %v1302
        %v1306 = vrot.slane %v1305, 4
        %v1307 = vrot.slane %v825, 4
        %v1308 = vrot.slane %v828, 5
        %v1309 = vor.u32 %v1307, %v1308
        %v1310 = vrot.slane %v1309, 4
        %v1311 = vrot.slane %v836, 5
        %v1312 = vsel %vm1207, %v1310, %v1311
        %v1313 = vrot.slane %v833, 4
        %v1314 = vor.u32 %v1313, %v1311
        %v1315 = vrot.slane %v1314, 4
        %v1316 = vrot.slane %v842, 4
        %v1317 = vrot.slane %v845, 5
        %v1318 = vor.u32 %v1316, %v1317
        %v1319 = vrot.slane %v1318, 4
        %v1320 = vrot.slane %v853, 5
        %v1321 = vsel %vm1207, %v1319, %v1320
        %v1322 = vrot.slane %v850, 4
        %v1323 = vor.u32 %v1322, %v1320
        %v1324 = vrot.slane %v1323, 4
        %v1325 = vrot.slane %v859, 4
        %v1326 = vrot.slane %v862, 5
        %v1327 = vor.u32 %v1325, %v1326
        %v1328 = vrot.slane %v1327, 4
        %v1329 = vrot.slane %v870, 5
        %v1330 = vsel %vm1207, %v1328, %v1329
        %v1331 = vrot.slane %v867, 4
        %v1332 = vor.u32 %v1331, %v1329
        %v1333 = vrot.slane %v1332, 4
        %v1334 = vrot.slane %v876, 4
        %v1335 = vrot.slane %v879, 5
        %v1336 = vor.u32 %v1334, %v1335
        %v1337 = vrot.slane %v1336, 4
        %v1338 = vrot.slane %v887, 5
        %v1339 = vsel %vm1207, %v1337, %v1338
        %v1340 = vrot.slane %v884, 4
        %v1341 = vor.u32 %v1340, %v1338
        %v1342 = vrot.slane %v1341, 4
        %v1343 = vrot.slane %v893, 4
        %v1344 = vrot.slane %v896, 5
        %v1345 = vor.u32 %v1343, %v1344
        %v1346 = vrot.slane %v1345, 4
        %v1347 = vrot.slane %v904, 5
        %v1348 = vsel %vm1207, %v1346, %v1347
        %v1349 = vrot.slane %v901, 4
        %v1350 = vor.u32 %v1349, %v1347
        %v1351 = vrot.slane %v1350, 4
        %1352 = vrot.lane.b32.xlu0 %v1213, 8
        %v1353 = vpop.permute.xlu0 %1352
        %1354 = vrot.lane.b32.xlu0 %v1216, 8
        %v1355 = vpop.permute.xlu0 %1354
        %1356 = vrot.lane.b32.xlu0 %v1222, 8
        %v1357 = vpop.permute.xlu0 %1356
        %1358 = vrot.lane.b32.xlu0 %v1225, 8
        %v1359 = vpop.permute.xlu0 %1358
        %1360 = vrot.lane.b32.xlu0 %v1231, 8
        %v1361 = vpop.permute.xlu0 %1360
        %1362 = vrot.lane.b32.xlu0 %v1234, 8
        %v1363 = vpop.permute.xlu0 %1362
        %1364 = vrot.lane.b32.xlu0 %v1240, 8
        %v1365 = vpop.permute.xlu0 %1364
        %1366 = vrot.lane.b32.xlu0 %v1243, 8
        %v1367 = vpop.permute.xlu0 %1366
        %1368 = vrot.lane.b32.xlu0 %v1249, 8
        %v1369 = vpop.permute.xlu0 %1368
        %1370 = vrot.lane.b32.xlu0 %v1252, 8
        %v1371 = vpop.permute.xlu0 %1370
        %1372 = vrot.lane.b32.xlu0 %v1258, 8
        %v1373 = vpop.permute.xlu0 %1372
        %1374 = vrot.lane.b32.xlu0 %v1261, 8
        %v1375 = vpop.permute.xlu0 %1374
        %1376 = vrot.lane.b32.xlu0 %v1267, 8
        %v1377 = vpop.permute.xlu0 %1376
        %1378 = vrot.lane.b32.xlu0 %v1270, 8
        %v1379 = vpop.permute.xlu0 %1378
        %1380 = vrot.lane.b32.xlu0 %v1276, 8
        %v1381 = vpop.permute.xlu0 %1380
        %1382 = vrot.lane.b32.xlu0 %v1279, 8
        %v1383 = vpop.permute.xlu0 %1382
        %1384 = vrot.lane.b32.xlu0 %v1285, 8
        %v1385 = vpop.permute.xlu0 %1384
        %1386 = vrot.lane.b32.xlu0 %v1288, 8
        %v1387 = vpop.permute.xlu0 %1386
        %1388 = vrot.lane.b32.xlu0 %v1294, 8
        %v1389 = vpop.permute.xlu0 %1388
        %1390 = vrot.lane.b32.xlu0 %v1297, 8
        %v1391 = vpop.permute.xlu0 %1390
        %1392 = vrot.lane.b32.xlu0 %v1303, 8
        %v1393 = vpop.permute.xlu0 %1392
        %1394 = vrot.lane.b32.xlu0 %v1306, 8
        %v1395 = vpop.permute.xlu0 %1394
        %1396 = vrot.lane.b32.xlu0 %v1312, 8
        %v1397 = vpop.permute.xlu0 %1396
        %1398 = vrot.lane.b32.xlu0 %v1315, 8
        %v1399 = vpop.permute.xlu0 %1398
        %1400 = vrot.lane.b32.xlu0 %v1321, 8
        %v1401 = vpop.permute.xlu0 %1400
        %1402 = vrot.lane.b32.xlu0 %v1324, 8
        %v1403 = vpop.permute.xlu0 %1402
        %1404 = vrot.lane.b32.xlu0 %v1330, 8
        %v1405 = vpop.permute.xlu0 %1404
        %1406 = vrot.lane.b32.xlu0 %v1333, 8
        %v1407 = vpop.permute.xlu0 %1406
        %1408 = vrot.lane.b32.xlu0 %v1339, 8
        %v1409 = vpop.permute.xlu0 %1408
        %1410 = vrot.lane.b32.xlu0 %v1342, 8
        %v1411 = vpop.permute.xlu0 %1410
        %1412 = vrot.lane.b32.xlu0 %v1348, 8
        %v1413 = vpop.permute.xlu0 %1412
        %1414 = vrot.lane.b32.xlu0 %v1351, 8
        %v1415 = vpop.permute.xlu0 %1414
        %vm1448 = vcmask 93248
        %1449 = vst.msk [vmem:[%s957] sm:$0xf] %vm1448, %v1353
        %vm1450 = vcmask 93248
        %vm1451 = vmand %vm1450, %vm1205
        %v1452 = vld [vmem:[%s957 + $0x4] sm:$0xf]
        %v1453 = vsel %vm1451, %v1355, %v1452
        %1454 = vst [vmem:[%s957 + $0x4] sm:$0xf] %v1453
        %1455 = vst.msk [vmem:[%s957 + $0xc] sm:$0xf] %vm1448, %v1357
        %v1456 = vld [vmem:[%s957 + $0x10] sm:$0xf]
        %v1457 = vsel %vm1451, %v1359, %v1456
        %1458 = vst [vmem:[%s957 + $0x10] sm:$0xf] %v1457
        %1459 = vst.msk [vmem:[%s957 + $0x18] sm:$0xf] %vm1448, %v1361
        %v1460 = vld [vmem:[%s957 + $0x1c] sm:$0xf]
        %v1461 = vsel %vm1451, %v1363, %v1460
        %1462 = vst [vmem:[%s957 + $0x1c] sm:$0xf] %v1461
        %1463 = vst.msk [vmem:[%s957 + $0x24] sm:$0xf] %vm1448, %v1365
        %v1464 = vld [vmem:[%s957 + $0x28] sm:$0xf]
        %v1465 = vsel %vm1451, %v1367, %v1464
        %1466 = vst [vmem:[%s957 + $0x28] sm:$0xf] %v1465
        %1467 = vst.msk [vmem:[%s957 + $0x30] sm:$0xf] %vm1448, %v1369
        %v1468 = vld [vmem:[%s957 + $0x34] sm:$0xf]
        %v1469 = vsel %vm1451, %v1371, %v1468
        %1470 = vst [vmem:[%s957 + $0x34] sm:$0xf] %v1469
        %1471 = vst.msk [vmem:[%s957 + $0x3c] sm:$0xf] %vm1448, %v1373
        %v1472 = vld [vmem:[%s957 + $0x40] sm:$0xf]
        %v1473 = vsel %vm1451, %v1375, %v1472
        %1474 = vst [vmem:[%s957 + $0x40] sm:$0xf] %v1473
        %1475 = vst.msk [vmem:[%s957 + $0x48] sm:$0xf] %vm1448, %v1377
        %v1476 = vld [vmem:[%s957 + $0x4c] sm:$0xf]
        %v1477 = vsel %vm1451, %v1379, %v1476
        %1478 = vst [vmem:[%s957 + $0x4c] sm:$0xf] %v1477
        %1479 = vst.msk [vmem:[%s957 + $0x54] sm:$0xf] %vm1448, %v1381
        %v1480 = vld [vmem:[%s957 + $0x58] sm:$0xf]
        %v1481 = vsel %vm1451, %v1383, %v1480
        %1482 = vst [vmem:[%s957 + $0x58] sm:$0xf] %v1481
        %1483 = vst.msk [vmem:[%s957 + $0x60] sm:$0xf] %vm1448, %v1385
        %v1484 = vld [vmem:[%s957 + $0x64] sm:$0xf]
        %v1485 = vsel %vm1451, %v1387, %v1484
        %1486 = vst [vmem:[%s957 + $0x64] sm:$0xf] %v1485
        %1487 = vst.msk [vmem:[%s957 + $0x6c] sm:$0xf] %vm1448, %v1389
        %v1488 = vld [vmem:[%s957 + $0x70] sm:$0xf]
        %v1489 = vsel %vm1451, %v1391, %v1488
        %1490 = vst [vmem:[%s957 + $0x70] sm:$0xf] %v1489
        %1491 = vst.msk [vmem:[%s957 + $0x78] sm:$0xf] %vm1448, %v1393
        %v1492 = vld [vmem:[%s957 + $0x7c] sm:$0xf]
        %v1493 = vsel %vm1451, %v1395, %v1492
        %1494 = vst [vmem:[%s957 + $0x7c] sm:$0xf] %v1493
        %1495 = vst.msk [vmem:[%s957 + $0x84] sm:$0xf] %vm1448, %v1397
        %v1496 = vld [vmem:[%s957 + $0x88] sm:$0xf]
        %v1497 = vsel %vm1451, %v1399, %v1496
        %1498 = vst [vmem:[%s957 + $0x88] sm:$0xf] %v1497
        %1499 = vst.msk [vmem:[%s957 + $0x90] sm:$0xf] %vm1448, %v1401
        %v1500 = vld [vmem:[%s957 + $0x94] sm:$0xf]
        %v1501 = vsel %vm1451, %v1403, %v1500
        %1502 = vst [vmem:[%s957 + $0x94] sm:$0xf] %v1501
        %1503 = vst.msk [vmem:[%s957 + $0x9c] sm:$0xf] %vm1448, %v1405
        %v1504 = vld [vmem:[%s957 + $0xa0] sm:$0xf]
        %v1505 = vsel %vm1451, %v1407, %v1504
        %1506 = vst [vmem:[%s957 + $0xa0] sm:$0xf] %v1505
        %1507 = vst.msk [vmem:[%s957 + $0xa8] sm:$0xf] %vm1448, %v1409
        %v1508 = vld [vmem:[%s957 + $0xac] sm:$0xf]
        %v1509 = vsel %vm1451, %v1411, %v1508
        %1510 = vst [vmem:[%s957 + $0xac] sm:$0xf] %v1509
        %1511 = vst.msk [vmem:[%s957 + $0xb4] sm:$0xf] %vm1448, %v1413
        %v1512 = vld [vmem:[%s957 + $0xb8] sm:$0xf]
        %v1513 = vsel %vm1451, %v1415, %v1512
        %1514 = vst [vmem:[%s957 + $0xb8] sm:$0xf] %v1513
      $region52: #{af_basic_block_forward.2} parent=47 // pred_fallthru
        _
      %s1515 = smul.u32 %s23, 8
      %s1516 = smul.u32 %s1515, 3
      %s1517 = smul.addr %s1516, 4
      %s1518 = scalar_lea.vmem [#allocation2], %s1517
      %v1519 = vld [vmem:[%s1518] sm:$0xf]
      %v1520 = vld [vmem:[%s1518 + $0x4] sm:$0xf]
      %v1521 = vld [vmem:[%s1518 + $0x8] sm:$0xf]
      %v1522 = vld [vmem:[%s1518 + $0xc] sm:$0xf]
      %v1523 = vld [vmem:[%s1518 + $0x10] sm:$0xf]
      %v1524 = vld [vmem:[%s1518 + $0x14] sm:$0xf]
      %v1525 = vld [vmem:[%s1518 + $0x18] sm:$0xf]
      %v1526 = vld [vmem:[%s1518 + $0x1c] sm:$0xf]
      %v1527 = vld [vmem:[%s1518 + $0x20] sm:$0xf]
      %v1528 = vld [vmem:[%s1518 + $0x24] sm:$0xf]
      %v1529 = vld [vmem:[%s1518 + $0x28] sm:$0xf]
      %v1530 = vld [vmem:[%s1518 + $0x2c] sm:$0xf]
      %v1531 = vld [vmem:[%s1518 + $0x30] sm:$0xf]
      %v1532 = vld [vmem:[%s1518 + $0x34] sm:$0xf]
      %v1533 = vld [vmem:[%s1518 + $0x38] sm:$0xf]
      %v1534 = vld [vmem:[%s1518 + $0x3c] sm:$0xf]
      %v1535 = vld [vmem:[%s1518 + $0x40] sm:$0xf]
      %v1536 = vld [vmem:[%s1518 + $0x44] sm:$0xf]
      %v1537 = vld [vmem:[%s1518 + $0x48] sm:$0xf]
      %v1538 = vld [vmem:[%s1518 + $0x4c] sm:$0xf]
      %v1539 = vld [vmem:[%s1518 + $0x50] sm:$0xf]
      %v1540 = vld [vmem:[%s1518 + $0x54] sm:$0xf]
      %v1541 = vld [vmem:[%s1518 + $0x58] sm:$0xf]
      %v1542 = vld [vmem:[%s1518 + $0x5c] sm:$0xf]
      %v1543 = vld [vmem:[%s1] sm:$0xf]
      %v1544 = vld [vmem:[%s1 + $0x4] sm:$0x3]
      %s1545 = sadd.s32 %s1515, 1
      %s1546 = smul.u32 %s1545, 3
      %s1547 = smul.addr %s1546, 4
      %s1548 = scalar_lea.vmem [#allocation2], %s1547
      %v1549 = vld [vmem:[%s1548] sm:$0xf]
      %v1550 = vld [vmem:[%s1548 + $0x4] sm:$0xf]
      %v1551 = vld [vmem:[%s1548 + $0x8] sm:$0xf]
      %v1552 = vld [vmem:[%s1548 + $0xc] sm:$0xf]
      %v1553 = vld [vmem:[%s1548 + $0x10] sm:$0xf]
      %v1554 = vld [vmem:[%s1548 + $0x14] sm:$0xf]
      %v1555 = vld [vmem:[%s1548 + $0x18] sm:$0xf]
      %v1556 = vld [vmem:[%s1548 + $0x1c] sm:$0xf]
      %v1557 = vld [vmem:[%s1548 + $0x20] sm:$0xf]
      %v1558 = vld [vmem:[%s1548 + $0x24] sm:$0xf]
      %v1559 = vld [vmem:[%s1548 + $0x28] sm:$0xf]
      %v1560 = vld [vmem:[%s1548 + $0x2c] sm:$0xf]
      %v1561 = vld [vmem:[%s1548 + $0x30] sm:$0xf]
      %v1562 = vld [vmem:[%s1548 + $0x34] sm:$0xf]
      %v1563 = vld [vmem:[%s1548 + $0x38] sm:$0xf]
      %v1564 = vld [vmem:[%s1548 + $0x3c] sm:$0xf]
      %v1565 = vld [vmem:[%s1548 + $0x40] sm:$0xf]
      %v1566 = vld [vmem:[%s1548 + $0x44] sm:$0xf]
      %v1567 = vld [vmem:[%s1548 + $0x48] sm:$0xf]
      %v1568 = vld [vmem:[%s1548 + $0x4c] sm:$0xf]
      %v1569 = vld [vmem:[%s1548 + $0x50] sm:$0xf]
      %v1570 = vld [vmem:[%s1548 + $0x54] sm:$0xf]
      %v1571 = vld [vmem:[%s1548 + $0x58] sm:$0xf]
      %v1572 = vld [vmem:[%s1548 + $0x5c] sm:$0xf]
      %s1573 = scalar_lea.vmem %s1, 8
      %v1574 = vld [vmem:[%s1573] sm:$0xf]
      %v1575 = vld [vmem:[%s1573 + $0x4] sm:$0x3]
      %v1600 = vunpack.c.l.b16 %v1549
      %v1601 = vunpack.c.l.b16 %v1550
      %v1602 = vunpack.c.l.b16 %v1551
      %v1603 = vunpack.c.l.b16 %v1552
      %v1604 = vunpack.c.l.b16 %v1553
      %v1605 = vunpack.c.l.b16 %v1554
      %v1606 = vunpack.c.l.b16 %v1555
      %v1607 = vunpack.c.l.b16 %v1556
      %v1608 = vunpack.c.l.b16 %v1557
      %v1609 = vunpack.c.l.b16 %v1558
      %v1610 = vunpack.c.l.b16 %v1559
      %v1611 = vunpack.c.l.b16 %v1560
      %v1612 = vunpack.c.l.b16 %v1561
      %v1613 = vunpack.c.l.b16 %v1562
      %v1614 = vunpack.c.l.b16 %v1563
      %v1615 = vunpack.c.l.b16 %v1564
      %v1616 = vunpack.c.l.b16 %v1565
      %v1617 = vunpack.c.l.b16 %v1566
      %v1618 = vunpack.c.l.b16 %v1567
      %v1619 = vunpack.c.l.b16 %v1568
      %v1620 = vunpack.c.l.b16 %v1569
      %v1621 = vunpack.c.l.b16 %v1570
      %v1622 = vunpack.c.l.b16 %v1571
      %v1623 = vunpack.c.l.b16 %v1572
      %v1624 = vpack.c.b16 %v1601, %v1600
      %v1625 = vpack.c.b16 %v1603, %v1602
      %v1626 = vpack.c.b16 %v1605, %v1604
      %v1627 = vpack.c.b16 %v1607, %v1606
      %v1628 = vpack.c.b16 %v1609, %v1608
      %v1629 = vpack.c.b16 %v1611, %v1610
      %v1630 = vpack.c.b16 %v1613, %v1612
      %v1631 = vpack.c.b16 %v1615, %v1614
      %v1632 = vpack.c.b16 %v1617, %v1616
      %v1633 = vpack.c.b16 %v1619, %v1618
      %v1634 = vpack.c.b16 %v1621, %v1620
      %v1635 = vpack.c.b16 %v1623, %v1622
      %v1638 = vunpack.c.l.b16 %v1574
      %v1639 = vunpack.c.l.b16 %v1575
      %v1640 = vpack.c.b16 %v1639, %v1638
      %vm1641 = vcmask 97280
      %v1643 = vsel %vm1641, %v1624, 0
      %v1646 = vsel %vm1641, %v1625, 0
      %v1649 = vsel %vm1641, %v1626, 0
      %v1652 = vsel %vm1641, %v1627, 0
      %v1655 = vsel %vm1641, %v1628, 0
      %v1658 = vsel %vm1641, %v1629, 0
      %v1661 = vsel %vm1641, %v1630, 0
      %v1664 = vsel %vm1641, %v1631, 0
      %v1667 = vsel %vm1641, %v1632, 0
      %v1670 = vsel %vm1641, %v1633, 0
      %v1673 = vsel %vm1641, %v1634, 0
      %v1676 = vsel %vm1641, %v1635, 0
      %vm1678 = vcmask 1045504
      %v1680 = vsel %vm1678, %v1640, 0
      %1682 = vmatprep.subr.bf16.mxu0 0
      %1683 = vmatpush1.bf16.msra.mxu0 0
      %1684 = vmatprep.subr.bf16.mxu0 0
      %1685 = vmatpush1.bf16.msra.mxu0 0
      %1686 = vmatprep.subr.bf16.mxu0 0
      %1687 = vmatpush1.bf16.msra.mxu0 0
      %1688 = vmatprep.subr.bf16.mxu0 0
      %1689 = vmatpush1.bf16.msra.mxu0 0
      %1690 = vmatprep.subr.bf16.mxu0 0
      %1691 = vmatpush1.bf16.msra.mxu0 0
      %1692 = vmatprep.subr.bf16.mxu0 0
      %1693 = vmatpush1.bf16.msra.mxu0 0
      %1694 = vmatprep.subr.bf16.mxu0 0
      %1695 = vmatpush1.bf16.msra.mxu0 0
      %1696 = vmatprep.subr.bf16.mxu0 0
      %1697 = vmatpush1.bf16.msra.mxu0 %v1680
      %1698 = vmatprep.subr.bf16.mxu0 0
      %1699 = vmatpush2.bf16.msra.mxu0 0
      %1700 = vmatprep.subr.bf16.mxu0 0
      %1701 = vmatpush2.bf16.msra.mxu0 0
      %1702 = vmatprep.subr.bf16.mxu0 0
      %1703 = vmatpush2.bf16.msra.mxu0 0
      %1704 = vmatprep.subr.bf16.mxu0 0
      %1705 = vmatpush2.bf16.msra.mxu0 0
      %1706 = vmatprep.subr.bf16.mxu0 0
      %1707 = vmatpush2.bf16.msra.mxu0 0
      %1708 = vmatprep.subr.bf16.mxu0 0
      %1709 = vmatpush2.bf16.msra.mxu0 0
      %1710 = vmatprep.subr.bf16.mxu0 0
      %1711 = vmatpush2.bf16.msra.mxu0 0
      %1712 = vmatprep.subr.bf16.mxu0 0
      %1713 = vmatpush2.bf16.msra.mxu0 0
      %1714 = vmatprep.mubr.bf16.mxu0 0
      %1715 = vmatmul.mubr.bf16.gmra.mxu0 %v1643
      %v1716 = vpop.f32.mrf.mxu0
      %v1717 = vadd.f32 0.0, %v1716
      %v1718 = vpop.f32.mrf.mxu0
      %v1719 = vpop.f32.mrf.mxu0
      %v1720 = vadd.f32 0.0, %v1719
      %v1721 = vpop.f32.mrf.mxu0
      %1722 = vmatprep.mubr.bf16.mxu0 0
      %1723 = vmatmul.mubr.bf16.gmra.mxu0 %v1646
      %v1724 = vpop.f32.mrf.mxu0
      %v1725 = vpop.f32.mrf.mxu0
      %v1726 = vpop.f32.mrf.mxu0
      %v1727 = vadd.f32 0.0, %v1726
      %v1728 = vpop.f32.mrf.mxu0
      %1729 = vmatprep.mubr.bf16.mxu0 0
      %1730 = vmatmul.mubr.bf16.gmra.mxu0 %v1649
      %v1731 = vpop.f32.mrf.mxu0
      %v1732 = vadd.f32 0.0, %v1731
      %v1733 = vpop.f32.mrf.mxu0
      %v1734 = vpop.f32.mrf.mxu0
      %v1735 = vpop.f32.mrf.mxu0
      %1736 = vmatprep.mubr.bf16.mxu0 0
      %1737 = vmatmul.mubr.bf16.gmra.mxu0 %v1652
      %v1738 = vpop.f32.mrf.mxu0
      %v1739 = vadd.f32 0.0, %v1738
      %v1740 = vpop.f32.mrf.mxu0
      %v1741 = vpop.f32.mrf.mxu0
      %v1742 = vadd.f32 0.0, %v1741
      %v1743 = vpop.f32.mrf.mxu0
      %1744 = vmatprep.mubr.bf16.mxu0 0
      %1745 = vmatmul.mubr.bf16.gmra.mxu0 %v1655
      %v1746 = vpop.f32.mrf.mxu0
      %v1747 = vpop.f32.mrf.mxu0
      %v1748 = vpop.f32.mrf.mxu0
      %v1749 = vadd.f32 0.0, %v1748
      %v1750 = vpop.f32.mrf.mxu0
      %1751 = vmatprep.mubr.bf16.mxu0 0
      %1752 = vmatmul.mubr.bf16.gmra.mxu0 %v1658
      %v1753 = vpop.f32.mrf.mxu0
      %v1754 = vadd.f32 0.0, %v1753
      %v1755 = vpop.f32.mrf.mxu0
      %v1756 = vpop.f32.mrf.mxu0
      %v1757 = vpop.f32.mrf.mxu0
      %1758 = vmatprep.mubr.bf16.mxu0 0
      %1759 = vmatmul.mubr.bf16.gmra.mxu0 %v1661
      %v1760 = vpop.f32.mrf.mxu0
      %v1761 = vadd.f32 0.0, %v1760
      %v1762 = vpop.f32.mrf.mxu0
      %v1763 = vpop.f32.mrf.mxu0
      %v1764 = vadd.f32 0.0, %v1763
      %v1765 = vpop.f32.mrf.mxu0
      %1766 = vmatprep.mubr.bf16.mxu0 0
      %1767 = vmatmul.mubr.bf16.gmra.mxu0 %v1664
      %v1768 = vpop.f32.mrf.mxu0
      %v1769 = vpop.f32.mrf.mxu0
      %v1770 = vpop.f32.mrf.mxu0
      %v1771 = vadd.f32 0.0, %v1770
      %v1772 = vpop.f32.mrf.mxu0
      %1773 = vmatprep.mubr.bf16.mxu0 0
      %1774 = vmatmul.mubr.bf16.gmra.mxu0 %v1667
      %v1775 = vpop.f32.mrf.mxu0
      %v1776 = vadd.f32 0.0, %v1775
      %v1777 = vpop.f32.mrf.mxu0
      %v1778 = vpop.f32.mrf.mxu0
      %v1779 = vpop.f32.mrf.mxu0
      %1780 = vmatprep.mubr.bf16.mxu0 0
      %1781 = vmatmul.mubr.bf16.gmra.mxu0 %v1670
      %v1782 = vpop.f32.mrf.mxu0
      %v1783 = vadd.f32 0.0, %v1782
      %v1784 = vpop.f32.mrf.mxu0
      %v1785 = vpop.f32.mrf.mxu0
      %v1786 = vadd.f32 0.0, %v1785
      %v1787 = vpop.f32.mrf.mxu0
      %1788 = vmatprep.mubr.bf16.mxu0 0
      %1789 = vmatmul.mubr.bf16.gmra.mxu0 %v1673
      %v1790 = vpop.f32.mrf.mxu0
      %v1791 = vpop.f32.mrf.mxu0
      %v1792 = vpop.f32.mrf.mxu0
      %v1793 = vadd.f32 0.0, %v1792
      %v1794 = vpop.f32.mrf.mxu0
      %1795 = vmatprep.mubr.bf16.mxu0 0
      %1796 = vmatmul.mubr.bf16.gmra.mxu0 %v1676
      %v1797 = vpop.f32.mrf.mxu0
      %v1798 = vadd.f32 0.0, %v1797
      %v1799 = vpop.f32.mrf.mxu0
      %v1800 = vpop.f32.mrf.mxu0
      %v1801 = vpop.f32.mrf.mxu0
      %1802 = vdwg.mxu0
      %v1827 = vunpack.c.l.b16 %v1519
      %v1828 = vunpack.c.l.b16 %v1520
      %v1829 = vunpack.c.l.b16 %v1521
      %v1830 = vunpack.c.l.b16 %v1522
      %v1831 = vunpack.c.l.b16 %v1523
      %v1832 = vunpack.c.l.b16 %v1524
      %v1833 = vunpack.c.l.b16 %v1525
      %v1834 = vunpack.c.l.b16 %v1526
      %v1835 = vunpack.c.l.b16 %v1527
      %v1836 = vunpack.c.l.b16 %v1528
      %v1837 = vunpack.c.l.b16 %v1529
      %v1838 = vunpack.c.l.b16 %v1530
      %v1839 = vunpack.c.l.b16 %v1531
      %v1840 = vunpack.c.l.b16 %v1532
      %v1841 = vunpack.c.l.b16 %v1533
      %v1842 = vunpack.c.l.b16 %v1534
      %v1843 = vunpack.c.l.b16 %v1535
      %v1844 = vunpack.c.l.b16 %v1536
      %v1845 = vunpack.c.l.b16 %v1537
      %v1846 = vunpack.c.l.b16 %v1538
      %v1847 = vunpack.c.l.b16 %v1539
      %v1848 = vunpack.c.l.b16 %v1540
      %v1849 = vunpack.c.l.b16 %v1541
      %v1850 = vunpack.c.l.b16 %v1542
      %v1851 = vpack.c.b16 %v1828, %v1827
      %v1852 = vpack.c.b16 %v1830, %v1829
      %v1853 = vpack.c.b16 %v1832, %v1831
      %v1854 = vpack.c.b16 %v1834, %v1833
      %v1855 = vpack.c.b16 %v1836, %v1835
      %v1856 = vpack.c.b16 %v1838, %v1837
      %v1857 = vpack.c.b16 %v1840, %v1839
      %v1858 = vpack.c.b16 %v1842, %v1841
      %v1859 = vpack.c.b16 %v1844, %v1843
      %v1860 = vpack.c.b16 %v1846, %v1845
      %v1861 = vpack.c.b16 %v1848, %v1847
      %v1862 = vpack.c.b16 %v1850, %v1849
      %v1865 = vunpack.c.l.b16 %v1543
      %v1866 = vunpack.c.l.b16 %v1544
      %v1867 = vpack.c.b16 %v1866, %v1865
      %v1869 = vsel %vm1641, %v1851, 0
      %v1872 = vsel %vm1641, %v1852, 0
      %v1875 = vsel %vm1641, %v1853, 0
      %v1878 = vsel %vm1641, %v1854, 0
      %v1881 = vsel %vm1641, %v1855, 0
      %v1884 = vsel %vm1641, %v1856, 0
      %v1887 = vsel %vm1641, %v1857, 0
      %v1890 = vsel %vm1641, %v1858, 0
      %v1893 = vsel %vm1641, %v1859, 0
      %v1896 = vsel %vm1641, %v1860, 0
      %v1899 = vsel %vm1641, %v1861, 0
      %v1902 = vsel %vm1641, %v1862, 0
      %v1905 = vsel %vm1678, %v1867, 0
      %1907 = vmatprep.subr.bf16.mxu0 0
      %1908 = vmatpush1.bf16.msra.mxu0 0
      %1909 = vmatprep.subr.bf16.mxu0 0
      %1910 = vmatpush1.bf16.msra.mxu0 0
      %1911 = vmatprep.subr.bf16.mxu0 0
      %1912 = vmatpush1.bf16.msra.mxu0 0
      %1913 = vmatprep.subr.bf16.mxu0 0
      %1914 = vmatpush1.bf16.msra.mxu0 0
      %1915 = vmatprep.subr.bf16.mxu0 0
      %1916 = vmatpush1.bf16.msra.mxu0 0
      %1917 = vmatprep.subr.bf16.mxu0 0
      %1918 = vmatpush1.bf16.msra.mxu0 0
      %1919 = vmatprep.subr.bf16.mxu0 0
      %1920 = vmatpush1.bf16.msra.mxu0 0
      %1921 = vmatprep.subr.bf16.mxu0 0
      %1922 = vmatpush1.bf16.msra.mxu0 %v1905
      %1923 = vmatprep.subr.bf16.mxu0 0
      %1924 = vmatpush2.bf16.msra.mxu0 0
      %1925 = vmatprep.subr.bf16.mxu0 0
      %1926 = vmatpush2.bf16.msra.mxu0 0
      %1927 = vmatprep.subr.bf16.mxu0 0
      %1928 = vmatpush2.bf16.msra.mxu0 0
      %1929 = vmatprep.subr.bf16.mxu0 0
      %1930 = vmatpush2.bf16.msra.mxu0 0
      %1931 = vmatprep.subr.bf16.mxu0 0
      %1932 = vmatpush2.bf16.msra.mxu0 0
      %1933 = vmatprep.subr.bf16.mxu0 0
      %1934 = vmatpush2.bf16.msra.mxu0 0
      %1935 = vmatprep.subr.bf16.mxu0 0
      %1936 = vmatpush2.bf16.msra.mxu0 0
      %1937 = vmatprep.subr.bf16.mxu0 0
      %1938 = vmatpush2.bf16.msra.mxu0 0
      %1939 = vmatprep.mubr.bf16.mxu0 0
      %1940 = vmatmul.mubr.bf16.gmra.mxu0 %v1869
      %v1941 = vpop.f32.mrf.mxu0
      %v1942 = vadd.f32 %v1717, %v1941
      %v1943 = vpop.f32.mrf.mxu0
      %v1944 = vpop.f32.mrf.mxu0
      %v1945 = vadd.f32 %v1720, %v1944
      %v1946 = vpop.f32.mrf.mxu0
      %1947 = vmatprep.mubr.bf16.mxu0 0
      %1948 = vmatmul.mubr.bf16.gmra.mxu0 %v1872
      %v1949 = vpop.f32.mrf.mxu0
      %v1950 = vpop.f32.mrf.mxu0
      %v1951 = vpop.f32.mrf.mxu0
      %v1952 = vadd.f32 %v1727, %v1951
      %v1953 = vpop.f32.mrf.mxu0
      %1954 = vmatprep.mubr.bf16.mxu0 0
      %1955 = vmatmul.mubr.bf16.gmra.mxu0 %v1875
      %v1956 = vpop.f32.mrf.mxu0
      %v1957 = vadd.f32 %v1732, %v1956
      %v1958 = vpop.f32.mrf.mxu0
      %v1959 = vpop.f32.mrf.mxu0
      %v1960 = vpop.f32.mrf.mxu0
      %1961 = vmatprep.mubr.bf16.mxu0 0
      %1962 = vmatmul.mubr.bf16.gmra.mxu0 %v1878
      %v1963 = vpop.f32.mrf.mxu0
      %v1964 = vadd.f32 %v1739, %v1963
      %v1965 = vpop.f32.mrf.mxu0
      %v1966 = vpop.f32.mrf.mxu0
      %v1967 = vadd.f32 %v1742, %v1966
      %v1968 = vpop.f32.mrf.mxu0
      %1969 = vmatprep.mubr.bf16.mxu0 0
      %1970 = vmatmul.mubr.bf16.gmra.mxu0 %v1881
      %v1971 = vpop.f32.mrf.mxu0
      %v1972 = vpop.f32.mrf.mxu0
      %v1973 = vpop.f32.mrf.mxu0
      %v1974 = vadd.f32 %v1749, %v1973
      %v1975 = vpop.f32.mrf.mxu0
      %1976 = vmatprep.mubr.bf16.mxu0 0
      %1977 = vmatmul.mubr.bf16.gmra.mxu0 %v1884
      %v1978 = vpop.f32.mrf.mxu0
      %v1979 = vadd.f32 %v1754, %v1978
      %v1980 = vpop.f32.mrf.mxu0
      %v1981 = vpop.f32.mrf.mxu0
      %v1982 = vpop.f32.mrf.mxu0
      %1983 = vmatprep.mubr.bf16.mxu0 0
      %1984 = vmatmul.mubr.bf16.gmra.mxu0 %v1887
      %v1985 = vpop.f32.mrf.mxu0
      %v1986 = vadd.f32 %v1761, %v1985
      %v1987 = vpop.f32.mrf.mxu0
      %v1988 = vpop.f32.mrf.mxu0
      %v1989 = vadd.f32 %v1764, %v1988
      %v1990 = vpop.f32.mrf.mxu0
      %1991 = vmatprep.mubr.bf16.mxu0 0
      %1992 = vmatmul.mubr.bf16.gmra.mxu0 %v1890
      %v1993 = vpop.f32.mrf.mxu0
      %v1994 = vpop.f32.mrf.mxu0
      %v1995 = vpop.f32.mrf.mxu0
      %v1996 = vadd.f32 %v1771, %v1995
      %v1997 = vpop.f32.mrf.mxu0
      %1998 = vmatprep.mubr.bf16.mxu0 0
      %1999 = vmatmul.mubr.bf16.gmra.mxu0 %v1893
      %v2000 = vpop.f32.mrf.mxu0
      %v2001 = vadd.f32 %v1776, %v2000
      %v2002 = vpop.f32.mrf.mxu0
      %v2003 = vpop.f32.mrf.mxu0
      %v2004 = vpop.f32.mrf.mxu0
      %2005 = vmatprep.mubr.bf16.mxu0 0
      %2006 = vmatmul.mubr.bf16.gmra.mxu0 %v1896
      %v2007 = vpop.f32.mrf.mxu0
      %v2008 = vadd.f32 %v1783, %v2007
      %v2009 = vpop.f32.mrf.mxu0
      %v2010 = vpop.f32.mrf.mxu0
      %v2011 = vadd.f32 %v1786, %v2010
      %v2012 = vpop.f32.mrf.mxu0
      %2013 = vmatprep.mubr.bf16.mxu0 0
      %2014 = vmatmul.mubr.bf16.gmra.mxu0 %v1899
      %v2015 = vpop.f32.mrf.mxu0
      %v2016 = vpop.f32.mrf.mxu0
      %v2017 = vpop.f32.mrf.mxu0
      %v2018 = vadd.f32 %v1793, %v2017
      %v2019 = vpop.f32.mrf.mxu0
      %2020 = vmatprep.mubr.bf16.mxu0 0
      %2021 = vmatmul.mubr.bf16.gmra.mxu0 %v1902
      %v2022 = vpop.f32.mrf.mxu0
      %v2023 = vadd.f32 %v1798, %v2022
      %v2024 = vpop.f32.mrf.mxu0
      %v2025 = vpop.f32.mrf.mxu0
      %v2026 = vpop.f32.mrf.mxu0
      %2027 = vdwg.mxu0
      %s2028 = sadd.s32 %s1515, 2
      %s2029 = smul.u32 %s2028, 3
      %s2030 = smul.addr %s2029, 4
      %s2031 = scalar_lea.vmem [#allocation2], %s2030
      %v2032 = vld [vmem:[%s2031] sm:$0xf]
      %v2033 = vld [vmem:[%s2031 + $0x4] sm:$0xf]
      %v2034 = vld [vmem:[%s2031 + $0x8] sm:$0xf]
      %v2035 = vld [vmem:[%s2031 + $0xc] sm:$0xf]
      %v2036 = vld [vmem:[%s2031 + $0x10] sm:$0xf]
      %v2037 = vld [vmem:[%s2031 + $0x14] sm:$0xf]
      %v2038 = vld [vmem:[%s2031 + $0x18] sm:$0xf]
      %v2039 = vld [vmem:[%s2031 + $0x1c] sm:$0xf]
      %v2040 = vld [vmem:[%s2031 + $0x20] sm:$0xf]
      %v2041 = vld [vmem:[%s2031 + $0x24] sm:$0xf]
      %v2042 = vld [vmem:[%s2031 + $0x28] sm:$0xf]
      %v2043 = vld [vmem:[%s2031 + $0x2c] sm:$0xf]
      %v2044 = vld [vmem:[%s2031 + $0x30] sm:$0xf]
      %v2045 = vld [vmem:[%s2031 + $0x34] sm:$0xf]
      %v2046 = vld [vmem:[%s2031 + $0x38] sm:$0xf]
      %v2047 = vld [vmem:[%s2031 + $0x3c] sm:$0xf]
      %v2048 = vld [vmem:[%s2031 + $0x40] sm:$0xf]
      %v2049 = vld [vmem:[%s2031 + $0x44] sm:$0xf]
      %v2050 = vld [vmem:[%s2031 + $0x48] sm:$0xf]
      %v2051 = vld [vmem:[%s2031 + $0x4c] sm:$0xf]
      %v2052 = vld [vmem:[%s2031 + $0x50] sm:$0xf]
      %v2053 = vld [vmem:[%s2031 + $0x54] sm:$0xf]
      %v2054 = vld [vmem:[%s2031 + $0x58] sm:$0xf]
      %v2055 = vld [vmem:[%s2031 + $0x5c] sm:$0xf]
      %s2056 = scalar_lea.vmem %s1, 16
      %v2057 = vld [vmem:[%s2056] sm:$0xf]
      %v2058 = vld [vmem:[%s2056 + $0x4] sm:$0x3]
      %v2083 = vunpack.c.l.b16 %v2032
      %v2084 = vunpack.c.l.b16 %v2033
      %v2085 = vunpack.c.l.b16 %v2034
      %v2086 = vunpack.c.l.b16 %v2035
      %v2087 = vunpack.c.l.b16 %v2036
      %v2088 = vunpack.c.l.b16 %v2037
      %v2089 = vunpack.c.l.b16 %v2038
      %v2090 = vunpack.c.l.b16 %v2039
      %v2091 = vunpack.c.l.b16 %v2040
      %v2092 = vunpack.c.l.b16 %v2041
      %v2093 = vunpack.c.l.b16 %v2042
      %v2094 = vunpack.c.l.b16 %v2043
      %v2095 = vunpack.c.l.b16 %v2044
      %v2096 = vunpack.c.l.b16 %v2045
      %v2097 = vunpack.c.l.b16 %v2046
      %v2098 = vunpack.c.l.b16 %v2047
      %v2099 = vunpack.c.l.b16 %v2048
      %v2100 = vunpack.c.l.b16 %v2049
      %v2101 = vunpack.c.l.b16 %v2050
      %v2102 = vunpack.c.l.b16 %v2051
      %v2103 = vunpack.c.l.b16 %v2052
      %v2104 = vunpack.c.l.b16 %v2053
      %v2105 = vunpack.c.l.b16 %v2054
      %v2106 = vunpack.c.l.b16 %v2055
      %v2107 = vpack.c.b16 %v2084, %v2083
      %v2108 = vpack.c.b16 %v2086, %v2085
      %v2109 = vpack.c.b16 %v2088, %v2087
      %v2110 = vpack.c.b16 %v2090, %v2089
      %v2111 = vpack.c.b16 %v2092, %v2091
      %v2112 = vpack.c.b16 %v2094, %v2093
      %v2113 = vpack.c.b16 %v2096, %v2095
      %v2114 = vpack.c.b16 %v2098, %v2097
      %v2115 = vpack.c.b16 %v2100, %v2099
      %v2116 = vpack.c.b16 %v2102, %v2101
      %v2117 = vpack.c.b16 %v2104, %v2103
      %v2118 = vpack.c.b16 %v2106, %v2105
      %v2121 = vunpack.c.l.b16 %v2057
      %v2122 = vunpack.c.l.b16 %v2058
      %v2123 = vpack.c.b16 %v2122, %v2121
      %v2125 = vsel %vm1641, %v2107, 0
      %v2128 = vsel %vm1641, %v2108, 0
      %v2131 = vsel %vm1641, %v2109, 0
      %v2134 = vsel %vm1641, %v2110, 0
      %v2137 = vsel %vm1641, %v2111, 0
      %v2140 = vsel %vm1641, %v2112, 0
      %v2143 = vsel %vm1641, %v2113, 0
      %v2146 = vsel %vm1641, %v2114, 0
      %v2149 = vsel %vm1641, %v2115, 0
      %v2152 = vsel %vm1641, %v2116, 0
      %v2155 = vsel %vm1641, %v2117, 0
      %v2158 = vsel %vm1641, %v2118, 0
      %v2161 = vsel %vm1678, %v2123, 0
      %2163 = vmatprep.subr.bf16.mxu0 0
      %2164 = vmatpush1.bf16.msra.mxu0 0
      %2165 = vmatprep.subr.bf16.mxu0 0
      %2166 = vmatpush1.bf16.msra.mxu0 0
      %2167 = vmatprep.subr.bf16.mxu0 0
      %2168 = vmatpush1.bf16.msra.mxu0 0
      %2169 = vmatprep.subr.bf16.mxu0 0
      %2170 = vmatpush1.bf16.msra.mxu0 0
      %2171 = vmatprep.subr.bf16.mxu0 0
      %2172 = vmatpush1.bf16.msra.mxu0 0
      %2173 = vmatprep.subr.bf16.mxu0 0
      %2174 = vmatpush1.bf16.msra.mxu0 0
      %2175 = vmatprep.subr.bf16.mxu0 0
      %2176 = vmatpush1.bf16.msra.mxu0 0
      %2177 = vmatprep.subr.bf16.mxu0 0
      %2178 = vmatpush1.bf16.msra.mxu0 %v2161
      %2179 = vmatprep.subr.bf16.mxu0 0
      %2180 = vmatpush2.bf16.msra.mxu0 0
      %2181 = vmatprep.subr.bf16.mxu0 0
      %2182 = vmatpush2.bf16.msra.mxu0 0
      %2183 = vmatprep.subr.bf16.mxu0 0
      %2184 = vmatpush2.bf16.msra.mxu0 0
      %2185 = vmatprep.subr.bf16.mxu0 0
      %2186 = vmatpush2.bf16.msra.mxu0 0
      %2187 = vmatprep.subr.bf16.mxu0 0
      %2188 = vmatpush2.bf16.msra.mxu0 0
      %2189 = vmatprep.subr.bf16.mxu0 0
      %2190 = vmatpush2.bf16.msra.mxu0 0
      %2191 = vmatprep.subr.bf16.mxu0 0
      %2192 = vmatpush2.bf16.msra.mxu0 0
      %2193 = vmatprep.subr.bf16.mxu0 0
      %2194 = vmatpush2.bf16.msra.mxu0 0
      %2195 = vmatprep.mubr.bf16.mxu0 0
      %2196 = vmatmul.mubr.bf16.gmra.mxu0 %v2125
      %v2197 = vpop.f32.mrf.mxu0
      %v2198 = vadd.f32 0.0, %v2197
      %v2199 = vpop.f32.mrf.mxu0
      %v2200 = vpop.f32.mrf.mxu0
      %v2201 = vadd.f32 0.0, %v2200
      %v2202 = vpop.f32.mrf.mxu0
      %2203 = vmatprep.mubr.bf16.mxu0 0
      %2204 = vmatmul.mubr.bf16.gmra.mxu0 %v2128
      %v2205 = vpop.f32.mrf.mxu0
      %v2206 = vpop.f32.mrf.mxu0
      %v2207 = vpop.f32.mrf.mxu0
      %v2208 = vadd.f32 0.0, %v2207
      %v2209 = vpop.f32.mrf.mxu0
      %2210 = vmatprep.mubr.bf16.mxu0 0
      %2211 = vmatmul.mubr.bf16.gmra.mxu0 %v2131
      %v2212 = vpop.f32.mrf.mxu0
      %v2213 = vadd.f32 0.0, %v2212
      %v2214 = vpop.f32.mrf.mxu0
      %v2215 = vpop.f32.mrf.mxu0
      %v2216 = vpop.f32.mrf.mxu0
      %2217 = vmatprep.mubr.bf16.mxu0 0
      %2218 = vmatmul.mubr.bf16.gmra.mxu0 %v2134
      %v2219 = vpop.f32.mrf.mxu0
      %v2220 = vadd.f32 0.0, %v2219
      %v2221 = vpop.f32.mrf.mxu0
      %v2222 = vpop.f32.mrf.mxu0
      %v2223 = vadd.f32 0.0, %v2222
      %v2224 = vpop.f32.mrf.mxu0
      %2225 = vmatprep.mubr.bf16.mxu0 0
      %2226 = vmatmul.mubr.bf16.gmra.mxu0 %v2137
      %v2227 = vpop.f32.mrf.mxu0
      %v2228 = vpop.f32.mrf.mxu0
      %v2229 = vpop.f32.mrf.mxu0
      %v2230 = vadd.f32 0.0, %v2229
      %v2231 = vpop.f32.mrf.mxu0
      %2232 = vmatprep.mubr.bf16.mxu0 0
      %2233 = vmatmul.mubr.bf16.gmra.mxu0 %v2140
      %v2234 = vpop.f32.mrf.mxu0
      %v2235 = vadd.f32 0.0, %v2234
      %v2236 = vpop.f32.mrf.mxu0
      %v2237 = vpop.f32.mrf.mxu0
      %v2238 = vpop.f32.mrf.mxu0
      %2239 = vmatprep.mubr.bf16.mxu0 0
      %2240 = vmatmul.mubr.bf16.gmra.mxu0 %v2143
      %v2241 = vpop.f32.mrf.mxu0
      %v2242 = vadd.f32 0.0, %v2241
      %v2243 = vpop.f32.mrf.mxu0
      %v2244 = vpop.f32.mrf.mxu0
      %v2245 = vadd.f32 0.0, %v2244
      %v2246 = vpop.f32.mrf.mxu0
      %2247 = vmatprep.mubr.bf16.mxu0 0
      %2248 = vmatmul.mubr.bf16.gmra.mxu0 %v2146
      %v2249 = vpop.f32.mrf.mxu0
      %v2250 = vpop.f32.mrf.mxu0
      %v2251 = vpop.f32.mrf.mxu0
      %v2252 = vadd.f32 0.0, %v2251
      %v2253 = vpop.f32.mrf.mxu0
      %2254 = vmatprep.mubr.bf16.mxu0 0
      %2255 = vmatmul.mubr.bf16.gmra.mxu0 %v2149
      %v2256 = vpop.f32.mrf.mxu0
      %v2257 = vadd.f32 0.0, %v2256
      %v2258 = vpop.f32.mrf.mxu0
      %v2259 = vpop.f32.mrf.mxu0
      %v2260 = vpop.f32.mrf.mxu0
      %2261 = vmatprep.mubr.bf16.mxu0 0
      %2262 = vmatmul.mubr.bf16.gmra.mxu0 %v2152
      %v2263 = vpop.f32.mrf.mxu0
      %v2264 = vadd.f32 0.0, %v2263
      %v2265 = vpop.f32.mrf.mxu0
      %v2266 = vpop.f32.mrf.mxu0
      %v2267 = vadd.f32 0.0, %v2266
      %v2268 = vpop.f32.mrf.mxu0
      %2269 = vmatprep.mubr.bf16.mxu0 0
      %2270 = vmatmul.mubr.bf16.gmra.mxu0 %v2155
      %v2271 = vpop.f32.mrf.mxu0
      %v2272 = vpop.f32.mrf.mxu0
      %v2273 = vpop.f32.mrf.mxu0
      %v2274 = vadd.f32 0.0, %v2273
      %v2275 = vpop.f32.mrf.mxu0
      %2276 = vmatprep.mubr.bf16.mxu0 0
      %2277 = vmatmul.mubr.bf16.gmra.mxu0 %v2158
      %v2278 = vpop.f32.mrf.mxu0
      %v2279 = vadd.f32 0.0, %v2278
      %v2280 = vpop.f32.mrf.mxu0
      %v2281 = vpop.f32.mrf.mxu0
      %v2282 = vpop.f32.mrf.mxu0
      %2283 = vdwg.mxu0
      %v2284 = vadd.f32 %v1942, %v2198
      %v2285 = vadd.f32 %v1945, %v2201
      %v2286 = vadd.f32 %v1952, %v2208
      %v2287 = vadd.f32 %v1957, %v2213
      %v2288 = vadd.f32 %v1964, %v2220
      %v2289 = vadd.f32 %v1967, %v2223
      %v2290 = vadd.f32 %v1974, %v2230
      %v2291 = vadd.f32 %v1979, %v2235
      %v2292 = vadd.f32 %v1986, %v2242
      %v2293 = vadd.f32 %v1989, %v2245
      %v2294 = vadd.f32 %v1996, %v2252
      %v2295 = vadd.f32 %v2001, %v2257
      %v2296 = vadd.f32 %v2008, %v2264
      %v2297 = vadd.f32 %v2011, %v2267
      %v2298 = vadd.f32 %v2018, %v2274
      %v2299 = vadd.f32 %v2023, %v2279
      %v2300 = vld [vmem:[%s4] sm:$0x1]
      %v2302 = vlaneseq
      %v2303 = vshrl.u32 %v2302, 7
      %v2304 = vsub.s32 0, %v2303
      %v2305 = vrot.slane %v2300, %v2304
      %v2307 = vadd.f32 %v2284, %v2305
      %v2308 = vadd.f32 %v2285, %v2305
      %v2309 = vadd.f32 %v2286, %v2305
      %v2310 = vadd.f32 %v2287, %v2305
      %v2311 = vadd.f32 %v2288, %v2305
      %v2312 = vadd.f32 %v2289, %v2305
      %v2313 = vadd.f32 %v2290, %v2305
      %v2314 = vadd.f32 %v2291, %v2305
      %v2315 = vadd.f32 %v2292, %v2305
      %v2316 = vadd.f32 %v2293, %v2305
      %v2317 = vadd.f32 %v2294, %v2305
      %v2318 = vadd.f32 %v2295, %v2305
      %v2319 = vadd.f32 %v2296, %v2305
      %v2320 = vadd.f32 %v2297, %v2305
      %v2321 = vadd.f32 %v2298, %v2305
      %v2322 = vadd.f32 %v2299, %v2305
      %v2323 = vmax.f32 %v2307, 0.0
      %v2324 = vmax.f32 %v2308, 0.0
      %v2325 = vmax.f32 %v2309, 0.0
      %v2326 = vmax.f32 %v2310, 0.0
      %v2327 = vmax.f32 %v2311, 0.0
      %v2328 = vmax.f32 %v2312, 0.0
      %v2329 = vmax.f32 %v2313, 0.0
      %v2330 = vmax.f32 %v2314, 0.0
      %v2331 = vmax.f32 %v2315, 0.0
      %v2332 = vmax.f32 %v2316, 0.0
      %v2333 = vmax.f32 %v2317, 0.0
      %v2334 = vmax.f32 %v2318, 0.0
      %v2335 = vmax.f32 %v2319, 0.0
      %v2336 = vmax.f32 %v2320, 0.0
      %v2337 = vmax.f32 %v2321, 0.0
      %v2338 = vmax.f32 %v2322, 0.0
      %v2339 = vld [vmem:[%s5] sm:$0x1]
      %v2341 = vlaneseq
      %v2342 = vshrl.u32 %v2341, 7
      %v2343 = vsub.s32 0, %v2342
      %v2344 = vrot.slane %v2339, %v2343
      %v2346 = vmul.f32 %v2323, %v2344
      %v2347 = vmul.f32 %v2324, %v2344
      %v2348 = vmul.f32 %v2325, %v2344
      %v2349 = vmul.f32 %v2326, %v2344
      %v2350 = vmul.f32 %v2327, %v2344
      %v2351 = vmul.f32 %v2328, %v2344
      %v2352 = vmul.f32 %v2329, %v2344
      %v2353 = vmul.f32 %v2330, %v2344
      %v2354 = vmul.f32 %v2331, %v2344
      %v2355 = vmul.f32 %v2332, %v2344
      %v2356 = vmul.f32 %v2333, %v2344
      %v2357 = vmul.f32 %v2334, %v2344
      %v2358 = vmul.f32 %v2335, %v2344
      %v2359 = vmul.f32 %v2336, %v2344
      %v2360 = vmul.f32 %v2337, %v2344
      %v2361 = vmul.f32 %v2338, %v2344
      %v2362 = vld [vmem:[%s6] sm:$0x1]
      %v2364 = vlaneseq
      %v2365 = vshrl.u32 %v2364, 7
      %v2366 = vsub.s32 0, %v2365
      %v2367 = vrot.slane %v2362, %v2366
      %v2369 = vadd.f32 %v2346, %v2367
      %v2370 = vadd.f32 %v2347, %v2367
      %v2371 = vadd.f32 %v2348, %v2367
      %v2372 = vadd.f32 %v2349, %v2367
      %v2373 = vadd.f32 %v2350, %v2367
      %v2374 = vadd.f32 %v2351, %v2367
      %v2375 = vadd.f32 %v2352, %v2367
      %v2376 = vadd.f32 %v2353, %v2367
      %v2377 = vadd.f32 %v2354, %v2367
      %v2378 = vadd.f32 %v2355, %v2367
      %v2379 = vadd.f32 %v2356, %v2367
      %v2380 = vadd.f32 %v2357, %v2367
      %v2381 = vadd.f32 %v2358, %v2367
      %v2382 = vadd.f32 %v2359, %v2367
      %v2383 = vadd.f32 %v2360, %v2367
      %v2384 = vadd.f32 %v2361, %v2367
      %v2385 = vmax.f32 %v2369, 0.0
      %v2386 = vmax.f32 %v2370, 0.0
      %v2387 = vmax.f32 %v2371, 0.0
      %v2388 = vmax.f32 %v2372, 0.0
      %v2389 = vmax.f32 %v2373, 0.0
      %v2390 = vmax.f32 %v2374, 0.0
      %v2391 = vmax.f32 %v2375, 0.0
      %v2392 = vmax.f32 %v2376, 0.0
      %v2393 = vmax.f32 %v2377, 0.0
      %v2394 = vmax.f32 %v2378, 0.0
      %v2395 = vmax.f32 %v2379, 0.0
      %v2396 = vmax.f32 %v2380, 0.0
      %v2397 = vmax.f32 %v2381, 0.0
      %v2398 = vmax.f32 %v2382, 0.0
      %v2399 = vmax.f32 %v2383, 0.0
      %v2400 = vmax.f32 %v2384, 0.0
      %v2401 = vpack.c.bf16 %v2386, %v2385
      %v2402 = vpack.c.bf16 %v2388, %v2387
      %v2403 = vpack.c.bf16 %v2390, %v2389
      %v2404 = vpack.c.bf16 %v2392, %v2391
      %v2405 = vpack.c.bf16 %v2394, %v2393
      %v2406 = vpack.c.bf16 %v2396, %v2395
      %v2407 = vpack.c.bf16 %v2398, %v2397
      %v2408 = vpack.c.bf16 %v2400, %v2399
      %v2417 = vunpack.c.l.b16 %v2401
      %v2418 = vunpack.c.h.b16 %v2401
      %v2419 = vunpack.c.l.b16 %v2402
      %v2420 = vunpack.c.h.b16 %v2402
      %v2421 = vunpack.c.l.b16 %v2403
      %v2422 = vunpack.c.h.b16 %v2403
      %v2423 = vunpack.c.l.b16 %v2404
      %v2424 = vunpack.c.h.b16 %v2404
      %v2425 = vunpack.c.l.b16 %v2405
      %v2426 = vunpack.c.h.b16 %v2405
      %v2427 = vunpack.c.l.b16 %v2406
      %v2428 = vunpack.c.h.b16 %v2406
      %v2429 = vunpack.c.l.b16 %v2407
      %v2430 = vunpack.c.h.b16 %v2407
      %v2431 = vunpack.c.l.b16 %v2408
      %v2432 = vunpack.c.h.b16 %v2408
      %v2433 = vpack.c.b16 %v2417, %v2417
      %v2434 = vpack.c.b16 %v2418, %v2418
      %v2435 = vpack.c.b16 %v2419, %v2419
      %v2436 = vpack.c.b16 %v2420, %v2420
      %v2437 = vpack.c.b16 %v2421, %v2421
      %v2438 = vpack.c.b16 %v2422, %v2422
      %v2439 = vpack.c.b16 %v2423, %v2423
      %v2440 = vpack.c.b16 %v2424, %v2424
      %v2441 = vpack.c.b16 %v2425, %v2425
      %v2442 = vpack.c.b16 %v2426, %v2426
      %v2443 = vpack.c.b16 %v2427, %v2427
      %v2444 = vpack.c.b16 %v2428, %v2428
      %v2445 = vpack.c.b16 %v2429, %v2429
      %v2446 = vpack.c.b16 %v2430, %v2430
      %v2447 = vpack.c.b16 %v2431, %v2431
      %v2448 = vpack.c.b16 %v2432, %v2432
      %vm2465 = vcmask 60416
      %2466 = vst.msk [vmem:[%s302] sm:$0xf] %vm2465, %v2433
      %2467 = vst.msk [vmem:[%s302 + $0x4] sm:$0xf] %vm2465, %v2434
      %2468 = vst.msk [vmem:[%s302 + $0x8] sm:$0xf] %vm2465, %v2435
      %2469 = vst.msk [vmem:[%s302 + $0xc] sm:$0xf] %vm2465, %v2436
      %2470 = vst.msk [vmem:[%s302 + $0x10] sm:$0xf] %vm2465, %v2437
      %2471 = vst.msk [vmem:[%s302 + $0x14] sm:$0xf] %vm2465, %v2438
      %2472 = vst.msk [vmem:[%s302 + $0x18] sm:$0xf] %vm2465, %v2439
      %2473 = vst.msk [vmem:[%s302 + $0x1c] sm:$0xf] %vm2465, %v2440
      %2474 = vst.msk [vmem:[%s302 + $0x20] sm:$0xf] %vm2465, %v2441
      %2475 = vst.msk [vmem:[%s302 + $0x24] sm:$0xf] %vm2465, %v2442
      %2476 = vst.msk [vmem:[%s302 + $0x28] sm:$0xf] %vm2465, %v2443
      %2477 = vst.msk [vmem:[%s302 + $0x2c] sm:$0xf] %vm2465, %v2444
      %2478 = vst.msk [vmem:[%s302 + $0x30] sm:$0xf] %vm2465, %v2445
      %2479 = vst.msk [vmem:[%s302 + $0x34] sm:$0xf] %vm2465, %v2446
      %2480 = vst.msk [vmem:[%s302 + $0x38] sm:$0xf] %vm2465, %v2447
      %2481 = vst.msk [vmem:[%s302 + $0x3c] sm:$0xf] %vm2465, %v2448
      %s2482 = smul.u32 8, %s23
      %p2483 = scmp.lt.s32.totalorder %s22, 1
      %s2484 = scalar_select %p2483, %s22, 1
      %p2485 = scmp.lt.s32.totalorder %s2482, 15
      %s2486 = scalar_select %p2485, %s2482, 15
      %s2487 = smul.addr %s2486, 2
      %s2488 = smul.addr %s2484, 32
      %s2489 = sadd.s32 %s2487, %s2488
      %s2490 = smul.addr %s2489, 4
      %s2491 = scalar_lea.vmem %s7, %s2490
      // Predicated region
      $region53: #{af_basic_block_forward.2} parent=47 // pred_check
        %p2492 = pneg %p202
      $region54: #{af_basic_block_forward.2} parent=47 // pred_check_branch
        %2494 = sbr.rel (%p2492) target = $region56
      $region55: #{af_basic_block_forward.2} parent=47 // pred_region
        %s2495 = smul.u32 8, %s23
      $region56: #{af_basic_block_forward.2} parent=47 // pred_fallthru
        _
    $region48: #{af_basic_block_forward.2} parent=5 // pred_fallthru
      _
    %p2496 = scmp.le.s32.totalorder 2, %s13
    // Predicated region
    $region57: #{af_basic_block_forward.2} parent=5 // pred_check
      %p2497 = pneg %p2496
    $region58: #{af_basic_block_forward.2} parent=5 // pred_check_branch
      %2499 = sbr.rel (%p2497) target = $region60
    $region59: #{af_basic_block_forward.2} parent=5 // pred_region
      %s2500 = ssub.s32 %s13, 2
      // Predicated region
      $region61: #{af_basic_block_forward.2} parent=59 // pred_check
        %p2501 = pneg %p208
      $region62: #{af_basic_block_forward.2} parent=59 // pred_check_branch
        %2503 = sbr.rel (%p2501) target = $region64
      $region63: #{af_basic_block_forward.2} parent=59 // pred_region
        %s2504 = smul.u32 8, %s25
        %p2505 = scmp.lt.s32.totalorder %s24, 1
        %s2506 = scalar_select %p2505, %s24, 1
        %p2507 = scmp.lt.s32.totalorder %s2504, 15
        %s2508 = scalar_select %p2507, %s2504, 15
        %s2509 = smul.addr %s2508, 2
        %s2510 = smul.addr %s2506, 32
        %s2511 = sadd.s32 %s2509, %s2510
        %s2512 = smul.addr %s2511, 4
        %s2513 = scalar_lea.vmem %s7, %s2512
      $region64: #{af_basic_block_forward.2} parent=59 // pred_fallthru
        _
    $region60: #{af_basic_block_forward.2} parent=5 // pred_fallthru
      _
  $region6: #{af_basic_block_forward.2} parent=0 // loop_footer
    %s17 = sadd.s32 1, %s13
  $region7: #{af_basic_block_forward.2} parent=0 // loop_footer_branch
    %12 = sbr.rel target = $region3
  $region8: #{af_basic_block_forward.2} parent=0 // loop_exit
    _

// kernel: af_basic_block_forward.3
$region0: #{af_basic_block_forward.3}
  #allocation0 [shape = 'u32[]', space=smem, size = 0x4, offset = 0x4, fixed_abs, tag = 'smem constant byte address 0x4 - core index']
  #allocation1 [shape = 'u32[144,128]{1,0:T(1,128)}', space=vmem, size = 0x12000, scoped, tag = 'internal scratch']
  #allocation2 [shape = 'bf16[18,24,24]{2,1,0:T(8,128)(2,1)}', space=vmem, size = 0x1b000, scoped, tag = 'scratch operand']
  %s0 = inlined_call_operand.vmem [shape: bf16[2,16,16,8], index: 0, kind: input, shape index: {}]
  %s1 = inlined_call_operand.vmem [shape: bf16[2,16,16,4], index: 1, kind: input, shape index: {}]
  %s2 = inlined_call_operand.vmem [shape: bf16[3,24,8], index: 2, kind: input, shape index: {}]
  %s3 = inlined_call_operand.vmem [shape: bf16[4,8], index: 3, kind: input, shape index: {}]
  %s4 = inlined_call_operand.vmem [shape: f32[1,8], index: 4, kind: input, shape index: {}]
  %s5 = inlined_call_operand.vmem [shape: f32[2,16,16,8], index: 5, kind: output, shape index: {}]
  %s6 = sld [smem:[#allocation0]]
  $region57: #{af_basic_block_forward.3} parent=0
    _
  %s8 = ssub.s32 1, %s6
  %s9 = scalar_select 0, %s8, %s6
  loop: start=0, step=1, limit=6
  $region2: #{af_basic_block_forward.3} parent=0 // loop_pre_header
    _
  $region3: #{af_basic_block_forward.3} parent=0 // loop_header
    %s11 = sphi 0, %s15
    %p12 = scmp.ge.s32.totalorder %s11, 6
    %s18 = sphi 0, %s30
    %s19 = sphi 0, %s26
    %s20 = sphi 0, %s18
    %s21 = sphi 0, %s19
    %s22 = sphi 0, %s20
    %s23 = sphi 0, %s21
    %s33 = sphi 0, %s35
    %s36 = sphi 0, %s33
    %s37 = sphi 0, %s36
    %s53 = sphi 0, %s37
    %s61 = sphi 0, %s63
    %s64 = sphi 0, %s61
    %s65 = sphi 0, %s64
    %s81 = sphi 0, %s65
    %s85 = sphi 0, %s85
    %s87 = sphi 0, %s85
    %s88 = sphi 0, %s87
    %s102 = sphi 0, %s88
    %s106 = sphi 0, %s106
    %s108 = sphi 0, %s106
    %s109 = sphi 0, %s108
    %s123 = sphi 0, %s109
    %s127 = sphi 0, %s127
    %s129 = sphi 0, %s127
    %s130 = sphi 0, %s129
    %s144 = sphi 0, %s130
    %s152 = sphi 0, %s154
    %s155 = sphi 0, %s152
    %s156 = sphi 0, %s155
    %s172 = sphi 0, %s156
  $region4: #{af_basic_block_forward.3} parent=0 // loop_header_branch
    %14 = sbr.rel (%p12) target = $region8
  $region5: #{af_basic_block_forward.3} parent=0 // loop_body
    %s16 = ssub.s32 %s11, 1
    %s17 = ssub.s32 %s11, 2
    %s24 = sadd.s32 1, %s19
    %p25 = scmp.ge.s32.totalorder %s24, 2
    %s26 = scalar_select %p25, 0, %s24
    %s27 = sadd.s32 1, %s18
    %s28 = scalar_select %p25, %s27, %s18
    %p29 = scmp.ge.s32.totalorder %s28, 2
    %s30 = scalar_select %p29, 0, %s28
    %s31 = ssub.s32 %s18, %s30
    %p32 = scmp.eq.s32.totalorder %s31, 0
    %s34 = sadd.s32 %s33, 1
    %s35 = scalar_select %p32, %s33, %s34
    %p38 = pneg %p32
    %p39 = scmp.eq.s32.totalorder %s11, 3
    %p40 = por %p38, %p39
    %p41 = scmp.ne.s32.totalorder %s33, %s36
    %p42 = scmp.eq.s32.totalorder %s11, 0
    %p43 = por %p41, %p42
    %p44 = scmp.ne.s32.totalorder %s33, %s36
    %p45 = scmp.eq.s32.totalorder %s16, 3
    %p46 = por %p44, %p45
    %p47 = scmp.ne.s32.totalorder %s36, %s37
    %p48 = scmp.eq.s32.totalorder %s16, 0
    %p49 = por %p47, %p48
    %p50 = scmp.ne.s32.totalorder %s36, %s37
    %p51 = scmp.eq.s32.totalorder %s17, 3
    %p52 = por %p50, %p51
    %p54 = scmp.ne.s32.totalorder %s37, %s53
    %p55 = scmp.eq.s32.totalorder %s17, 0
    %p56 = por %p54, %p55
    %s57 = ssub.s32 %s18, %s30
    %s58 = ssub.s32 %s19, %s26
    %s59 = sor.u32 %s57, %s58
    %p60 = scmp.eq.s32.totalorder %s59, 0
    %s62 = sadd.s32 %s61, 1
    %s63 = scalar_select %p60, %s61, %s62
    %p66 = pneg %p60
    %p67 = scmp.eq.s32.totalorder %s11, 3
    %p68 = por %p66, %p67
    %p69 = scmp.ne.s32.totalorder %s61, %s64
    %p70 = scmp.eq.s32.totalorder %s11, 0
    %p71 = por %p69, %p70
    %p72 = scmp.ne.s32.totalorder %s61, %s64
    %p73 = scmp.eq.s32.totalorder %s16, 3
    %p74 = por %p72, %p73
    %p75 = scmp.ne.s32.totalorder %s64, %s65
    %p76 = scmp.eq.s32.totalorder %s16, 0
    %p77 = por %p75, %p76
    %p78 = scmp.ne.s32.totalorder %s64, %s65
    %p79 = scmp.eq.s32.totalorder %s17, 3
    %p80 = por %p78, %p79
    %p82 = scmp.ne.s32.totalorder %s65, %s81
    %p83 = scmp.eq.s32.totalorder %s17, 0
    %p84 = por %p82, %p83
    %s86 = sadd.s32 %s85, 1
    %p89 = scmp.eq.s32.totalorder %s11, 3
    %p90 = scmp.ne.s32.totalorder %s85, %s87
    %p91 = scmp.eq.s32.totalorder %s11, 0
    %p92 = por %p90, %p91
    %p93 = scmp.ne.s32.totalorder %s85, %s87
    %p94 = scmp.eq.s32.totalorder %s16, 3
    %p95 = por %p93, %p94
    %p96 = scmp.ne.s32.totalorder %s87, %s88
    %p97 = scmp.eq.s32.totalorder %s16, 0
    %p98 = por %p96, %p97
    %p99 = scmp.ne.s32.totalorder %s87, %s88
    %p100 = scmp.eq.s32.totalorder %s17, 3
    %p101 = por %p99, %p100
    %p103 = scmp.ne.s32.totalorder %s88, %s102
    %p104 = scmp.eq.s32.totalorder %s17, 0
    %p105 = por %p103, %p104
    %s107 = sadd.s32 %s106, 1
    %p110 = scmp.eq.s32.totalorder %s11, 3
    %p111 = scmp.ne.s32.totalorder %s106, %s108
    %p112 = scmp.eq.s32.totalorder %s11, 0
    %p113 = por %p111, %p112
    %p114 = scmp.ne.s32.totalorder %s106, %s108
    %p115 = scmp.eq.s32.totalorder %s16, 3
    %p116 = por %p114, %p115
    %p117 = scmp.ne.s32.totalorder %s108, %s109
    %p118 = scmp.eq.s32.totalorder %s16, 0
    %p119 = por %p117, %p118
    %p120 = scmp.ne.s32.totalorder %s108, %s109
    %p121 = scmp.eq.s32.totalorder %s17, 3
    %p122 = por %p120, %p121
    %p124 = scmp.ne.s32.totalorder %s109, %s123
    %p125 = scmp.eq.s32.totalorder %s17, 0
    %p126 = por %p124, %p125
    %s128 = sadd.s32 %s127, 1
    %p131 = scmp.eq.s32.totalorder %s11, 3
    %p132 = scmp.ne.s32.totalorder %s127, %s129
    %p133 = scmp.eq.s32.totalorder %s11, 0
    %p134 = por %p132, %p133
    %p135 = scmp.ne.s32.totalorder %s127, %s129
    %p136 = scmp.eq.s32.totalorder %s16, 3
    %p137 = por %p135, %p136
    %p138 = scmp.ne.s32.totalorder %s129, %s130
    %p139 = scmp.eq.s32.totalorder %s16, 0
    %p140 = por %p138, %p139
    %p141 = scmp.ne.s32.totalorder %s129, %s130
    %p142 = scmp.eq.s32.totalorder %s17, 3
    %p143 = por %p141, %p142
    %p145 = scmp.ne.s32.totalorder %s130, %s144
    %p146 = scmp.eq.s32.totalorder %s17, 0
    %p147 = por %p145, %p146
    %s148 = ssub.s32 %s18, %s30
    %s149 = ssub.s32 %s19, %s26
    %s150 = sor.u32 %s148, %s149
    %p151 = scmp.eq.s32.totalorder %s150, 0
    %s153 = sadd.s32 %s152, 1
    %s154 = scalar_select %p151, %s152, %s153
    %p157 = pneg %p151
    %p158 = scmp.eq.s32.totalorder %s11, 3
    %p159 = por %p157, %p158
    %p160 = scmp.ne.s32.totalorder %s152, %s155
    %p161 = scmp.eq.s32.totalorder %s11, 0
    %p162 = por %p160, %p161
    %p163 = scmp.ne.s32.totalorder %s152, %s155
    %p164 = scmp.eq.s32.totalorder %s16, 3
    %p165 = por %p163, %p164
    %p166 = scmp.ne.s32.totalorder %s155, %s156
    %p167 = scmp.eq.s32.totalorder %s16, 0
    %p168 = por %p166, %p167
    %p169 = scmp.ne.s32.totalorder %s155, %s156
    %p170 = scmp.eq.s32.totalorder %s17, 3
    %p171 = por %p169, %p170
    %p173 = scmp.ne.s32.totalorder %s156, %s172
    %p174 = scmp.eq.s32.totalorder %s17, 0
    %p175 = por %p173, %p174
    %p176 = scmp.le.s32.totalorder 1, %s11
    %p177 = scmp.lt.s32.totalorder %s11, 5
    %p178 = pnand %p176, %p177
    %p179 = pneg %p178
    // Predicated region
    $region9: #{af_basic_block_forward.3} parent=5 // pred_check
      _
    $region10: #{af_basic_block_forward.3} parent=5 // pred_check_branch
      %181 = sbr.rel (%p178) target = $region12
    $region11: #{af_basic_block_forward.3} parent=5 // pred_region
      %s182 = ssub.s32 %s11, 1
      // Predicated region
      $region13: #{af_basic_block_forward.3} parent=11 // pred_check
        %p183 = pneg %p98
      $region14: #{af_basic_block_forward.3} parent=11 // pred_check_branch
        %185 = sbr.rel (%p183) target = $region16
      $region15: #{af_basic_block_forward.3} parent=11 // pred_region
        _
      $region16: #{af_basic_block_forward.3} parent=11 // pred_fallthru
        _
      // Predicated region
      $region17: #{af_basic_block_forward.3} parent=11 // pred_check
        %p186 = pneg %p119
      $region18: #{af_basic_block_forward.3} parent=11 // pred_check_branch
        %188 = sbr.rel (%p186) target = $region20
      $region19: #{af_basic_block_forward.3} parent=11 // pred_region
        _
      $region20: #{af_basic_block_forward.3} parent=11 // pred_fallthru
        _
      // Predicated region
      $region21: #{af_basic_block_forward.3} parent=11 // pred_check
        %p189 = pneg %p140
      $region22: #{af_basic_block_forward.3} parent=11 // pred_check_branch
        %191 = sbr.rel (%p189) target = $region24
      $region23: #{af_basic_block_forward.3} parent=11 // pred_region
        _
      $region24: #{af_basic_block_forward.3} parent=11 // pred_fallthru
        _
    $region12: #{af_basic_block_forward.3} parent=5 // pred_fallthru
      _
    %p192 = scmp.lt.s32.totalorder %s11, 4
    // Predicated region
    $region25: #{af_basic_block_forward.3} parent=5 // pred_check
      %p193 = pneg %p192
    $region26: #{af_basic_block_forward.3} parent=5 // pred_check_branch
      %195 = sbr.rel (%p193) target = $region28
    $region27: #{af_basic_block_forward.3} parent=5 // pred_region
      // Predicated region
      $region29: #{af_basic_block_forward.3} parent=27 // pred_check
        %p196 = pneg %p43
      $region30: #{af_basic_block_forward.3} parent=27 // pred_check_branch
        %198 = sbr.rel (%p196) target = $region32
      $region31: #{af_basic_block_forward.3} parent=27 // pred_region
        %p199 = scmp.lt.s32.totalorder %s18, 1
        %s200 = scalar_select %p199, %s18, 1
        %s201 = smul.addr %s200, 32
        %s202 = smul.addr %s201, 4
        %s203 = scalar_lea.vmem %s0, %s202
      $region32: #{af_basic_block_forward.3} parent=27 // pred_fallthru
        _
      // Predicated region
      $region33: #{af_basic_block_forward.3} parent=27 // pred_check
        %p204 = pneg %p71
      $region34: #{af_basic_block_forward.3} parent=27 // pred_check_branch
        %206 = sbr.rel (%p204) target = $region36
      $region35: #{af_basic_block_forward.3} parent=27 // pred_region
        %s207 = smul.u32 8, %s19
        %p208 = scmp.lt.s32.totalorder %s18, 1
        %s209 = scalar_select %p208, %s18, 1
        %p210 = scmp.lt.s32.totalorder %s207, 15
        %s211 = scalar_select %p210, %s207, 15
        %s212 = smul.addr %s211, 2
        %s213 = smul.addr %s209, 32
        %s214 = sadd.s32 %s212, %s213
        %s215 = smul.addr %s214, 4
        %s216 = scalar_lea.vmem %s1, %s215
        %s217 = smul.u32 8, %s19
      $region36: #{af_basic_block_forward.3} parent=27 // pred_fallthru
        _
    $region28: #{af_basic_block_forward.3} parent=5 // pred_fallthru
      _
    %p218 = scmp.le.s32.totalorder 1, %s11
    %p219 = scmp.lt.s32.totalorder %s11, 5
    %p220 = pnand %p218, %p219
    %p221 = pneg %p220
    // Predicated region
    $region37: #{af_basic_block_forward.3} parent=5 // pred_check
      _
    $region38: #{af_basic_block_forward.3} parent=5 // pred_check_branch
      %223 = sbr.rel (%p220) target = $region40
    $region39: #{af_basic_block_forward.3} parent=5 // pred_region
      %s224 = ssub.s32 %s11, 1
      %p225 = scmp.lt.s32.totalorder %s20, 1
      %s226 = scalar_select %p225, %s20, 1
      %s227 = smul.addr %s226, 32
      %s228 = smul.addr %s227, 4
      %s229 = scalar_lea.vmem %s0, %s228
      %p230 = pneg %p49
      %p231 = pneg %p46
      %s232 = smul.u32 8, %s21
      %p233 = scmp.lt.s32.totalorder %s20, 1
      %s234 = scalar_select %p233, %s20, 1
      %p235 = scmp.lt.s32.totalorder %s232, 15
      %s236 = scalar_select %p235, %s232, 15
      %s237 = smul.addr %s236, 2
      %s238 = smul.addr %s234, 32
      %s239 = sadd.s32 %s237, %s238
      %s240 = smul.addr %s239, 4
      %s241 = scalar_lea.vmem %s1, %s240
      %p242 = pneg %p77
      %p243 = pneg %p74
      %p244 = pneg %p98
      %p245 = pneg %p95
      %p246 = pneg %p119
      %p247 = pneg %p116
      %p248 = pneg %p140
      %p249 = pneg %p137
      %p250 = pneg %p168
      %p251 = pneg %p165
      %s252 = smul.u32 8, %s21
      %p253 = scmp.lt.s32.totalorder %s20, 1
      %s254 = scalar_select %p253, %s20, 1
      %p255 = scmp.lt.s32.totalorder %s252, 15
      %s256 = scalar_select %p255, %s252, 15
      %s257 = smul.addr %s256, 2
      %s258 = smul.addr %s254, 32
      %s259 = sadd.s32 %s257, %s258
      %s260 = smul.addr %s259, 8
      %s261 = scalar_lea.vmem %s5, %s260
      %p262 = scmp.lt.s32.totalorder %s20, 1
      %s263 = scalar_select %p262, %s20, 1
      %s264 = smul.addr %s263, 32
      %s265 = smul.addr %s264, 4
      %s266 = scalar_lea.vmem %s0, %s265
      %s267 = smul.u32 8, %s21
      %p268 = scmp.lt.s32.totalorder %s20, 1
      %s269 = scalar_select %p268, %s20, 1
      %p270 = scmp.lt.s32.totalorder %s267, 15
      %s271 = scalar_select %p270, %s267, 15
      %s272 = smul.addr %s271, 2
      %s273 = smul.addr %s269, 32
      %s274 = sadd.s32 %s272, %s273
      %s275 = smul.addr %s274, 4
      %s276 = scalar_lea.vmem %s1, %s275
      %s277 = smul.u32 8, %s21
      %s278 = smul.u32 8, %s21
      %p279 = scmp.lt.s32.totalorder %s20, 1
      %s280 = scalar_select %p279, %s20, 1
      %p281 = scmp.lt.s32.totalorder %s278, 15
      %s282 = scalar_select %p281, %s278, 15
      %s283 = smul.addr %s282, 2
      %s284 = smul.addr %s280, 32
      %s285 = sadd.s32 %s283, %s284
      %s286 = smul.addr %s285, 8
      %s287 = scalar_lea.vmem %s5, %s286
      %s288 = smul.u32 8, %s21
      %p290 = scmp.eq.s32.totalorder %s21, 0
      // Predicated region
      $region41: #{af_basic_block_forward.3} parent=39 // pred_check
        %p291 = pneg %p290
      $region42: #{af_basic_block_forward.3} parent=39 // pred_check_branch
        %293 = sbr.rel (%p291) target = $region44
      $region43: #{af_basic_block_forward.3} parent=39 // pred_region
        %vm294 = vcmask 191488
        %295 = vst.msk [vmem:[#allocation2] sm:$0xf] %vm294, 0
        %296 = vst.msk [vmem:[#allocation2 + $0x4] sm:$0xf] %vm294, 0
        %297 = vst.msk [vmem:[#allocation2 + $0x8] sm:$0xf] %vm294, 0
        %298 = vst.msk [vmem:[#allocation2 + $0xc] sm:$0xf] %vm294, 0
        %299 = vst.msk [vmem:[#allocation2 + $0x10] sm:$0xf] %vm294, 0
        %300 = vst.msk [vmem:[#allocation2 + $0x14] sm:$0xf] %vm294, 0
        %301 = vst.msk [vmem:[#allocation2 + $0x18] sm:$0xf] %vm294, 0
        %302 = vst.msk [vmem:[#allocation2 + $0x1c] sm:$0xf] %vm294, 0
        %303 = vst.msk [vmem:[#allocation2 + $0x20] sm:$0xf] %vm294, 0
        %304 = vst.msk [vmem:[#allocation2 + $0x24] sm:$0xf] %vm294, 0
        %305 = vst.msk [vmem:[#allocation2 + $0x28] sm:$0xf] %vm294, 0
        %306 = vst.msk [vmem:[#allocation2 + $0x2c] sm:$0xf] %vm294, 0
        %307 = vst.msk [vmem:[#allocation2 + $0x30] sm:$0xf] %vm294, 0
        %308 = vst.msk [vmem:[#allocation2 + $0x34] sm:$0xf] %vm294, 0
        %309 = vst.msk [vmem:[#allocation2 + $0x38] sm:$0xf] %vm294, 0
        %310 = vst.msk [vmem:[#allocation2 + $0x3c] sm:$0xf] %vm294, 0
        %311 = vst.msk [vmem:[#allocation2 + $0x40] sm:$0xf] %vm294, 0
        %312 = vst.msk [vmem:[#allocation2 + $0x44] sm:$0xf] %vm294, 0
        %313 = vst.msk [vmem:[#allocation2 + $0x48] sm:$0xf] %vm294, 0
        %314 = vst.msk [vmem:[#allocation2 + $0x4c] sm:$0xf] %vm294, 0
        %315 = vst.msk [vmem:[#allocation2 + $0x50] sm:$0xf] %vm294, 0
        %316 = vst.msk [vmem:[#allocation2 + $0x54] sm:$0xf] %vm294, 0
        %317 = vst.msk [vmem:[#allocation2 + $0x58] sm:$0xf] %vm294, 0
        %318 = vst.msk [vmem:[#allocation2 + $0x5c] sm:$0xf] %vm294, 0
        %319 = vst.msk [vmem:[#allocation2 + $0x60] sm:$0xf] %vm294, 0
        %320 = vst.msk [vmem:[#allocation2 + $0x64] sm:$0xf] %vm294, 0
        %321 = vst.msk [vmem:[#allocation2 + $0x68] sm:$0xf] %vm294, 0
        %322 = vst.msk [vmem:[#allocation2 + $0x6c] sm:$0xf] %vm294, 0
        %323 = vst.msk [vmem:[#allocation2 + $0x70] sm:$0xf] %vm294, 0
        %324 = vst.msk [vmem:[#allocation2 + $0x74] sm:$0xf] %vm294, 0
        %325 = vst.msk [vmem:[#allocation2 + $0x78] sm:$0xf] %vm294, 0
        %326 = vst.msk [vmem:[#allocation2 + $0x7c] sm:$0xf] %vm294, 0
        %327 = vst.msk [vmem:[#allocation2 + $0x80] sm:$0xf] %vm294, 0
        %328 = vst.msk [vmem:[#allocation2 + $0x84] sm:$0xf] %vm294, 0
        %329 = vst.msk [vmem:[#allocation2 + $0x88] sm:$0xf] %vm294, 0
        %330 = vst.msk [vmem:[#allocation2 + $0x8c] sm:$0xf] %vm294, 0
        %331 = vst.msk [vmem:[#allocation2 + $0x90] sm:$0xf] %vm294, 0
        %332 = vst.msk [vmem:[#allocation2 + $0x94] sm:$0xf] %vm294, 0
        %333 = vst.msk [vmem:[#allocation2 + $0x98] sm:$0xf] %vm294, 0
        %334 = vst.msk [vmem:[#allocation2 + $0x9c] sm:$0xf] %vm294, 0
        %335 = vst.msk [vmem:[#allocation2 + $0xa0] sm:$0xf] %vm294, 0
        %336 = vst.msk [vmem:[#allocation2 + $0xa4] sm:$0xf] %vm294, 0
        %337 = vst.msk [vmem:[#allocation2 + $0xa8] sm:$0xf] %vm294, 0
        %338 = vst.msk [vmem:[#allocation2 + $0xac] sm:$0xf] %vm294, 0
        %339 = vst.msk [vmem:[#allocation2 + $0xb0] sm:$0xf] %vm294, 0
        %340 = vst.msk [vmem:[#allocation2 + $0xb4] sm:$0xf] %vm294, 0
        %341 = vst.msk [vmem:[#allocation2 + $0xb8] sm:$0xf] %vm294, 0
        %342 = vst.msk [vmem:[#allocation2 + $0xbc] sm:$0xf] %vm294, 0
        %343 = vst.msk [vmem:[#allocation2 + $0xc0] sm:$0xf] %vm294, 0
        %344 = vst.msk [vmem:[#allocation2 + $0xc4] sm:$0xf] %vm294, 0
        %345 = vst.msk [vmem:[#allocation2 + $0xc8] sm:$0xf] %vm294, 0
        %346 = vst.msk [vmem:[#allocation2 + $0xcc] sm:$0xf] %vm294, 0
        %347 = vst.msk [vmem:[#allocation2 + $0xd0] sm:$0xf] %vm294, 0
        %348 = vst.msk [vmem:[#allocation2 + $0xd4] sm:$0xf] %vm294, 0
        %v349 = vld [vmem:[%s266] sm:$0xf]
        %v350 = vld [vmem:[%s266 + $0x4] sm:$0xf]
        %v351 = vld [vmem:[%s266 + $0x8] sm:$0xf]
        %v352 = vld [vmem:[%s266 + $0xc] sm:$0xf]
        %v353 = vld [vmem:[%s266 + $0x10] sm:$0xf]
        %v354 = vld [vmem:[%s266 + $0x14] sm:$0xf]
        %v355 = vld [vmem:[%s266 + $0x18] sm:$0xf]
        %v356 = vld [vmem:[%s266 + $0x1c] sm:$0xf]
        %v357 = vld [vmem:[%s266 + $0x20] sm:$0xf]
        %v358 = vld [vmem:[%s266 + $0x24] sm:$0xf]
        %v359 = vld [vmem:[%s266 + $0x28] sm:$0xf]
        %v360 = vld [vmem:[%s266 + $0x2c] sm:$0xf]
        %v361 = vld [vmem:[%s266 + $0x30] sm:$0xf]
        %v362 = vld [vmem:[%s266 + $0x34] sm:$0xf]
        %v363 = vld [vmem:[%s266 + $0x38] sm:$0xf]
        %v364 = vld [vmem:[%s266 + $0x3c] sm:$0xf]
        %v365 = vld [vmem:[%s266 + $0x40] sm:$0xf]
        %v366 = vld [vmem:[%s266 + $0x44] sm:$0xf]
        %v367 = vld [vmem:[%s266 + $0x48] sm:$0xf]
        %v368 = vld [vmem:[%s266 + $0x4c] sm:$0xf]
        %v369 = vld [vmem:[%s266 + $0x50] sm:$0xf]
        %v370 = vld [vmem:[%s266 + $0x54] sm:$0xf]
        %v371 = vld [vmem:[%s266 + $0x58] sm:$0xf]
        %v372 = vld [vmem:[%s266 + $0x5c] sm:$0xf]
        %v373 = vld [vmem:[%s266 + $0x60] sm:$0xf]
        %v374 = vld [vmem:[%s266 + $0x64] sm:$0xf]
        %v375 = vld [vmem:[%s266 + $0x68] sm:$0xf]
        %v376 = vld [vmem:[%s266 + $0x6c] sm:$0xf]
        %v377 = vld [vmem:[%s266 + $0x70] sm:$0xf]
        %v378 = vld [vmem:[%s266 + $0x74] sm:$0xf]
        %v379 = vld [vmem:[%s266 + $0x78] sm:$0xf]
        %v380 = vld [vmem:[%s266 + $0x7c] sm:$0xf]
        %vm381 = vsmask.f32 256
        %vm382 = vsmask.f32 4368
        %vm383 = vmor %vm381, %vm382
        %v385 = vshrl.u32 %v349, 16
        %v387 = vrot.slane %v385, 7
        %v388 = vshll.u32 %v349, 16
        %v390 = vor.u32 %v387, %v388
        %v391 = vrot.slane %v387, 4
        %v393 = vshrl.u32 %v350, 16
        %v395 = vrot.slane %v393, 7
        %v396 = vshll.u32 %v350, 16
        %v398 = vor.u32 %v395, %v396
        %v399 = vsel %vm383, %v391, %v398
        %v400 = vrot.slane %v395, 4
        %v402 = vshrl.u32 %v351, 16
        %v404 = vrot.slane %v402, 7
        %v405 = vshll.u32 %v351, 16
        %v407 = vor.u32 %v404, %v405
        %v408 = vrot.slane %v404, 4
        %v410 = vshrl.u32 %v352, 16
        %v412 = vrot.slane %v410, 7
        %v413 = vshll.u32 %v352, 16
        %v415 = vor.u32 %v412, %v413
        %v416 = vsel %vm383, %v408, %v415
        %v417 = vrot.slane %v412, 4
        %v419 = vshrl.u32 %v353, 16
        %v421 = vrot.slane %v419, 7
        %v422 = vshll.u32 %v353, 16
        %v424 = vor.u32 %v421, %v422
        %v425 = vrot.slane %v421, 4
        %v427 = vshrl.u32 %v354, 16
        %v429 = vrot.slane %v427, 7
        %v430 = vshll.u32 %v354, 16
        %v432 = vor.u32 %v429, %v430
        %v433 = vsel %vm383, %v425, %v432
        %v434 = vrot.slane %v429, 4
        %v436 = vshrl.u32 %v355, 16
        %v438 = vrot.slane %v436, 7
        %v439 = vshll.u32 %v355, 16
        %v441 = vor.u32 %v438, %v439
        %v442 = vrot.slane %v438, 4
        %v444 = vshrl.u32 %v356, 16
        %v446 = vrot.slane %v444, 7
        %v447 = vshll.u32 %v356, 16
        %v449 = vor.u32 %v446, %v447
        %v450 = vsel %vm383, %v442, %v449
        %v451 = vrot.slane %v446, 4
        %v453 = vshrl.u32 %v357, 16
        %v455 = vrot.slane %v453, 7
        %v456 = vshll.u32 %v357, 16
        %v458 = vor.u32 %v455, %v456
        %v459 = vrot.slane %v455, 4
        %v461 = vshrl.u32 %v358, 16
        %v463 = vrot.slane %v461, 7
        %v464 = vshll.u32 %v358, 16
        %v466 = vor.u32 %v463, %v464
        %v467 = vsel %vm383, %v459, %v466
        %v468 = vrot.slane %v463, 4
        %v470 = vshrl.u32 %v359, 16
        %v472 = vrot.slane %v470, 7
        %v473 = vshll.u32 %v359, 16
        %v475 = vor.u32 %v472, %v473
        %v476 = vrot.slane %v472, 4
        %v478 = vshrl.u32 %v360, 16
        %v480 = vrot.slane %v478, 7
        %v481 = vshll.u32 %v360, 16
        %v483 = vor.u32 %v480, %v481
        %v484 = vsel %vm383, %v476, %v483
        %v485 = vrot.slane %v480, 4
        %v487 = vshrl.u32 %v361, 16
        %v489 = vrot.slane %v487, 7
        %v490 = vshll.u32 %v361, 16
        %v492 = vor.u32 %v489, %v490
        %v493 = vrot.slane %v489, 4
        %v495 = vshrl.u32 %v362, 16
        %v497 = vrot.slane %v495, 7
        %v498 = vshll.u32 %v362, 16
        %v500 = vor.u32 %v497, %v498
        %v501 = vsel %vm383, %v493, %v500
        %v502 = vrot.slane %v497, 4
        %v504 = vshrl.u32 %v363, 16
        %v506 = vrot.slane %v504, 7
        %v507 = vshll.u32 %v363, 16
        %v509 = vor.u32 %v506, %v507
        %v510 = vrot.slane %v506, 4
        %v512 = vshrl.u32 %v364, 16
        %v514 = vrot.slane %v512, 7
        %v515 = vshll.u32 %v364, 16
        %v517 = vor.u32 %v514, %v515
        %v518 = vsel %vm383, %v510, %v517
        %v519 = vrot.slane %v514, 4
        %v521 = vshrl.u32 %v365, 16
        %v523 = vrot.slane %v521, 7
        %v524 = vshll.u32 %v365, 16
        %v526 = vor.u32 %v523, %v524
        %v527 = vrot.slane %v523, 4
        %v529 = vshrl.u32 %v366, 16
        %v531 = vrot.slane %v529, 7
        %v532 = vshll.u32 %v366, 16
        %v534 = vor.u32 %v531, %v532
        %v535 = vsel %vm383, %v527, %v534
        %v536 = vrot.slane %v531, 4
        %v538 = vshrl.u32 %v367, 16
        %v540 = vrot.slane %v538, 7
        %v541 = vshll.u32 %v367, 16
        %v543 = vor.u32 %v540, %v541
        %v544 = vrot.slane %v540, 4
        %v546 = vshrl.u32 %v368, 16
        %v548 = vrot.slane %v546, 7
        %v549 = vshll.u32 %v368, 16
        %v551 = vor.u32 %v548, %v549
        %v552 = vsel %vm383, %v544, %v551
        %v553 = vrot.slane %v548, 4
        %v555 = vshrl.u32 %v369, 16
        %v557 = vrot.slane %v555, 7
        %v558 = vshll.u32 %v369, 16
        %v560 = vor.u32 %v557, %v558
        %v561 = vrot.slane %v557, 4
        %v563 = vshrl.u32 %v370, 16
        %v565 = vrot.slane %v563, 7
        %v566 = vshll.u32 %v370, 16
        %v568 = vor.u32 %v565, %v566
        %v569 = vsel %vm383, %v561, %v568
        %v570 = vrot.slane %v565, 4
        %v572 = vshrl.u32 %v371, 16
        %v574 = vrot.slane %v572, 7
        %v575 = vshll.u32 %v371, 16
        %v577 = vor.u32 %v574, %v575
        %v578 = vrot.slane %v574, 4
        %v580 = vshrl.u32 %v372, 16
        %v582 = vrot.slane %v580, 7
        %v583 = vshll.u32 %v372, 16
        %v585 = vor.u32 %v582, %v583
        %v586 = vsel %vm383, %v578, %v585
        %v587 = vrot.slane %v582, 4
        %v589 = vshrl.u32 %v373, 16
        %v591 = vrot.slane %v589, 7
        %v592 = vshll.u32 %v373, 16
        %v594 = vor.u32 %v591, %v592
        %v595 = vrot.slane %v591, 4
        %v597 = vshrl.u32 %v374, 16
        %v599 = vrot.slane %v597, 7
        %v600 = vshll.u32 %v374, 16
        %v602 = vor.u32 %v599, %v600
        %v603 = vsel %vm383, %v595, %v602
        %v604 = vrot.slane %v599, 4
        %v606 = vshrl.u32 %v375, 16
        %v608 = vrot.slane %v606, 7
        %v609 = vshll.u32 %v375, 16
        %v611 = vor.u32 %v608, %v609
        %v612 = vrot.slane %v608, 4
        %v614 = vshrl.u32 %v376, 16
        %v616 = vrot.slane %v614, 7
        %v617 = vshll.u32 %v376, 16
        %v619 = vor.u32 %v616, %v617
        %v620 = vsel %vm383, %v612, %v619
        %v621 = vrot.slane %v616, 4
        %v623 = vshrl.u32 %v377, 16
        %v625 = vrot.slane %v623, 7
        %v626 = vshll.u32 %v377, 16
        %v628 = vor.u32 %v625, %v626
        %v629 = vrot.slane %v625, 4
        %v631 = vshrl.u32 %v378, 16
        %v633 = vrot.slane %v631, 7
        %v634 = vshll.u32 %v378, 16
        %v636 = vor.u32 %v633, %v634
        %v637 = vsel %vm383, %v629, %v636
        %v638 = vrot.slane %v633, 4
        %v640 = vshrl.u32 %v379, 16
        %v642 = vrot.slane %v640, 7
        %v643 = vshll.u32 %v379, 16
        %v645 = vor.u32 %v642, %v643
        %v646 = vrot.slane %v642, 4
        %v648 = vshrl.u32 %v380, 16
        %v650 = vrot.slane %v648, 7
        %v651 = vshll.u32 %v380, 16
        %v653 = vor.u32 %v650, %v651
        %v654 = vsel %vm383, %v646, %v653
        %v655 = vrot.slane %v650, 4
        %s704 = scalar_lea.vmem [#allocation2], 12
        %vm705 = vcmask 60416
        %vm706 = vsmask.f32 7938
        %vm707 = vmand %vm705, %vm706
        %v708 = vld [vmem:[%s704] sm:$0xf]
        %v709 = vsel %vm707, %v390, %v708
        %710 = vst [vmem:[%s704] sm:$0xf] %v709
        %vm711 = vcmask 60416
        %712 = vst.msk [vmem:[%s704 + $0x4] sm:$0xf] %vm711, %v399
        %vm713 = vcmask 57344
        %vm714 = vmand %vm713, %vm381
        %v715 = vld [vmem:[%s704 + $0x8] sm:$0x1]
        %v716 = vsel %vm714, %v400, %v715
        %717 = vst [vmem:[%s704 + $0x8] sm:$0x1] %v716
        %v718 = vld [vmem:[%s704 + $0xc] sm:$0xf]
        %v719 = vsel %vm707, %v407, %v718
        %720 = vst [vmem:[%s704 + $0xc] sm:$0xf] %v719
        %721 = vst.msk [vmem:[%s704 + $0x10] sm:$0xf] %vm711, %v416
        %v722 = vld [vmem:[%s704 + $0x14] sm:$0x1]
        %v723 = vsel %vm714, %v417, %v722
        %724 = vst [vmem:[%s704 + $0x14] sm:$0x1] %v723
        %v725 = vld [vmem:[%s704 + $0x18] sm:$0xf]
        %v726 = vsel %vm707, %v424, %v725
        %727 = vst [vmem:[%s704 + $0x18] sm:$0xf] %v726
        %728 = vst.msk [vmem:[%s704 + $0x1c] sm:$0xf] %vm711, %v433
        %v729 = vld [vmem:[%s704 + $0x20] sm:$0x1]
        %v730 = vsel %vm714, %v434, %v729
        %731 = vst [vmem:[%s704 + $0x20] sm:$0x1] %v730
        %v732 = vld [vmem:[%s704 + $0x24] sm:$0xf]
        %v733 = vsel %vm707, %v441, %v732
        %734 = vst [vmem:[%s704 + $0x24] sm:$0xf] %v733
        %735 = vst.msk [vmem:[%s704 + $0x28] sm:$0xf] %vm711, %v450
        %v736 = vld [vmem:[%s704 + $0x2c] sm:$0x1]
        %v737 = vsel %vm714, %v451, %v736
        %738 = vst [vmem:[%s704 + $0x2c] sm:$0x1] %v737
        %v739 = vld [vmem:[%s704 + $0x30] sm:$0xf]
        %v740 = vsel %vm707, %v458, %v739
        %741 = vst [vmem:[%s704 + $0x30] sm:$0xf] %v740
        %742 = vst.msk [vmem:[%s704 + $0x34] sm:$0xf] %vm711, %v467
        %v743 = vld [vmem:[%s704 + $0x38] sm:$0x1]
        %v744 = vsel %vm714, %v468, %v743
        %745 = vst [vmem:[%s704 + $0x38] sm:$0x1] %v744
        %v746 = vld [vmem:[%s704 + $0x3c] sm:$0xf]
        %v747 = vsel %vm707, %v475, %v746
        %748 = vst [vmem:[%s704 + $0x3c] sm:$0xf] %v747
        %749 = vst.msk [vmem:[%s704 + $0x40] sm:$0xf] %vm711, %v484
        %v750 = vld [vmem:[%s704 + $0x44] sm:$0x1]
        %v751 = vsel %vm714, %v485, %v750
        %752 = vst [vmem:[%s704 + $0x44] sm:$0x1] %v751
        %v753 = vld [vmem:[%s704 + $0x48] sm:$0xf]
        %v754 = vsel %vm707, %v492, %v753
        %755 = vst [vmem:[%s704 + $0x48] sm:$0xf] %v754
        %756 = vst.msk [vmem:[%s704 + $0x4c] sm:$0xf] %vm711, %v501
        %v757 = vld [vmem:[%s704 + $0x50] sm:$0x1]
        %v758 = vsel %vm714, %v502, %v757
        %759 = vst [vmem:[%s704 + $0x50] sm:$0x1] %v758
        %v760 = vld [vmem:[%s704 + $0x54] sm:$0xf]
        %v761 = vsel %vm707, %v509, %v760
        %762 = vst [vmem:[%s704 + $0x54] sm:$0xf] %v761
        %763 = vst.msk [vmem:[%s704 + $0x58] sm:$0xf] %vm711, %v518
        %v764 = vld [vmem:[%s704 + $0x5c] sm:$0x1]
        %v765 = vsel %vm714, %v519, %v764
        %766 = vst [vmem:[%s704 + $0x5c] sm:$0x1] %v765
        %v767 = vld [vmem:[%s704 + $0x60] sm:$0xf]
        %v768 = vsel %vm707, %v526, %v767
        %769 = vst [vmem:[%s704 + $0x60] sm:$0xf] %v768
        %770 = vst.msk [vmem:[%s704 + $0x64] sm:$0xf] %vm711, %v535
        %v771 = vld [vmem:[%s704 + $0x68] sm:$0x1]
        %v772 = vsel %vm714, %v536, %v771
        %773 = vst [vmem:[%s704 + $0x68] sm:$0x1] %v772
        %v774 = vld [vmem:[%s704 + $0x6c] sm:$0xf]
        %v775 = vsel %vm707, %v543, %v774
        %776 = vst [vmem:[%s704 + $0x6c] sm:$0xf] %v775
        %777 = vst.msk [vmem:[%s704 + $0x70] sm:$0xf] %vm711, %v552
        %v778 = vld [vmem:[%s704 + $0x74] sm:$0x1]
        %v779 = vsel %vm714, %v553, %v778
        %780 = vst [vmem:[%s704 + $0x74] sm:$0x1] %v779
        %v781 = vld [vmem:[%s704 + $0x78] sm:$0xf]
        %v782 = vsel %vm707, %v560, %v781
        %783 = vst [vmem:[%s704 + $0x78] sm:$0xf] %v782
        %784 = vst.msk [vmem:[%s704 + $0x7c] sm:$0xf] %vm711, %v569
        %v785 = vld [vmem:[%s704 + $0x80] sm:$0x1]
        %v786 = vsel %vm714, %v570, %v785
        %787 = vst [vmem:[%s704 + $0x80] sm:$0x1] %v786
        %v788 = vld [vmem:[%s704 + $0x84] sm:$0xf]
        %v789 = vsel %vm707, %v577, %v788
        %790 = vst [vmem:[%s704 + $0x84] sm:$0xf] %v789
        %791 = vst.msk [vmem:[%s704 + $0x88] sm:$0xf] %vm711, %v586
        %v792 = vld [vmem:[%s704 + $0x8c] sm:$0x1]
        %v793 = vsel %vm714, %v587, %v792
        %794 = vst [vmem:[%s704 + $0x8c] sm:$0x1] %v793
        %v795 = vld [vmem:[%s704 + $0x90] sm:$0xf]
        %v796 = vsel %vm707, %v594, %v795
        %797 = vst [vmem:[%s704 + $0x90] sm:$0xf] %v796
        %798 = vst.msk [vmem:[%s704 + $0x94] sm:$0xf] %vm711, %v603
        %v799 = vld [vmem:[%s704 + $0x98] sm:$0x1]
        %v800 = vsel %vm714, %v604, %v799
        %801 = vst [vmem:[%s704 + $0x98] sm:$0x1] %v800
        %v802 = vld [vmem:[%s704 + $0x9c] sm:$0xf]
        %v803 = vsel %vm707, %v611, %v802
        %804 = vst [vmem:[%s704 + $0x9c] sm:$0xf] %v803
        %805 = vst.msk [vmem:[%s704 + $0xa0] sm:$0xf] %vm711, %v620
        %v806 = vld [vmem:[%s704 + $0xa4] sm:$0x1]
        %v807 = vsel %vm714, %v621, %v806
        %808 = vst [vmem:[%s704 + $0xa4] sm:$0x1] %v807
        %v809 = vld [vmem:[%s704 + $0xa8] sm:$0xf]
        %v810 = vsel %vm707, %v628, %v809
        %811 = vst [vmem:[%s704 + $0xa8] sm:$0xf] %v810
        %812 = vst.msk [vmem:[%s704 + $0xac] sm:$0xf] %vm711, %v637
        %v813 = vld [vmem:[%s704 + $0xb0] sm:$0x1]
        %v814 = vsel %vm714, %v638, %v813
        %815 = vst [vmem:[%s704 + $0xb0] sm:$0x1] %v814
        %v816 = vld [vmem:[%s704 + $0xb4] sm:$0xf]
        %v817 = vsel %vm707, %v645, %v816
        %818 = vst [vmem:[%s704 + $0xb4] sm:$0xf] %v817
        %819 = vst.msk [vmem:[%s704 + $0xb8] sm:$0xf] %vm711, %v654
        %v820 = vld [vmem:[%s704 + $0xbc] sm:$0x1]
        %v821 = vsel %vm714, %v655, %v820
        %822 = vst [vmem:[%s704 + $0xbc] sm:$0x1] %v821
        %855 = vrot.lane.b32.xlu0 %v349, 8
        %v856 = vpop.permute.xlu0 %855
        %857 = vrot.lane.b32.xlu0 %v350, 8
        %v858 = vpop.permute.xlu0 %857
        %859 = vrot.lane.b32.xlu0 %v351, 8
        %v860 = vpop.permute.xlu0 %859
        %861 = vrot.lane.b32.xlu0 %v352, 8
        %v862 = vpop.permute.xlu0 %861
        %863 = vrot.lane.b32.xlu0 %v353, 8
        %v864 = vpop.permute.xlu0 %863
        %865 = vrot.lane.b32.xlu0 %v354, 8
        %v866 = vpop.permute.xlu0 %865
        %867 = vrot.lane.b32.xlu0 %v355, 8
        %v868 = vpop.permute.xlu0 %867
        %869 = vrot.lane.b32.xlu0 %v356, 8
        %v870 = vpop.permute.xlu0 %869
        %871 = vrot.lane.b32.xlu0 %v357, 8
        %v872 = vpop.permute.xlu0 %871
        %873 = vrot.lane.b32.xlu0 %v358, 8
        %v874 = vpop.permute.xlu0 %873
        %875 = vrot.lane.b32.xlu0 %v359, 8
        %v876 = vpop.permute.xlu0 %875
        %877 = vrot.lane.b32.xlu0 %v360, 8
        %v878 = vpop.permute.xlu0 %877
        %879 = vrot.lane.b32.xlu0 %v361, 8
        %v880 = vpop.permute.xlu0 %879
        %881 = vrot.lane.b32.xlu0 %v362, 8
        %v882 = vpop.permute.xlu0 %881
        %883 = vrot.lane.b32.xlu0 %v363, 8
        %v884 = vpop.permute.xlu0 %883
        %885 = vrot.lane.b32.xlu0 %v364, 8
        %v886 = vpop.permute.xlu0 %885
        %887 = vrot.lane.b32.xlu0 %v365, 8
        %v888 = vpop.permute.xlu0 %887
        %889 = vrot.lane.b32.xlu0 %v366, 8
        %v890 = vpop.permute.xlu0 %889
        %891 = vrot.lane.b32.xlu0 %v367, 8
        %v892 = vpop.permute.xlu0 %891
        %893 = vrot.lane.b32.xlu0 %v368, 8
        %v894 = vpop.permute.xlu0 %893
        %895 = vrot.lane.b32.xlu0 %v369, 8
        %v896 = vpop.permute.xlu0 %895
        %897 = vrot.lane.b32.xlu0 %v370, 8
        %v898 = vpop.permute.xlu0 %897
        %899 = vrot.lane.b32.xlu0 %v371, 8
        %v900 = vpop.permute.xlu0 %899
        %901 = vrot.lane.b32.xlu0 %v372, 8
        %v902 = vpop.permute.xlu0 %901
        %903 = vrot.lane.b32.xlu0 %v373, 8
        %v904 = vpop.permute.xlu0 %903
        %905 = vrot.lane.b32.xlu0 %v374, 8
        %v906 = vpop.permute.xlu0 %905
        %907 = vrot.lane.b32.xlu0 %v375, 8
        %v908 = vpop.permute.xlu0 %907
        %909 = vrot.lane.b32.xlu0 %v376, 8
        %v910 = vpop.permute.xlu0 %909
        %911 = vrot.lane.b32.xlu0 %v377, 8
        %v912 = vpop.permute.xlu0 %911
        %913 = vrot.lane.b32.xlu0 %v378, 8
        %v914 = vpop.permute.xlu0 %913
        %915 = vrot.lane.b32.xlu0 %v379, 8
        %v916 = vpop.permute.xlu0 %915
        %917 = vrot.lane.b32.xlu0 %v380, 8
        %v918 = vpop.permute.xlu0 %917
        %vm951 = vcmask 126016
        %952 = vst.msk [vmem:[%s704] sm:$0xf] %vm951, %v856
        %953 = vst.msk [vmem:[%s704 + $0x4] sm:$0xf] %vm951, %v858
        %954 = vst.msk [vmem:[%s704 + $0xc] sm:$0xf] %vm951, %v860
        %955 = vst.msk [vmem:[%s704 + $0x10] sm:$0xf] %vm951, %v862
        %956 = vst.msk [vmem:[%s704 + $0x18] sm:$0xf] %vm951, %v864
        %957 = vst.msk [vmem:[%s704 + $0x1c] sm:$0xf] %vm951, %v866
        %958 = vst.msk [vmem:[%s704 + $0x24] sm:$0xf] %vm951, %v868
        %959 = vst.msk [vmem:[%s704 + $0x28] sm:$0xf] %vm951, %v870
        %960 = vst.msk [vmem:[%s704 + $0x30] sm:$0xf] %vm951, %v872
        %961 = vst.msk [vmem:[%s704 + $0x34] sm:$0xf] %vm951, %v874
        %962 = vst.msk [vmem:[%s704 + $0x3c] sm:$0xf] %vm951, %v876
        %963 = vst.msk [vmem:[%s704 + $0x40] sm:$0xf] %vm951, %v878
        %964 = vst.msk [vmem:[%s704 + $0x48] sm:$0xf] %vm951, %v880
        %965 = vst.msk [vmem:[%s704 + $0x4c] sm:$0xf] %vm951, %v882
        %966 = vst.msk [vmem:[%s704 + $0x54] sm:$0xf] %vm951, %v884
        %967 = vst.msk [vmem:[%s704 + $0x58] sm:$0xf] %vm951, %v886
        %968 = vst.msk [vmem:[%s704 + $0x60] sm:$0xf] %vm951, %v888
        %969 = vst.msk [vmem:[%s704 + $0x64] sm:$0xf] %vm951, %v890
        %970 = vst.msk [vmem:[%s704 + $0x6c] sm:$0xf] %vm951, %v892
        %971 = vst.msk [vmem:[%s704 + $0x70] sm:$0xf] %vm951, %v894
        %972 = vst.msk [vmem:[%s704 + $0x78] sm:$0xf] %vm951, %v896
        %973 = vst.msk [vmem:[%s704 + $0x7c] sm:$0xf] %vm951, %v898
        %974 = vst.msk [vmem:[%s704 + $0x84] sm:$0xf] %vm951, %v900
        %975 = vst.msk [vmem:[%s704 + $0x88] sm:$0xf] %vm951, %v902
        %976 = vst.msk [vmem:[%s704 + $0x90] sm:$0xf] %vm951, %v904
        %977 = vst.msk [vmem:[%s704 + $0x94] sm:$0xf] %vm951, %v906
        %978 = vst.msk [vmem:[%s704 + $0x9c] sm:$0xf] %vm951, %v908
        %979 = vst.msk [vmem:[%s704 + $0xa0] sm:$0xf] %vm951, %v910
        %980 = vst.msk [vmem:[%s704 + $0xa8] sm:$0xf] %vm951, %v912
        %981 = vst.msk [vmem:[%s704 + $0xac] sm:$0xf] %vm951, %v914
        %982 = vst.msk [vmem:[%s704 + $0xb4] sm:$0xf] %vm951, %v916
        %983 = vst.msk [vmem:[%s704 + $0xb8] sm:$0xf] %vm951, %v918
        %vm984 = vsmask.f32 3328
        %vm985 = vsmask.f32 7440
        %vm986 = vmor %vm984, %vm985
        %v987 = vrot.slane %v385, 4
        %v988 = vrot.slane %v388, 5
        %v989 = vor.u32 %v987, %v988
        %v990 = vrot.slane %v989, 4
        %v991 = vrot.slane %v396, 5
        %v992 = vsel %vm986, %v990, %v991
        %v993 = vrot.slane %v393, 4
        %v994 = vor.u32 %v993, %v991
        %v995 = vrot.slane %v994, 4
        %v996 = vrot.slane %v402, 4
        %v997 = vrot.slane %v405, 5
        %v998 = vor.u32 %v996, %v997
        %v999 = vrot.slane %v998, 4
        %v1000 = vrot.slane %v413, 5
        %v1001 = vsel %vm986, %v999, %v1000
        %v1002 = vrot.slane %v410, 4
        %v1003 = vor.u32 %v1002, %v1000
        %v1004 = vrot.slane %v1003, 4
        %v1005 = vrot.slane %v419, 4
        %v1006 = vrot.slane %v422, 5
        %v1007 = vor.u32 %v1005, %v1006
        %v1008 = vrot.slane %v1007, 4
        %v1009 = vrot.slane %v430, 5
        %v1010 = vsel %vm986, %v1008, %v1009
        %v1011 = vrot.slane %v427, 4
        %v1012 = vor.u32 %v1011, %v1009
        %v1013 = vrot.slane %v1012, 4
        %v1014 = vrot.slane %v436, 4
        %v1015 = vrot.slane %v439, 5
        %v1016 = vor.u32 %v1014, %v1015
        %v1017 = vrot.slane %v1016, 4
        %v1018 = vrot.slane %v447, 5
        %v1019 = vsel %vm986, %v1017, %v1018
        %v1020 = vrot.slane %v444, 4
        %v1021 = vor.u32 %v1020, %v1018
        %v1022 = vrot.slane %v1021, 4
        %v1023 = vrot.slane %v453, 4
        %v1024 = vrot.slane %v456, 5
        %v1025 = vor.u32 %v1023, %v1024
        %v1026 = vrot.slane %v1025, 4
        %v1027 = vrot.slane %v464, 5
        %v1028 = vsel %vm986, %v1026, %v1027
        %v1029 = vrot.slane %v461, 4
        %v1030 = vor.u32 %v1029, %v1027
        %v1031 = vrot.slane %v1030, 4
        %v1032 = vrot.slane %v470, 4
        %v1033 = vrot.slane %v473, 5
        %v1034 = vor.u32 %v1032, %v1033
        %v1035 = vrot.slane %v1034, 4
        %v1036 = vrot.slane %v481, 5
        %v1037 = vsel %vm986, %v1035, %v1036
        %v1038 = vrot.slane %v478, 4
        %v1039 = vor.u32 %v1038, %v1036
        %v1040 = vrot.slane %v1039, 4
        %v1041 = vrot.slane %v487, 4
        %v1042 = vrot.slane %v490, 5
        %v1043 = vor.u32 %v1041, %v1042
        %v1044 = vrot.slane %v1043, 4
        %v1045 = vrot.slane %v498, 5
        %v1046 = vsel %vm986, %v1044, %v1045
        %v1047 = vrot.slane %v495, 4
        %v1048 = vor.u32 %v1047, %v1045
        %v1049 = vrot.slane %v1048, 4
        %v1050 = vrot.slane %v504, 4
        %v1051 = vrot.slane %v507, 5
        %v1052 = vor.u32 %v1050, %v1051
        %v1053 = vrot.slane %v1052, 4
        %v1054 = vrot.slane %v515, 5
        %v1055 = vsel %vm986, %v1053, %v1054
        %v1056 = vrot.slane %v512, 4
        %v1057 = vor.u32 %v1056, %v1054
        %v1058 = vrot.slane %v1057, 4
        %v1059 = vrot.slane %v521, 4
        %v1060 = vrot.slane %v524, 5
        %v1061 = vor.u32 %v1059, %v1060
        %v1062 = vrot.slane %v1061, 4
        %v1063 = vrot.slane %v532, 5
        %v1064 = vsel %vm986, %v1062, %v1063
        %v1065 = vrot.slane %v529, 4
        %v1066 = vor.u32 %v1065, %v1063
        %v1067 = vrot.slane %v1066, 4
        %v1068 = vrot.slane %v538, 4
        %v1069 = vrot.slane %v541, 5
        %v1070 = vor.u32 %v1068, %v1069
        %v1071 = vrot.slane %v1070, 4
        %v1072 = vrot.slane %v549, 5
        %v1073 = vsel %vm986, %v1071, %v1072
        %v1074 = vrot.slane %v546, 4
        %v1075 = vor.u32 %v1074, %v1072
        %v1076 = vrot.slane %v1075, 4
        %v1077 = vrot.slane %v555, 4
        %v1078 = vrot.slane %v558, 5
        %v1079 = vor.u32 %v1077, %v1078
        %v1080 = vrot.slane %v1079, 4
        %v1081 = vrot.slane %v566, 5
        %v1082 = vsel %vm986, %v1080, %v1081
        %v1083 = vrot.slane %v563, 4
        %v1084 = vor.u32 %v1083, %v1081
        %v1085 = vrot.slane %v1084, 4
        %v1086 = vrot.slane %v572, 4
        %v1087 = vrot.slane %v575, 5
        %v1088 = vor.u32 %v1086, %v1087
        %v1089 = vrot.slane %v1088, 4
        %v1090 = vrot.slane %v583, 5
        %v1091 = vsel %vm986, %v1089, %v1090
        %v1092 = vrot.slane %v580, 4
        %v1093 = vor.u32 %v1092, %v1090
        %v1094 = vrot.slane %v1093, 4
        %v1095 = vrot.slane %v589, 4
        %v1096 = vrot.slane %v592, 5
        %v1097 = vor.u32 %v1095, %v1096
        %v1098 = vrot.slane %v1097, 4
        %v1099 = vrot.slane %v600, 5
        %v1100 = vsel %vm986, %v1098, %v1099
        %v1101 = vrot.slane %v597, 4
        %v1102 = vor.u32 %v1101, %v1099
        %v1103 = vrot.slane %v1102, 4
        %v1104 = vrot.slane %v606, 4
        %v1105 = vrot.slane %v609, 5
        %v1106 = vor.u32 %v1104, %v1105
        %v1107 = vrot.slane %v1106, 4
        %v1108 = vrot.slane %v617, 5
        %v1109 = vsel %vm986, %v1107, %v1108
        %v1110 = vrot.slane %v614, 4
        %v1111 = vor.u32 %v1110, %v1108
        %v1112 = vrot.slane %v1111, 4
        %v1113 = vrot.slane %v623, 4
        %v1114 = vrot.slane %v626, 5
        %v1115 = vor.u32 %v1113, %v1114
        %v1116 = vrot.slane %v1115, 4
        %v1117 = vrot.slane %v634, 5
        %v1118 = vsel %vm986, %v1116, %v1117
        %v1119 = vrot.slane %v631, 4
        %v1120 = vor.u32 %v1119, %v1117
        %v1121 = vrot.slane %v1120, 4
        %v1122 = vrot.slane %v640, 4
        %v1123 = vrot.slane %v643, 5
        %v1124 = vor.u32 %v1122, %v1123
        %v1125 = vrot.slane %v1124, 4
        %v1126 = vrot.slane %v651, 5
        %v1127 = vsel %vm986, %v1125, %v1126
        %v1128 = vrot.slane %v648, 4
        %v1129 = vor.u32 %v1128, %v1126
        %v1130 = vrot.slane %v1129, 4
        %1131 = vrot.lane.b32.xlu0 %v992, 16
        %v1132 = vpop.permute.xlu0 %1131
        %1133 = vrot.lane.b32.xlu0 %v995, 16
        %v1134 = vpop.permute.xlu0 %1133
        %1135 = vrot.lane.b32.xlu0 %v1001, 16
        %v1136 = vpop.permute.xlu0 %1135
        %1137 = vrot.lane.b32.xlu0 %v1004, 16
        %v1138 = vpop.permute.xlu0 %1137
        %1139 = vrot.lane.b32.xlu0 %v1010, 16
        %v1140 = vpop.permute.xlu0 %1139
        %1141 = vrot.lane.b32.xlu0 %v1013, 16
        %v1142 = vpop.permute.xlu0 %1141
        %1143 = vrot.lane.b32.xlu0 %v1019, 16
        %v1144 = vpop.permute.xlu0 %1143
        %1145 = vrot.lane.b32.xlu0 %v1022, 16
        %v1146 = vpop.permute.xlu0 %1145
        %1147 = vrot.lane.b32.xlu0 %v1028, 16
        %v1148 = vpop.permute.xlu0 %1147
        %1149 = vrot.lane.b32.xlu0 %v1031, 16
        %v1150 = vpop.permute.xlu0 %1149
        %1151 = vrot.lane.b32.xlu0 %v1037, 16
        %v1152 = vpop.permute.xlu0 %1151
        %1153 = vrot.lane.b32.xlu0 %v1040, 16
        %v1154 = vpop.permute.xlu0 %1153
        %1155 = vrot.lane.b32.xlu0 %v1046, 16
        %v1156 = vpop.permute.xlu0 %1155
        %1157 = vrot.lane.b32.xlu0 %v1049, 16
        %v1158 = vpop.permute.xlu0 %1157
        %1159 = vrot.lane.b32.xlu0 %v1055, 16
        %v1160 = vpop.permute.xlu0 %1159
        %1161 = vrot.lane.b32.xlu0 %v1058, 16
        %v1162 = vpop.permute.xlu0 %1161
        %1163 = vrot.lane.b32.xlu0 %v1064, 16
        %v1164 = vpop.permute.xlu0 %1163
        %1165 = vrot.lane.b32.xlu0 %v1067, 16
        %v1166 = vpop.permute.xlu0 %1165
        %1167 = vrot.lane.b32.xlu0 %v1073, 16
        %v1168 = vpop.permute.xlu0 %1167
        %1169 = vrot.lane.b32.xlu0 %v1076, 16
        %v1170 = vpop.permute.xlu0 %1169
        %1171 = vrot.lane.b32.xlu0 %v1082, 16
        %v1172 = vpop.permute.xlu0 %1171
        %1173 = vrot.lane.b32.xlu0 %v1085, 16
        %v1174 = vpop.permute.xlu0 %1173
        %1175 = vrot.lane.b32.xlu0 %v1091, 16
        %v1176 = vpop.permute.xlu0 %1175
        %1177 = vrot.lane.b32.xlu0 %v1094, 16
        %v1178 = vpop.permute.xlu0 %1177
        %1179 = vrot.lane.b32.xlu0 %v1100, 16
        %v1180 = vpop.permute.xlu0 %1179
        %1181 = vrot.lane.b32.xlu0 %v1103, 16
        %v1182 = vpop.permute.xlu0 %1181
        %1183 = vrot.lane.b32.xlu0 %v1109, 16
        %v1184 = vpop.permute.xlu0 %1183
        %1185 = vrot.lane.b32.xlu0 %v1112, 16
        %v1186 = vpop.permute.xlu0 %1185
        %1187 = vrot.lane.b32.xlu0 %v1118, 16
        %v1188 = vpop.permute.xlu0 %1187
        %1189 = vrot.lane.b32.xlu0 %v1121, 16
        %v1190 = vpop.permute.xlu0 %1189
        %1191 = vrot.lane.b32.xlu0 %v1127, 16
        %v1192 = vpop.permute.xlu0 %1191
        %1193 = vrot.lane.b32.xlu0 %v1130, 16
        %v1194 = vpop.permute.xlu0 %1193
        %vm1227 = vcmask 191616
        %1228 = vst.msk [vmem:[%s704] sm:$0xf] %vm1227, %v1132
        %vm1229 = vcmask 191616
        %vm1230 = vmand %vm1229, %vm984
        %v1231 = vld [vmem:[%s704 + $0x4] sm:$0xf]
        %v1232 = vsel %vm1230, %v1134, %v1231
        %1233 = vst [vmem:[%s704 + $0x4] sm:$0xf] %v1232
        %1234 = vst.msk [vmem:[%s704 + $0xc] sm:$0xf] %vm1227, %v1136
        %v1235 = vld [vmem:[%s704 + $0x10] sm:$0xf]
        %v1236 = vsel %vm1230, %v1138, %v1235
        %1237 = vst [vmem:[%s704 + $0x10] sm:$0xf] %v1236
        %1238 = vst.msk [vmem:[%s704 + $0x18] sm:$0xf] %vm1227, %v1140
        %v1239 = vld [vmem:[%s704 + $0x1c] sm:$0xf]
        %v1240 = vsel %vm1230, %v1142, %v1239
        %1241 = vst [vmem:[%s704 + $0x1c] sm:$0xf] %v1240
        %1242 = vst.msk [vmem:[%s704 + $0x24] sm:$0xf] %vm1227, %v1144
        %v1243 = vld [vmem:[%s704 + $0x28] sm:$0xf]
        %v1244 = vsel %vm1230, %v1146, %v1243
        %1245 = vst [vmem:[%s704 + $0x28] sm:$0xf] %v1244
        %1246 = vst.msk [vmem:[%s704 + $0x30] sm:$0xf] %vm1227, %v1148
        %v1247 = vld [vmem:[%s704 + $0x34] sm:$0xf]
        %v1248 = vsel %vm1230, %v1150, %v1247
        %1249 = vst [vmem:[%s704 + $0x34] sm:$0xf] %v1248
        %1250 = vst.msk [vmem:[%s704 + $0x3c] sm:$0xf] %vm1227, %v1152
        %v1251 = vld [vmem:[%s704 + $0x40] sm:$0xf]
        %v1252 = vsel %vm1230, %v1154, %v1251
        %1253 = vst [vmem:[%s704 + $0x40] sm:$0xf] %v1252
        %1254 = vst.msk [vmem:[%s704 + $0x48] sm:$0xf] %vm1227, %v1156
        %v1255 = vld [vmem:[%s704 + $0x4c] sm:$0xf]
        %v1256 = vsel %vm1230, %v1158, %v1255
        %1257 = vst [vmem:[%s704 + $0x4c] sm:$0xf] %v1256
        %1258 = vst.msk [vmem:[%s704 + $0x54] sm:$0xf] %vm1227, %v1160
        %v1259 = vld [vmem:[%s704 + $0x58] sm:$0xf]
        %v1260 = vsel %vm1230, %v1162, %v1259
        %1261 = vst [vmem:[%s704 + $0x58] sm:$0xf] %v1260
        %1262 = vst.msk [vmem:[%s704 + $0x60] sm:$0xf] %vm1227, %v1164
        %v1263 = vld [vmem:[%s704 + $0x64] sm:$0xf]
        %v1264 = vsel %vm1230, %v1166, %v1263
        %1265 = vst [vmem:[%s704 + $0x64] sm:$0xf] %v1264
        %1266 = vst.msk [vmem:[%s704 + $0x6c] sm:$0xf] %vm1227, %v1168
        %v1267 = vld [vmem:[%s704 + $0x70] sm:$0xf]
        %v1268 = vsel %vm1230, %v1170, %v1267
        %1269 = vst [vmem:[%s704 + $0x70] sm:$0xf] %v1268
        %1270 = vst.msk [vmem:[%s704 + $0x78] sm:$0xf] %vm1227, %v1172
        %v1271 = vld [vmem:[%s704 + $0x7c] sm:$0xf]
        %v1272 = vsel %vm1230, %v1174, %v1271
        %1273 = vst [vmem:[%s704 + $0x7c] sm:$0xf] %v1272
        %1274 = vst.msk [vmem:[%s704 + $0x84] sm:$0xf] %vm1227, %v1176
        %v1275 = vld [vmem:[%s704 + $0x88] sm:$0xf]
        %v1276 = vsel %vm1230, %v1178, %v1275
        %1277 = vst [vmem:[%s704 + $0x88] sm:$0xf] %v1276
        %1278 = vst.msk [vmem:[%s704 + $0x90] sm:$0xf] %vm1227, %v1180
        %v1279 = vld [vmem:[%s704 + $0x94] sm:$0xf]
        %v1280 = vsel %vm1230, %v1182, %v1279
        %1281 = vst [vmem:[%s704 + $0x94] sm:$0xf] %v1280
        %1282 = vst.msk [vmem:[%s704 + $0x9c] sm:$0xf] %vm1227, %v1184
        %v1283 = vld [vmem:[%s704 + $0xa0] sm:$0xf]
        %v1284 = vsel %vm1230, %v1186, %v1283
        %1285 = vst [vmem:[%s704 + $0xa0] sm:$0xf] %v1284
        %1286 = vst.msk [vmem:[%s704 + $0xa8] sm:$0xf] %vm1227, %v1188
        %v1287 = vld [vmem:[%s704 + $0xac] sm:$0xf]
        %v1288 = vsel %vm1230, %v1190, %v1287
        %1289 = vst [vmem:[%s704 + $0xac] sm:$0xf] %v1288
        %1290 = vst.msk [vmem:[%s704 + $0xb4] sm:$0xf] %vm1227, %v1192
        %v1291 = vld [vmem:[%s704 + $0xb8] sm:$0xf]
        %v1292 = vsel %vm1230, %v1194, %v1291
        %1293 = vst [vmem:[%s704 + $0xb8] sm:$0xf] %v1292
      $region44: #{af_basic_block_forward.3} parent=39 // pred_fallthru
        _
      %s1294 = smul.u32 %s21, 8
      %s1295 = smul.u32 %s1294, 3
      %s1296 = smul.addr %s1295, 4
      %s1297 = scalar_lea.vmem [#allocation2], %s1296
      %v1298 = vld [vmem:[%s1297] sm:$0xf]
      %v1299 = vld [vmem:[%s1297 + $0x4] sm:$0xf]
      %v1300 = vld [vmem:[%s1297 + $0x8] sm:$0xf]
      %v1301 = vld [vmem:[%s1297 + $0xc] sm:$0xf]
      %v1302 = vld [vmem:[%s1297 + $0x10] sm:$0xf]
      %v1303 = vld [vmem:[%s1297 + $0x14] sm:$0xf]
      %v1304 = vld [vmem:[%s1297 + $0x18] sm:$0xf]
      %v1305 = vld [vmem:[%s1297 + $0x1c] sm:$0xf]
      %v1306 = vld [vmem:[%s1297 + $0x20] sm:$0xf]
      %v1307 = vld [vmem:[%s1297 + $0x24] sm:$0xf]
      %v1308 = vld [vmem:[%s1297 + $0x28] sm:$0xf]
      %v1309 = vld [vmem:[%s1297 + $0x2c] sm:$0xf]
      %v1310 = vld [vmem:[%s1297 + $0x30] sm:$0xf]
      %v1311 = vld [vmem:[%s1297 + $0x34] sm:$0xf]
      %v1312 = vld [vmem:[%s1297 + $0x38] sm:$0xf]
      %v1313 = vld [vmem:[%s1297 + $0x3c] sm:$0xf]
      %v1314 = vld [vmem:[%s1297 + $0x40] sm:$0xf]
      %v1315 = vld [vmem:[%s1297 + $0x44] sm:$0xf]
      %v1316 = vld [vmem:[%s1297 + $0x48] sm:$0xf]
      %v1317 = vld [vmem:[%s1297 + $0x4c] sm:$0xf]
      %v1318 = vld [vmem:[%s1297 + $0x50] sm:$0xf]
      %v1319 = vld [vmem:[%s1297 + $0x54] sm:$0xf]
      %v1320 = vld [vmem:[%s1297 + $0x58] sm:$0xf]
      %v1321 = vld [vmem:[%s1297 + $0x5c] sm:$0xf]
      %v1322 = vld [vmem:[%s2] sm:$0xf]
      %v1323 = vld [vmem:[%s2 + $0x4] sm:$0xf]
      %v1324 = vld [vmem:[%s2 + $0x8] sm:$0xf]
      %s1325 = sadd.s32 %s1294, 1
      %s1326 = smul.u32 %s1325, 3
      %s1327 = smul.addr %s1326, 4
      %s1328 = scalar_lea.vmem [#allocation2], %s1327
      %v1329 = vld [vmem:[%s1328] sm:$0xf]
      %v1330 = vld [vmem:[%s1328 + $0x4] sm:$0xf]
      %v1331 = vld [vmem:[%s1328 + $0x8] sm:$0xf]
      %v1332 = vld [vmem:[%s1328 + $0xc] sm:$0xf]
      %v1333 = vld [vmem:[%s1328 + $0x10] sm:$0xf]
      %v1334 = vld [vmem:[%s1328 + $0x14] sm:$0xf]
      %v1335 = vld [vmem:[%s1328 + $0x18] sm:$0xf]
      %v1336 = vld [vmem:[%s1328 + $0x1c] sm:$0xf]
      %v1337 = vld [vmem:[%s1328 + $0x20] sm:$0xf]
      %v1338 = vld [vmem:[%s1328 + $0x24] sm:$0xf]
      %v1339 = vld [vmem:[%s1328 + $0x28] sm:$0xf]
      %v1340 = vld [vmem:[%s1328 + $0x2c] sm:$0xf]
      %v1341 = vld [vmem:[%s1328 + $0x30] sm:$0xf]
      %v1342 = vld [vmem:[%s1328 + $0x34] sm:$0xf]
      %v1343 = vld [vmem:[%s1328 + $0x38] sm:$0xf]
      %v1344 = vld [vmem:[%s1328 + $0x3c] sm:$0xf]
      %v1345 = vld [vmem:[%s1328 + $0x40] sm:$0xf]
      %v1346 = vld [vmem:[%s1328 + $0x44] sm:$0xf]
      %v1347 = vld [vmem:[%s1328 + $0x48] sm:$0xf]
      %v1348 = vld [vmem:[%s1328 + $0x4c] sm:$0xf]
      %v1349 = vld [vmem:[%s1328 + $0x50] sm:$0xf]
      %v1350 = vld [vmem:[%s1328 + $0x54] sm:$0xf]
      %v1351 = vld [vmem:[%s1328 + $0x58] sm:$0xf]
      %v1352 = vld [vmem:[%s1328 + $0x5c] sm:$0xf]
      %s1353 = scalar_lea.vmem %s2, 12
      %v1354 = vld [vmem:[%s1353] sm:$0xf]
      %v1355 = vld [vmem:[%s1353 + $0x4] sm:$0xf]
      %v1356 = vld [vmem:[%s1353 + $0x8] sm:$0xf]
      %v1381 = vunpack.c.l.b16 %v1329
      %v1382 = vunpack.c.l.b16 %v1330
      %v1383 = vunpack.c.l.b16 %v1331
      %v1384 = vunpack.c.l.b16 %v1332
      %v1385 = vunpack.c.l.b16 %v1333
      %v1386 = vunpack.c.l.b16 %v1334
      %v1387 = vunpack.c.l.b16 %v1335
      %v1388 = vunpack.c.l.b16 %v1336
      %v1389 = vunpack.c.l.b16 %v1337
      %v1390 = vunpack.c.l.b16 %v1338
      %v1391 = vunpack.c.l.b16 %v1339
      %v1392 = vunpack.c.l.b16 %v1340
      %v1393 = vunpack.c.l.b16 %v1341
      %v1394 = vunpack.c.l.b16 %v1342
      %v1395 = vunpack.c.l.b16 %v1343
      %v1396 = vunpack.c.l.b16 %v1344
      %v1397 = vunpack.c.l.b16 %v1345
      %v1398 = vunpack.c.l.b16 %v1346
      %v1399 = vunpack.c.l.b16 %v1347
      %v1400 = vunpack.c.l.b16 %v1348
      %v1401 = vunpack.c.l.b16 %v1349
      %v1402 = vunpack.c.l.b16 %v1350
      %v1403 = vunpack.c.l.b16 %v1351
      %v1404 = vunpack.c.l.b16 %v1352
      %v1405 = vpack.c.b16 %v1382, %v1381
      %v1406 = vpack.c.b16 %v1384, %v1383
      %v1407 = vpack.c.b16 %v1386, %v1385
      %v1408 = vpack.c.b16 %v1388, %v1387
      %v1409 = vpack.c.b16 %v1390, %v1389
      %v1410 = vpack.c.b16 %v1392, %v1391
      %v1411 = vpack.c.b16 %v1394, %v1393
      %v1412 = vpack.c.b16 %v1396, %v1395
      %v1413 = vpack.c.b16 %v1398, %v1397
      %v1414 = vpack.c.b16 %v1400, %v1399
      %v1415 = vpack.c.b16 %v1402, %v1401
      %v1416 = vpack.c.b16 %v1404, %v1403
      %v1420 = vunpack.c.l.b16 %v1354
      %v1421 = vunpack.c.l.b16 %v1355
      %v1422 = vunpack.c.l.b16 %v1356
      %v1423 = vpack.c.b16 %v1421, %v1420
      %v1424 = vpack.c.b16 %v1422, %v1422
      %vm1426 = vcmask 195584
      %v1428 = vsel %vm1426, %v1405, 0
      %v1431 = vsel %vm1426, %v1406, 0
      %v1434 = vsel %vm1426, %v1407, 0
      %v1437 = vsel %vm1426, %v1408, 0
      %v1440 = vsel %vm1426, %v1409, 0
      %v1443 = vsel %vm1426, %v1410, 0
      %v1446 = vsel %vm1426, %v1411, 0
      %v1449 = vsel %vm1426, %v1412, 0
      %v1452 = vsel %vm1426, %v1413, 0
      %v1455 = vsel %vm1426, %v1414, 0
      %v1458 = vsel %vm1426, %v1415, 0
      %v1461 = vsel %vm1426, %v1416, 0
      %vm1463 = vcmask 1043456
      %v1465 = vsel %vm1463, %v1424, 0
      %1467 = vmatprep.subr.bf16.mxu0 0
      %1468 = vmatpush1.bf16.msra.mxu0 0
      %1469 = vmatprep.subr.bf16.mxu0 0
      %1470 = vmatpush1.bf16.msra.mxu0 0
      %1471 = vmatprep.subr.bf16.mxu0 0
      %1472 = vmatpush1.bf16.msra.mxu0 0
      %1473 = vmatprep.subr.bf16.mxu0 0
      %1474 = vmatpush1.bf16.msra.mxu0 0
      %1475 = vmatprep.subr.bf16.mxu0 0
      %1476 = vmatpush1.bf16.msra.mxu0 0
      %1477 = vmatprep.subr.bf16.mxu0 0
      %1478 = vmatpush1.bf16.msra.mxu0 0
      %1479 = vmatprep.subr.bf16.mxu0 0
      %1480 = vmatpush1.bf16.msra.mxu0 %v1465
      %1481 = vmatprep.subr.bf16.mxu0 0
      %1482 = vmatpush1.bf16.msra.mxu0 %v1423
      %1483 = vmatprep.subr.bf16.mxu0 0
      %1484 = vmatpush2.bf16.msra.mxu0 0
      %1485 = vmatprep.subr.bf16.mxu0 0
      %1486 = vmatpush2.bf16.msra.mxu0 0
      %1487 = vmatprep.subr.bf16.mxu0 0
      %1488 = vmatpush2.bf16.msra.mxu0 0
      %1489 = vmatprep.subr.bf16.mxu0 0
      %1490 = vmatpush2.bf16.msra.mxu0 0
      %1491 = vmatprep.subr.bf16.mxu0 0
      %1492 = vmatpush2.bf16.msra.mxu0 0
      %1493 = vmatprep.subr.bf16.mxu0 0
      %1494 = vmatpush2.bf16.msra.mxu0 0
      %1495 = vmatprep.subr.bf16.mxu0 0
      %1496 = vmatpush2.bf16.msra.mxu0 0
      %1497 = vmatprep.subr.bf16.mxu0 0
      %1498 = vmatpush2.bf16.msra.mxu0 0
      %1499 = vmatprep.mubr.bf16.mxu0 0
      %1500 = vmatmul.mubr.bf16.gmra.mxu0 %v1428
      %v1501 = vpop.f32.mrf.mxu0
      %v1502 = vadd.f32 0.0, %v1501
      %v1503 = vpop.f32.mrf.mxu0
      %v1504 = vpop.f32.mrf.mxu0
      %v1505 = vadd.f32 0.0, %v1504
      %v1506 = vpop.f32.mrf.mxu0
      %1507 = vmatprep.mubr.bf16.mxu0 0
      %1508 = vmatmul.mubr.bf16.gmra.mxu0 %v1431
      %v1509 = vpop.f32.mrf.mxu0
      %v1510 = vpop.f32.mrf.mxu0
      %v1511 = vpop.f32.mrf.mxu0
      %v1512 = vadd.f32 0.0, %v1511
      %v1513 = vpop.f32.mrf.mxu0
      %1514 = vmatprep.mubr.bf16.mxu0 0
      %1515 = vmatmul.mubr.bf16.gmra.mxu0 %v1434
      %v1516 = vpop.f32.mrf.mxu0
      %v1517 = vadd.f32 0.0, %v1516
      %v1518 = vpop.f32.mrf.mxu0
      %v1519 = vpop.f32.mrf.mxu0
      %v1520 = vpop.f32.mrf.mxu0
      %1521 = vmatprep.mubr.bf16.mxu0 0
      %1522 = vmatmul.mubr.bf16.gmra.mxu0 %v1437
      %v1523 = vpop.f32.mrf.mxu0
      %v1524 = vadd.f32 0.0, %v1523
      %v1525 = vpop.f32.mrf.mxu0
      %v1526 = vpop.f32.mrf.mxu0
      %v1527 = vadd.f32 0.0, %v1526
      %v1528 = vpop.f32.mrf.mxu0
      %1529 = vmatprep.mubr.bf16.mxu0 0
      %1530 = vmatmul.mubr.bf16.gmra.mxu0 %v1440
      %v1531 = vpop.f32.mrf.mxu0
      %v1532 = vpop.f32.mrf.mxu0
      %v1533 = vpop.f32.mrf.mxu0
      %v1534 = vadd.f32 0.0, %v1533
      %v1535 = vpop.f32.mrf.mxu0
      %1536 = vmatprep.mubr.bf16.mxu0 0
      %1537 = vmatmul.mubr.bf16.gmra.mxu0 %v1443
      %v1538 = vpop.f32.mrf.mxu0
      %v1539 = vadd.f32 0.0, %v1538
      %v1540 = vpop.f32.mrf.mxu0
      %v1541 = vpop.f32.mrf.mxu0
      %v1542 = vpop.f32.mrf.mxu0
      %1543 = vmatprep.mubr.bf16.mxu0 0
      %1544 = vmatmul.mubr.bf16.gmra.mxu0 %v1446
      %v1545 = vpop.f32.mrf.mxu0
      %v1546 = vadd.f32 0.0, %v1545
      %v1547 = vpop.f32.mrf.mxu0
      %v1548 = vpop.f32.mrf.mxu0
      %v1549 = vadd.f32 0.0, %v1548
      %v1550 = vpop.f32.mrf.mxu0
      %1551 = vmatprep.mubr.bf16.mxu0 0
      %1552 = vmatmul.mubr.bf16.gmra.mxu0 %v1449
      %v1553 = vpop.f32.mrf.mxu0
      %v1554 = vpop.f32.mrf.mxu0
      %v1555 = vpop.f32.mrf.mxu0
      %v1556 = vadd.f32 0.0, %v1555
      %v1557 = vpop.f32.mrf.mxu0
      %1558 = vmatprep.mubr.bf16.mxu0 0
      %1559 = vmatmul.mubr.bf16.gmra.mxu0 %v1452
      %v1560 = vpop.f32.mrf.mxu0
      %v1561 = vadd.f32 0.0, %v1560
      %v1562 = vpop.f32.mrf.mxu0
      %v1563 = vpop.f32.mrf.mxu0
      %v1564 = vpop.f32.mrf.mxu0
      %1565 = vmatprep.mubr.bf16.mxu0 0
      %1566 = vmatmul.mubr.bf16.gmra.mxu0 %v1455
      %v1567 = vpop.f32.mrf.mxu0
      %v1568 = vadd.f32 0.0, %v1567
      %v1569 = vpop.f32.mrf.mxu0
      %v1570 = vpop.f32.mrf.mxu0
      %v1571 = vadd.f32 0.0, %v1570
      %v1572 = vpop.f32.mrf.mxu0
      %1573 = vmatprep.mubr.bf16.mxu0 0
      %1574 = vmatmul.mubr.bf16.gmra.mxu0 %v1458
      %v1575 = vpop.f32.mrf.mxu0
      %v1576 = vpop.f32.mrf.mxu0
      %v1577 = vpop.f32.mrf.mxu0
      %v1578 = vadd.f32 0.0, %v1577
      %v1579 = vpop.f32.mrf.mxu0
      %1580 = vmatprep.mubr.bf16.mxu0 0
      %1581 = vmatmul.mubr.bf16.gmra.mxu0 %v1461
      %v1582 = vpop.f32.mrf.mxu0
      %v1583 = vadd.f32 0.0, %v1582
      %v1584 = vpop.f32.mrf.mxu0
      %v1585 = vpop.f32.mrf.mxu0
      %v1586 = vpop.f32.mrf.mxu0
      %1587 = vdwg.mxu0
      %v1612 = vunpack.c.l.b16 %v1298
      %v1613 = vunpack.c.l.b16 %v1299
      %v1614 = vunpack.c.l.b16 %v1300
      %v1615 = vunpack.c.l.b16 %v1301
      %v1616 = vunpack.c.l.b16 %v1302
      %v1617 = vunpack.c.l.b16 %v1303
      %v1618 = vunpack.c.l.b16 %v1304
      %v1619 = vunpack.c.l.b16 %v1305
      %v1620 = vunpack.c.l.b16 %v1306
      %v1621 = vunpack.c.l.b16 %v1307
      %v1622 = vunpack.c.l.b16 %v1308
      %v1623 = vunpack.c.l.b16 %v1309
      %v1624 = vunpack.c.l.b16 %v1310
      %v1625 = vunpack.c.l.b16 %v1311
      %v1626 = vunpack.c.l.b16 %v1312
      %v1627 = vunpack.c.l.b16 %v1313
      %v1628 = vunpack.c.l.b16 %v1314
      %v1629 = vunpack.c.l.b16 %v1315
      %v1630 = vunpack.c.l.b16 %v1316
      %v1631 = vunpack.c.l.b16 %v1317
      %v1632 = vunpack.c.l.b16 %v1318
      %v1633 = vunpack.c.l.b16 %v1319
      %v1634 = vunpack.c.l.b16 %v1320
      %v1635 = vunpack.c.l.b16 %v1321
      %v1636 = vpack.c.b16 %v1613, %v1612
      %v1637 = vpack.c.b16 %v1615, %v1614
      %v1638 = vpack.c.b16 %v1617, %v1616
      %v1639 = vpack.c.b16 %v1619, %v1618
      %v1640 = vpack.c.b16 %v1621, %v1620
      %v1641 = vpack.c.b16 %v1623, %v1622
      %v1642 = vpack.c.b16 %v1625, %v1624
      %v1643 = vpack.c.b16 %v1627, %v1626
      %v1644 = vpack.c.b16 %v1629, %v1628
      %v1645 = vpack.c.b16 %v1631, %v1630
      %v1646 = vpack.c.b16 %v1633, %v1632
      %v1647 = vpack.c.b16 %v1635, %v1634
      %v1651 = vunpack.c.l.b16 %v1322
      %v1652 = vunpack.c.l.b16 %v1323
      %v1653 = vunpack.c.l.b16 %v1324
      %v1654 = vpack.c.b16 %v1652, %v1651
      %v1655 = vpack.c.b16 %v1653, %v1653
      %v1658 = vsel %vm1426, %v1636, 0
      %v1661 = vsel %vm1426, %v1637, 0
      %v1664 = vsel %vm1426, %v1638, 0
      %v1667 = vsel %vm1426, %v1639, 0
      %v1670 = vsel %vm1426, %v1640, 0
      %v1673 = vsel %vm1426, %v1641, 0
      %v1676 = vsel %vm1426, %v1642, 0
      %v1679 = vsel %vm1426, %v1643, 0
      %v1682 = vsel %vm1426, %v1644, 0
      %v1685 = vsel %vm1426, %v1645, 0
      %v1688 = vsel %vm1426, %v1646, 0
      %v1691 = vsel %vm1426, %v1647, 0
      %v1694 = vsel %vm1463, %v1655, 0
      %1696 = vmatprep.subr.bf16.mxu0 0
      %1697 = vmatpush1.bf16.msra.mxu0 0
      %1698 = vmatprep.subr.bf16.mxu0 0
      %1699 = vmatpush1.bf16.msra.mxu0 0
      %1700 = vmatprep.subr.bf16.mxu0 0
      %1701 = vmatpush1.bf16.msra.mxu0 0
      %1702 = vmatprep.subr.bf16.mxu0 0
      %1703 = vmatpush1.bf16.msra.mxu0 0
      %1704 = vmatprep.subr.bf16.mxu0 0
      %1705 = vmatpush1.bf16.msra.mxu0 0
      %1706 = vmatprep.subr.bf16.mxu0 0
      %1707 = vmatpush1.bf16.msra.mxu0 0
      %1708 = vmatprep.subr.bf16.mxu0 0
      %1709 = vmatpush1.bf16.msra.mxu0 %v1694
      %1710 = vmatprep.subr.bf16.mxu0 0
      %1711 = vmatpush1.bf16.msra.mxu0 %v1654
      %1712 = vmatprep.subr.bf16.mxu0 0
      %1713 = vmatpush2.bf16.msra.mxu0 0
      %1714 = vmatprep.subr.bf16.mxu0 0
      %1715 = vmatpush2.bf16.msra.mxu0 0
      %1716 = vmatprep.subr.bf16.mxu0 0
      %1717 = vmatpush2.bf16.msra.mxu0 0
      %1718 = vmatprep.subr.bf16.mxu0 0
      %1719 = vmatpush2.bf16.msra.mxu0 0
      %1720 = vmatprep.subr.bf16.mxu0 0
      %1721 = vmatpush2.bf16.msra.mxu0 0
      %1722 = vmatprep.subr.bf16.mxu0 0
      %1723 = vmatpush2.bf16.msra.mxu0 0
      %1724 = vmatprep.subr.bf16.mxu0 0
      %1725 = vmatpush2.bf16.msra.mxu0 0
      %1726 = vmatprep.subr.bf16.mxu0 0
      %1727 = vmatpush2.bf16.msra.mxu0 0
      %1728 = vmatprep.mubr.bf16.mxu0 0
      %1729 = vmatmul.mubr.bf16.gmra.mxu0 %v1658
      %v1730 = vpop.f32.mrf.mxu0
      %v1731 = vadd.f32 %v1502, %v1730
      %v1732 = vpop.f32.mrf.mxu0
      %v1733 = vpop.f32.mrf.mxu0
      %v1734 = vadd.f32 %v1505, %v1733
      %v1735 = vpop.f32.mrf.mxu0
      %1736 = vmatprep.mubr.bf16.mxu0 0
      %1737 = vmatmul.mubr.bf16.gmra.mxu0 %v1661
      %v1738 = vpop.f32.mrf.mxu0
      %v1739 = vpop.f32.mrf.mxu0
      %v1740 = vpop.f32.mrf.mxu0
      %v1741 = vadd.f32 %v1512, %v1740
      %v1742 = vpop.f32.mrf.mxu0
      %1743 = vmatprep.mubr.bf16.mxu0 0
      %1744 = vmatmul.mubr.bf16.gmra.mxu0 %v1664
      %v1745 = vpop.f32.mrf.mxu0
      %v1746 = vadd.f32 %v1517, %v1745
      %v1747 = vpop.f32.mrf.mxu0
      %v1748 = vpop.f32.mrf.mxu0
      %v1749 = vpop.f32.mrf.mxu0
      %1750 = vmatprep.mubr.bf16.mxu0 0
      %1751 = vmatmul.mubr.bf16.gmra.mxu0 %v1667
      %v1752 = vpop.f32.mrf.mxu0
      %v1753 = vadd.f32 %v1524, %v1752
      %v1754 = vpop.f32.mrf.mxu0
      %v1755 = vpop.f32.mrf.mxu0
      %v1756 = vadd.f32 %v1527, %v1755
      %v1757 = vpop.f32.mrf.mxu0
      %1758 = vmatprep.mubr.bf16.mxu0 0
      %1759 = vmatmul.mubr.bf16.gmra.mxu0 %v1670
      %v1760 = vpop.f32.mrf.mxu0
      %v1761 = vpop.f32.mrf.mxu0
      %v1762 = vpop.f32.mrf.mxu0
      %v1763 = vadd.f32 %v1534, %v1762
      %v1764 = vpop.f32.mrf.mxu0
      %1765 = vmatprep.mubr.bf16.mxu0 0
      %1766 = vmatmul.mubr.bf16.gmra.mxu0 %v1673
      %v1767 = vpop.f32.mrf.mxu0
      %v1768 = vadd.f32 %v1539, %v1767
      %v1769 = vpop.f32.mrf.mxu0
      %v1770 = vpop.f32.mrf.mxu0
      %v1771 = vpop.f32.mrf.mxu0
      %1772 = vmatprep.mubr.bf16.mxu0 0
      %1773 = vmatmul.mubr.bf16.gmra.mxu0 %v1676
      %v1774 = vpop.f32.mrf.mxu0
      %v1775 = vadd.f32 %v1546, %v1774
      %v1776 = vpop.f32.mrf.mxu0
      %v1777 = vpop.f32.mrf.mxu0
      %v1778 = vadd.f32 %v1549, %v1777
      %v1779 = vpop.f32.mrf.mxu0
      %1780 = vmatprep.mubr.bf16.mxu0 0
      %1781 = vmatmul.mubr.bf16.gmra.mxu0 %v1679
      %v1782 = vpop.f32.mrf.mxu0
      %v1783 = vpop.f32.mrf.mxu0
      %v1784 = vpop.f32.mrf.mxu0
      %v1785 = vadd.f32 %v1556, %v1784
      %v1786 = vpop.f32.mrf.mxu0
      %1787 = vmatprep.mubr.bf16.mxu0 0
      %1788 = vmatmul.mubr.bf16.gmra.mxu0 %v1682
      %v1789 = vpop.f32.mrf.mxu0
      %v1790 = vadd.f32 %v1561, %v1789
      %v1791 = vpop.f32.mrf.mxu0
      %v1792 = vpop.f32.mrf.mxu0
      %v1793 = vpop.f32.mrf.mxu0
      %1794 = vmatprep.mubr.bf16.mxu0 0
      %1795 = vmatmul.mubr.bf16.gmra.mxu0 %v1685
      %v1796 = vpop.f32.mrf.mxu0
      %v1797 = vadd.f32 %v1568, %v1796
      %v1798 = vpop.f32.mrf.mxu0
      %v1799 = vpop.f32.mrf.mxu0
      %v1800 = vadd.f32 %v1571, %v1799
      %v1801 = vpop.f32.mrf.mxu0
      %1802 = vmatprep.mubr.bf16.mxu0 0
      %1803 = vmatmul.mubr.bf16.gmra.mxu0 %v1688
      %v1804 = vpop.f32.mrf.mxu0
      %v1805 = vpop.f32.mrf.mxu0
      %v1806 = vpop.f32.mrf.mxu0
      %v1807 = vadd.f32 %v1578, %v1806
      %v1808 = vpop.f32.mrf.mxu0
      %1809 = vmatprep.mubr.bf16.mxu0 0
      %1810 = vmatmul.mubr.bf16.gmra.mxu0 %v1691
      %v1811 = vpop.f32.mrf.mxu0
      %v1812 = vadd.f32 %v1583, %v1811
      %v1813 = vpop.f32.mrf.mxu0
      %v1814 = vpop.f32.mrf.mxu0
      %v1815 = vpop.f32.mrf.mxu0
      %1816 = vdwg.mxu0
      %s1817 = sadd.s32 %s1294, 2
      %s1818 = smul.u32 %s1817, 3
      %s1819 = smul.addr %s1818, 4
      %s1820 = scalar_lea.vmem [#allocation2], %s1819
      %v1821 = vld [vmem:[%s1820] sm:$0xf]
      %v1822 = vld [vmem:[%s1820 + $0x4] sm:$0xf]
      %v1823 = vld [vmem:[%s1820 + $0x8] sm:$0xf]
      %v1824 = vld [vmem:[%s1820 + $0xc] sm:$0xf]
      %v1825 = vld [vmem:[%s1820 + $0x10] sm:$0xf]
      %v1826 = vld [vmem:[%s1820 + $0x14] sm:$0xf]
      %v1827 = vld [vmem:[%s1820 + $0x18] sm:$0xf]
      %v1828 = vld [vmem:[%s1820 + $0x1c] sm:$0xf]
      %v1829 = vld [vmem:[%s1820 + $0x20] sm:$0xf]
      %v1830 = vld [vmem:[%s1820 + $0x24] sm:$0xf]
      %v1831 = vld [vmem:[%s1820 + $0x28] sm:$0xf]
      %v1832 = vld [vmem:[%s1820 + $0x2c] sm:$0xf]
      %v1833 = vld [vmem:[%s1820 + $0x30] sm:$0xf]
      %v1834 = vld [vmem:[%s1820 + $0x34] sm:$0xf]
      %v1835 = vld [vmem:[%s1820 + $0x38] sm:$0xf]
      %v1836 = vld [vmem:[%s1820 + $0x3c] sm:$0xf]
      %v1837 = vld [vmem:[%s1820 + $0x40] sm:$0xf]
      %v1838 = vld [vmem:[%s1820 + $0x44] sm:$0xf]
      %v1839 = vld [vmem:[%s1820 + $0x48] sm:$0xf]
      %v1840 = vld [vmem:[%s1820 + $0x4c] sm:$0xf]
      %v1841 = vld [vmem:[%s1820 + $0x50] sm:$0xf]
      %v1842 = vld [vmem:[%s1820 + $0x54] sm:$0xf]
      %v1843 = vld [vmem:[%s1820 + $0x58] sm:$0xf]
      %v1844 = vld [vmem:[%s1820 + $0x5c] sm:$0xf]
      %s1845 = scalar_lea.vmem %s2, 24
      %v1846 = vld [vmem:[%s1845] sm:$0xf]
      %v1847 = vld [vmem:[%s1845 + $0x4] sm:$0xf]
      %v1848 = vld [vmem:[%s1845 + $0x8] sm:$0xf]
      %v1873 = vunpack.c.l.b16 %v1821
      %v1874 = vunpack.c.l.b16 %v1822
      %v1875 = vunpack.c.l.b16 %v1823
      %v1876 = vunpack.c.l.b16 %v1824
      %v1877 = vunpack.c.l.b16 %v1825
      %v1878 = vunpack.c.l.b16 %v1826
      %v1879 = vunpack.c.l.b16 %v1827
      %v1880 = vunpack.c.l.b16 %v1828
      %v1881 = vunpack.c.l.b16 %v1829
      %v1882 = vunpack.c.l.b16 %v1830
      %v1883 = vunpack.c.l.b16 %v1831
      %v1884 = vunpack.c.l.b16 %v1832
      %v1885 = vunpack.c.l.b16 %v1833
      %v1886 = vunpack.c.l.b16 %v1834
      %v1887 = vunpack.c.l.b16 %v1835
      %v1888 = vunpack.c.l.b16 %v1836
      %v1889 = vunpack.c.l.b16 %v1837
      %v1890 = vunpack.c.l.b16 %v1838
      %v1891 = vunpack.c.l.b16 %v1839
      %v1892 = vunpack.c.l.b16 %v1840
      %v1893 = vunpack.c.l.b16 %v1841
      %v1894 = vunpack.c.l.b16 %v1842
      %v1895 = vunpack.c.l.b16 %v1843
      %v1896 = vunpack.c.l.b16 %v1844
      %v1897 = vpack.c.b16 %v1874, %v1873
      %v1898 = vpack.c.b16 %v1876, %v1875
      %v1899 = vpack.c.b16 %v1878, %v1877
      %v1900 = vpack.c.b16 %v1880, %v1879
      %v1901 = vpack.c.b16 %v1882, %v1881
      %v1902 = vpack.c.b16 %v1884, %v1883
      %v1903 = vpack.c.b16 %v1886, %v1885
      %v1904 = vpack.c.b16 %v1888, %v1887
      %v1905 = vpack.c.b16 %v1890, %v1889
      %v1906 = vpack.c.b16 %v1892, %v1891
      %v1907 = vpack.c.b16 %v1894, %v1893
      %v1908 = vpack.c.b16 %v1896, %v1895
      %v1912 = vunpack.c.l.b16 %v1846
      %v1913 = vunpack.c.l.b16 %v1847
      %v1914 = vunpack.c.l.b16 %v1848
      %v1915 = vpack.c.b16 %v1913, %v1912
      %v1916 = vpack.c.b16 %v1914, %v1914
      %v1919 = vsel %vm1426, %v1897, 0
      %v1922 = vsel %vm1426, %v1898, 0
      %v1925 = vsel %vm1426, %v1899, 0
      %v1928 = vsel %vm1426, %v1900, 0
      %v1931 = vsel %vm1426, %v1901, 0
      %v1934 = vsel %vm1426, %v1902, 0
      %v1937 = vsel %vm1426, %v1903, 0
      %v1940 = vsel %vm1426, %v1904, 0
      %v1943 = vsel %vm1426, %v1905, 0
      %v1946 = vsel %vm1426, %v1906, 0
      %v1949 = vsel %vm1426, %v1907, 0
      %v1952 = vsel %vm1426, %v1908, 0
      %v1955 = vsel %vm1463, %v1916, 0
      %1957 = vmatprep.subr.bf16.mxu0 0
      %1958 = vmatpush1.bf16.msra.mxu0 0
      %1959 = vmatprep.subr.bf16.mxu0 0
      %1960 = vmatpush1.bf16.msra.mxu0 0
      %1961 = vmatprep.subr.bf16.mxu0 0
      %1962 = vmatpush1.bf16.msra.mxu0 0
      %1963 = vmatprep.subr.bf16.mxu0 0
      %1964 = vmatpush1.bf16.msra.mxu0 0
      %1965 = vmatprep.subr.bf16.mxu0 0
      %1966 = vmatpush1.bf16.msra.mxu0 0
      %1967 = vmatprep.subr.bf16.mxu0 0
      %1968 = vmatpush1.bf16.msra.mxu0 0
      %1969 = vmatprep.subr.bf16.mxu0 0
      %1970 = vmatpush1.bf16.msra.mxu0 %v1955
      %1971 = vmatprep.subr.bf16.mxu0 0
      %1972 = vmatpush1.bf16.msra.mxu0 %v1915
      %1973 = vmatprep.subr.bf16.mxu0 0
      %1974 = vmatpush2.bf16.msra.mxu0 0
      %1975 = vmatprep.subr.bf16.mxu0 0
      %1976 = vmatpush2.bf16.msra.mxu0 0
      %1977 = vmatprep.subr.bf16.mxu0 0
      %1978 = vmatpush2.bf16.msra.mxu0 0
      %1979 = vmatprep.subr.bf16.mxu0 0
      %1980 = vmatpush2.bf16.msra.mxu0 0
      %1981 = vmatprep.subr.bf16.mxu0 0
      %1982 = vmatpush2.bf16.msra.mxu0 0
      %1983 = vmatprep.subr.bf16.mxu0 0
      %1984 = vmatpush2.bf16.msra.mxu0 0
      %1985 = vmatprep.subr.bf16.mxu0 0
      %1986 = vmatpush2.bf16.msra.mxu0 0
      %1987 = vmatprep.subr.bf16.mxu0 0
      %1988 = vmatpush2.bf16.msra.mxu0 0
      %1989 = vmatprep.mubr.bf16.mxu0 0
      %1990 = vmatmul.mubr.bf16.gmra.mxu0 %v1919
      %v1991 = vpop.f32.mrf.mxu0
      %v1992 = vadd.f32 0.0, %v1991
      %v1993 = vpop.f32.mrf.mxu0
      %v1994 = vpop.f32.mrf.mxu0
      %v1995 = vadd.f32 0.0, %v1994
      %v1996 = vpop.f32.mrf.mxu0
      %1997 = vmatprep.mubr.bf16.mxu0 0
      %1998 = vmatmul.mubr.bf16.gmra.mxu0 %v1922
      %v1999 = vpop.f32.mrf.mxu0
      %v2000 = vpop.f32.mrf.mxu0
      %v2001 = vpop.f32.mrf.mxu0
      %v2002 = vadd.f32 0.0, %v2001
      %v2003 = vpop.f32.mrf.mxu0
      %2004 = vmatprep.mubr.bf16.mxu0 0
      %2005 = vmatmul.mubr.bf16.gmra.mxu0 %v1925
      %v2006 = vpop.f32.mrf.mxu0
      %v2007 = vadd.f32 0.0, %v2006
      %v2008 = vpop.f32.mrf.mxu0
      %v2009 = vpop.f32.mrf.mxu0
      %v2010 = vpop.f32.mrf.mxu0
      %2011 = vmatprep.mubr.bf16.mxu0 0
      %2012 = vmatmul.mubr.bf16.gmra.mxu0 %v1928
      %v2013 = vpop.f32.mrf.mxu0
      %v2014 = vadd.f32 0.0, %v2013
      %v2015 = vpop.f32.mrf.mxu0
      %v2016 = vpop.f32.mrf.mxu0
      %v2017 = vadd.f32 0.0, %v2016
      %v2018 = vpop.f32.mrf.mxu0
      %2019 = vmatprep.mubr.bf16.mxu0 0
      %2020 = vmatmul.mubr.bf16.gmra.mxu0 %v1931
      %v2021 = vpop.f32.mrf.mxu0
      %v2022 = vpop.f32.mrf.mxu0
      %v2023 = vpop.f32.mrf.mxu0
      %v2024 = vadd.f32 0.0, %v2023
      %v2025 = vpop.f32.mrf.mxu0
      %2026 = vmatprep.mubr.bf16.mxu0 0
      %2027 = vmatmul.mubr.bf16.gmra.mxu0 %v1934
      %v2028 = vpop.f32.mrf.mxu0
      %v2029 = vadd.f32 0.0, %v2028
      %v2030 = vpop.f32.mrf.mxu0
      %v2031 = vpop.f32.mrf.mxu0
      %v2032 = vpop.f32.mrf.mxu0
      %2033 = vmatprep.mubr.bf16.mxu0 0
      %2034 = vmatmul.mubr.bf16.gmra.mxu0 %v1937
      %v2035 = vpop.f32.mrf.mxu0
      %v2036 = vadd.f32 0.0, %v2035
      %v2037 = vpop.f32.mrf.mxu0
      %v2038 = vpop.f32.mrf.mxu0
      %v2039 = vadd.f32 0.0, %v2038
      %v2040 = vpop.f32.mrf.mxu0
      %2041 = vmatprep.mubr.bf16.mxu0 0
      %2042 = vmatmul.mubr.bf16.gmra.mxu0 %v1940
      %v2043 = vpop.f32.mrf.mxu0
      %v2044 = vpop.f32.mrf.mxu0
      %v2045 = vpop.f32.mrf.mxu0
      %v2046 = vadd.f32 0.0, %v2045
      %v2047 = vpop.f32.mrf.mxu0
      %2048 = vmatprep.mubr.bf16.mxu0 0
      %2049 = vmatmul.mubr.bf16.gmra.mxu0 %v1943
      %v2050 = vpop.f32.mrf.mxu0
      %v2051 = vadd.f32 0.0, %v2050
      %v2052 = vpop.f32.mrf.mxu0
      %v2053 = vpop.f32.mrf.mxu0
      %v2054 = vpop.f32.mrf.mxu0
      %2055 = vmatprep.mubr.bf16.mxu0 0
      %2056 = vmatmul.mubr.bf16.gmra.mxu0 %v1946
      %v2057 = vpop.f32.mrf.mxu0
      %v2058 = vadd.f32 0.0, %v2057
      %v2059 = vpop.f32.mrf.mxu0
      %v2060 = vpop.f32.mrf.mxu0
      %v2061 = vadd.f32 0.0, %v2060
      %v2062 = vpop.f32.mrf.mxu0
      %2063 = vmatprep.mubr.bf16.mxu0 0
      %2064 = vmatmul.mubr.bf16.gmra.mxu0 %v1949
      %v2065 = vpop.f32.mrf.mxu0
      %v2066 = vpop.f32.mrf.mxu0
      %v2067 = vpop.f32.mrf.mxu0
      %v2068 = vadd.f32 0.0, %v2067
      %v2069 = vpop.f32.mrf.mxu0
      %2070 = vmatprep.mubr.bf16.mxu0 0
      %2071 = vmatmul.mubr.bf16.gmra.mxu0 %v1952
      %v2072 = vpop.f32.mrf.mxu0
      %v2073 = vadd.f32 0.0, %v2072
      %v2074 = vpop.f32.mrf.mxu0
      %v2075 = vpop.f32.mrf.mxu0
      %v2076 = vpop.f32.mrf.mxu0
      %2077 = vdwg.mxu0
      %v2078 = vadd.f32 %v1731, %v1992
      %v2079 = vadd.f32 %v1734, %v1995
      %v2080 = vadd.f32 %v1741, %v2002
      %v2081 = vadd.f32 %v1746, %v2007
      %v2082 = vadd.f32 %v1753, %v2014
      %v2083 = vadd.f32 %v1756, %v2017
      %v2084 = vadd.f32 %v1763, %v2024
      %v2085 = vadd.f32 %v1768, %v2029
      %v2086 = vadd.f32 %v1775, %v2036
      %v2087 = vadd.f32 %v1778, %v2039
      %v2088 = vadd.f32 %v1785, %v2046
      %v2089 = vadd.f32 %v1790, %v2051
      %v2090 = vadd.f32 %v1797, %v2058
      %v2091 = vadd.f32 %v1800, %v2061
      %v2092 = vadd.f32 %v1807, %v2068
      %v2093 = vadd.f32 %v1812, %v2073
      %v2094 = vld [vmem:[%s276] sm:$0xf]
      %v2095 = vld [vmem:[%s276 + $0x4] sm:$0xf]
      %v2096 = vld [vmem:[%s276 + $0x8] sm:$0xf]
      %v2097 = vld [vmem:[%s276 + $0xc] sm:$0xf]
      %v2098 = vld [vmem:[%s276 + $0x10] sm:$0xf]
      %v2099 = vld [vmem:[%s276 + $0x14] sm:$0xf]
      %v2100 = vld [vmem:[%s276 + $0x18] sm:$0xf]
      %v2101 = vld [vmem:[%s276 + $0x1c] sm:$0xf]
      %v2102 = vld [vmem:[%s276 + $0x20] sm:$0xf]
      %v2103 = vld [vmem:[%s276 + $0x24] sm:$0xf]
      %v2104 = vld [vmem:[%s276 + $0x28] sm:$0xf]
      %v2105 = vld [vmem:[%s276 + $0x2c] sm:$0xf]
      %v2106 = vld [vmem:[%s276 + $0x30] sm:$0xf]
      %v2107 = vld [vmem:[%s276 + $0x34] sm:$0xf]
      %v2108 = vld [vmem:[%s276 + $0x38] sm:$0xf]
      %v2109 = vld [vmem:[%s276 + $0x3c] sm:$0xf]
      %v2110 = vld [vmem:[%s3] sm:$0x3]
      %v2127 = vunpack.c.l.b16 %v2094
      %v2128 = vunpack.c.l.b16 %v2095
      %v2129 = vunpack.c.l.b16 %v2096
      %v2130 = vunpack.c.l.b16 %v2097
      %v2131 = vunpack.c.l.b16 %v2098
      %v2132 = vunpack.c.l.b16 %v2099
      %v2133 = vunpack.c.l.b16 %v2100
      %v2134 = vunpack.c.l.b16 %v2101
      %v2135 = vunpack.c.l.b16 %v2102
      %v2136 = vunpack.c.l.b16 %v2103
      %v2137 = vunpack.c.l.b16 %v2104
      %v2138 = vunpack.c.l.b16 %v2105
      %v2139 = vunpack.c.l.b16 %v2106
      %v2140 = vunpack.c.l.b16 %v2107
      %v2141 = vunpack.c.l.b16 %v2108
      %v2142 = vunpack.c.l.b16 %v2109
      %v2143 = vpack.c.b16 %v2128, %v2127
      %v2144 = vpack.c.b16 %v2130, %v2129
      %v2145 = vpack.c.b16 %v2132, %v2131
      %v2146 = vpack.c.b16 %v2134, %v2133
      %v2147 = vpack.c.b16 %v2136, %v2135
      %v2148 = vpack.c.b16 %v2138, %v2137
      %v2149 = vpack.c.b16 %v2140, %v2139
      %v2150 = vpack.c.b16 %v2142, %v2141
      %vm2151 = vcmask 31744
      %v2153 = vsel %vm2151, %v2143, 0
      %v2156 = vsel %vm2151, %v2144, 0
      %v2159 = vsel %vm2151, %v2145, 0
      %v2162 = vsel %vm2151, %v2146, 0
      %v2165 = vsel %vm2151, %v2147, 0
      %v2168 = vsel %vm2151, %v2148, 0
      %v2171 = vsel %vm2151, %v2149, 0
      %v2174 = vsel %vm2151, %v2150, 0
      %vm2176 = vcmask 1041408
      %v2178 = vsel %vm2176, %v2110, 0
      %2180 = vmatprep.subr.bf16.mxu0 0
      %2181 = vmatpush1.bf16.msra.mxu0 0
      %2182 = vmatprep.subr.bf16.mxu0 0
      %2183 = vmatpush1.bf16.msra.mxu0 0
      %2184 = vmatprep.subr.bf16.mxu0 0
      %2185 = vmatpush1.bf16.msra.mxu0 0
      %2186 = vmatprep.subr.bf16.mxu0 0
      %2187 = vmatpush1.bf16.msra.mxu0 0
      %2188 = vmatprep.subr.bf16.mxu0 0
      %2189 = vmatpush1.bf16.msra.mxu0 0
      %2190 = vmatprep.subr.bf16.mxu0 0
      %2191 = vmatpush1.bf16.msra.mxu0 0
      %2192 = vmatprep.subr.bf16.mxu0 0
      %2193 = vmatpush1.bf16.msra.mxu0 0
      %2194 = vmatprep.subr.bf16.mxu0 0
      %2195 = vmatpush1.bf16.msra.mxu0 %v2178
      %2196 = vmatprep.subr.bf16.mxu0 0
      %2197 = vmatpush2.bf16.msra.mxu0 0
      %2198 = vmatprep.subr.bf16.mxu0 0
      %2199 = vmatpush2.bf16.msra.mxu0 0
      %2200 = vmatprep.subr.bf16.mxu0 0
      %2201 = vmatpush2.bf16.msra.mxu0 0
      %2202 = vmatprep.subr.bf16.mxu0 0
      %2203 = vmatpush2.bf16.msra.mxu0 0
      %2204 = vmatprep.subr.bf16.mxu0 0
      %2205 = vmatpush2.bf16.msra.mxu0 0
      %2206 = vmatprep.subr.bf16.mxu0 0
      %2207 = vmatpush2.bf16.msra.mxu0 0
      %2208 = vmatprep.subr.bf16.mxu0 0
      %2209 = vmatpush2.bf16.msra.mxu0 0
      %2210 = vmatprep.subr.bf16.mxu0 0
      %2211 = vmatpush2.bf16.msra.mxu0 0
      %2212 = vmatprep.mubr.bf16.mxu0 0
      %2213 = vmatmul.mubr.bf16.gmra.mxu0 %v2153
      %v2214 = vpop.f32.mrf.mxu0
      %v2215 = vadd.f32 0.0, %v2214
      %v2216 = vpop.f32.mrf.mxu0
      %v2217 = vpop.f32.mrf.mxu0
      %v2218 = vadd.f32 0.0, %v2217
      %v2219 = vpop.f32.mrf.mxu0
      %2220 = vmatprep.mubr.bf16.mxu0 0
      %2221 = vmatmul.mubr.bf16.gmra.mxu0 %v2156
      %v2222 = vpop.f32.mrf.mxu0
      %v2223 = vadd.f32 0.0, %v2222
      %v2224 = vpop.f32.mrf.mxu0
      %v2225 = vpop.f32.mrf.mxu0
      %v2226 = vadd.f32 0.0, %v2225
      %v2227 = vpop.f32.mrf.mxu0
      %2228 = vmatprep.mubr.bf16.mxu0 0
      %2229 = vmatmul.mubr.bf16.gmra.mxu0 %v2159
      %v2230 = vpop.f32.mrf.mxu0
      %v2231 = vadd.f32 0.0, %v2230
      %v2232 = vpop.f32.mrf.mxu0
      %v2233 = vpop.f32.mrf.mxu0
      %v2234 = vadd.f32 0.0, %v2233
      %v2235 = vpop.f32.mrf.mxu0
      %2236 = vmatprep.mubr.bf16.mxu0 0
      %2237 = vmatmul.mubr.bf16.gmra.mxu0 %v2162
      %v2238 = vpop.f32.mrf.mxu0
      %v2239 = vadd.f32 0.0, %v2238
      %v2240 = vpop.f32.mrf.mxu0
      %v2241 = vpop.f32.mrf.mxu0
      %v2242 = vadd.f32 0.0, %v2241
      %v2243 = vpop.f32.mrf.mxu0
      %2244 = vmatprep.mubr.bf16.mxu0 0
      %2245 = vmatmul.mubr.bf16.gmra.mxu0 %v2165
      %v2246 = vpop.f32.mrf.mxu0
      %v2247 = vadd.f32 0.0, %v2246
      %v2248 = vpop.f32.mrf.mxu0
      %v2249 = vpop.f32.mrf.mxu0
      %v2250 = vadd.f32 0.0, %v2249
      %v2251 = vpop.f32.mrf.mxu0
      %2252 = vmatprep.mubr.bf16.mxu0 0
      %2253 = vmatmul.mubr.bf16.gmra.mxu0 %v2168
      %v2254 = vpop.f32.mrf.mxu0
      %v2255 = vadd.f32 0.0, %v2254
      %v2256 = vpop.f32.mrf.mxu0
      %v2257 = vpop.f32.mrf.mxu0
      %v2258 = vadd.f32 0.0, %v2257
      %v2259 = vpop.f32.mrf.mxu0
      %2260 = vmatprep.mubr.bf16.mxu0 0
      %2261 = vmatmul.mubr.bf16.gmra.mxu0 %v2171
      %v2262 = vpop.f32.mrf.mxu0
      %v2263 = vadd.f32 0.0, %v2262
      %v2264 = vpop.f32.mrf.mxu0
      %v2265 = vpop.f32.mrf.mxu0
      %v2266 = vadd.f32 0.0, %v2265
      %v2267 = vpop.f32.mrf.mxu0
      %2268 = vmatprep.mubr.bf16.mxu0 0
      %2269 = vmatmul.mubr.bf16.gmra.mxu0 %v2174
      %v2270 = vpop.f32.mrf.mxu0
      %v2271 = vadd.f32 0.0, %v2270
      %v2272 = vpop.f32.mrf.mxu0
      %v2273 = vpop.f32.mrf.mxu0
      %v2274 = vadd.f32 0.0, %v2273
      %v2275 = vpop.f32.mrf.mxu0
      %2276 = vdwg.mxu0
      %v2277 = vadd.f32 %v2078, %v2215
      %v2278 = vadd.f32 %v2079, %v2218
      %v2279 = vadd.f32 %v2080, %v2223
      %v2280 = vadd.f32 %v2081, %v2226
      %v2281 = vadd.f32 %v2082, %v2231
      %v2282 = vadd.f32 %v2083, %v2234
      %v2283 = vadd.f32 %v2084, %v2239
      %v2284 = vadd.f32 %v2085, %v2242
      %v2285 = vadd.f32 %v2086, %v2247
      %v2286 = vadd.f32 %v2087, %v2250
      %v2287 = vadd.f32 %v2088, %v2255
      %v2288 = vadd.f32 %v2089, %v2258
      %v2289 = vadd.f32 %v2090, %v2263
      %v2290 = vadd.f32 %v2091, %v2266
      %v2291 = vadd.f32 %v2092, %v2271
      %v2292 = vadd.f32 %v2093, %v2274
      %v2293 = vld [vmem:[%s4] sm:$0x1]
      %v2295 = vlaneseq
      %v2296 = vshrl.u32 %v2295, 7
      %v2297 = vsub.s32 0, %v2296
      %v2298 = vrot.slane %v2293, %v2297
      %v2300 = vadd.f32 %v2277, %v2298
      %v2301 = vadd.f32 %v2278, %v2298
      %v2302 = vadd.f32 %v2279, %v2298
      %v2303 = vadd.f32 %v2280, %v2298
      %v2304 = vadd.f32 %v2281, %v2298
      %v2305 = vadd.f32 %v2282, %v2298
      %v2306 = vadd.f32 %v2283, %v2298
      %v2307 = vadd.f32 %v2284, %v2298
      %v2308 = vadd.f32 %v2285, %v2298
      %v2309 = vadd.f32 %v2286, %v2298
      %v2310 = vadd.f32 %v2287, %v2298
      %v2311 = vadd.f32 %v2288, %v2298
      %v2312 = vadd.f32 %v2289, %v2298
      %v2313 = vadd.f32 %v2290, %v2298
      %v2314 = vadd.f32 %v2291, %v2298
      %v2315 = vadd.f32 %v2292, %v2298
      %v2316 = vmax.f32 %v2300, 0.0
      %v2317 = vmax.f32 %v2301, 0.0
      %v2318 = vmax.f32 %v2302, 0.0
      %v2319 = vmax.f32 %v2303, 0.0
      %v2320 = vmax.f32 %v2304, 0.0
      %v2321 = vmax.f32 %v2305, 0.0
      %v2322 = vmax.f32 %v2306, 0.0
      %v2323 = vmax.f32 %v2307, 0.0
      %v2324 = vmax.f32 %v2308, 0.0
      %v2325 = vmax.f32 %v2309, 0.0
      %v2326 = vmax.f32 %v2310, 0.0
      %v2327 = vmax.f32 %v2311, 0.0
      %v2328 = vmax.f32 %v2312, 0.0
      %v2329 = vmax.f32 %v2313, 0.0
      %v2330 = vmax.f32 %v2314, 0.0
      %v2331 = vmax.f32 %v2315, 0.0
      %vm2332 = vcmask 64512
      %2333 = vst.msk [vmem:[%s287] sm:$0xff] %vm2332, %v2316
      %2334 = vst.msk [vmem:[%s287 + $0x8] sm:$0xff] %vm2332, %v2317
      %2335 = vst.msk [vmem:[%s287 + $0x10] sm:$0xff] %vm2332, %v2318
      %2336 = vst.msk [vmem:[%s287 + $0x18] sm:$0xff] %vm2332, %v2319
      %2337 = vst.msk [vmem:[%s287 + $0x20] sm:$0xff] %vm2332, %v2320
      %2338 = vst.msk [vmem:[%s287 + $0x28] sm:$0xff] %vm2332, %v2321
      %2339 = vst.msk [vmem:[%s287 + $0x30] sm:$0xff] %vm2332, %v2322
      %2340 = vst.msk [vmem:[%s287 + $0x38] sm:$0xff] %vm2332, %v2323
      %2341 = vst.msk [vmem:[%s287 + $0x40] sm:$0xff] %vm2332, %v2324
      %2342 = vst.msk [vmem:[%s287 + $0x48] sm:$0xff] %vm2332, %v2325
      %2343 = vst.msk [vmem:[%s287 + $0x50] sm:$0xff] %vm2332, %v2326
      %2344 = vst.msk [vmem:[%s287 + $0x58] sm:$0xff] %vm2332, %v2327
      %2345 = vst.msk [vmem:[%s287 + $0x60] sm:$0xff] %vm2332, %v2328
      %2346 = vst.msk [vmem:[%s287 + $0x68] sm:$0xff] %vm2332, %v2329
      %2347 = vst.msk [vmem:[%s287 + $0x70] sm:$0xff] %vm2332, %v2330
      %2348 = vst.msk [vmem:[%s287 + $0x78] sm:$0xff] %vm2332, %v2331
      %s2349 = smul.u32 8, %s21
      %p2350 = scmp.lt.s32.totalorder %s20, 1
      %s2351 = scalar_select %p2350, %s20, 1
      %p2352 = scmp.lt.s32.totalorder %s2349, 15
      %s2353 = scalar_select %p2352, %s2349, 15
      %s2354 = smul.addr %s2353, 2
      %s2355 = smul.addr %s2351, 32
      %s2356 = sadd.s32 %s2354, %s2355
      %s2357 = smul.addr %s2356, 8
      %s2358 = scalar_lea.vmem %s5, %s2357
      // Predicated region
      $region45: #{af_basic_block_forward.3} parent=39 // pred_check
        %p2359 = pneg %p165
      $region46: #{af_basic_block_forward.3} parent=39 // pred_check_branch
        %2361 = sbr.rel (%p2359) target = $region48
      $region47: #{af_basic_block_forward.3} parent=39 // pred_region
        %s2362 = smul.u32 8, %s21
      $region48: #{af_basic_block_forward.3} parent=39 // pred_fallthru
        _
    $region40: #{af_basic_block_forward.3} parent=5 // pred_fallthru
      _
    %p2363 = scmp.le.s32.totalorder 2, %s11
    // Predicated region
    $region49: #{af_basic_block_forward.3} parent=5 // pred_check
      %p2364 = pneg %p2363
    $region50: #{af_basic_block_forward.3} parent=5 // pred_check_branch
      %2366 = sbr.rel (%p2364) target = $region52
    $region51: #{af_basic_block_forward.3} parent=5 // pred_region
      %s2367 = ssub.s32 %s11, 2
      // Predicated region
      $region53: #{af_basic_block_forward.3} parent=51 // pred_check
        %p2368 = pneg %p171
      $region54: #{af_basic_block_forward.3} parent=51 // pred_check_branch
        %2370 = sbr.rel (%p2368) target = $region56
      $region55: #{af_basic_block_forward.3} parent=51 // pred_region
        %s2371 = smul.u32 8, %s23
        %p2372 = scmp.lt.s32.totalorder %s22, 1
        %s2373 = scalar_select %p2372, %s22, 1
        %p2374 = scmp.lt.s32.totalorder %s2371, 15
        %s2375 = scalar_select %p2374, %s2371, 15
        %s2376 = smul.addr %s2375, 2
        %s2377 = smul.addr %s2373, 32
        %s2378 = sadd.s32 %s2376, %s2377
        %s2379 = smul.addr %s2378, 8
        %s2380 = scalar_lea.vmem %s5, %s2379
      $region56: #{af_basic_block_forward.3} parent=51 // pred_fallthru
        _
    $region52: #{af_basic_block_forward.3} parent=5 // pred_fallthru
      _
  $region6: #{af_basic_block_forward.3} parent=0 // loop_footer
    %s15 = sadd.s32 1, %s11
  $region7: #{af_basic_block_forward.3} parent=0 // loop_footer_branch
    %10 = sbr.rel target = $region3
  $region8: #{af_basic_block_forward.3} parent=0 // loop_exit
    _

</llo_original>
